<compile_context>
chip_gen: v6e
topology: v6e:2x2x1
jax: 0.10.0
libtpu: 0.0.40
codegen_flags: <defaults>
</compile_context>

<pallas_src>
import functools

import jax
import jax.numpy as jnp
from jax import lax
from jax.experimental import pallas as pl
from jax.experimental.pallas import tpu as pltpu

NEG_SLOPE = 0.01          # torch.nn.functional.leaky_relu default
DIMS = (1, 10, 18, 15, 4, 1)
LANE = 128
SUB_ROWS = 8              # one (8,128) f32 vreg per activation channel


def _round_up(a, b):
    return (a + b - 1) // b * b


def _layer_offsets(dims):
    """(w_offset, b_offset) per layer into the flat packed-param buffer."""
    offs, off = [], 0
    for i in range(len(dims) - 1):
        d_in, d_out = dims[i], dims[i + 1]
        offs.append((off, off + d_in * d_out))
        off += d_in * d_out + d_out
    return offs


def mlp_kernel(params_ref, x_ref, o_ref, *, dims):
    """params_ref: flat f32 params in SMEM.  x_ref/o_ref: (tile_rows, 128)."""
    n_layers = len(dims) - 1
    offsets = _layer_offsets(dims)

    def sub_block(xv):
        # xv: (SUB_ROWS, 128) — one vreg per channel, all-VPU MACs, no MXU.
        h = [xv]
        for layer in range(n_layers):
            d_in, d_out = dims[layer], dims[layer + 1]
            w_off, b_off = offsets[layer]
            new_h = []
            for j in range(d_out):
                acc = h[0] * params_ref[w_off + j * d_in]
                for k in range(1, d_in):
                    acc = acc + h[k] * params_ref[w_off + j * d_in + k]
                acc = acc + params_ref[b_off + j]
                if layer < n_layers - 1:
                    # leaky_relu, slope in (0,1): max(v, slope*v) == where(v>0,v,slope*v)
                    acc = jnp.maximum(acc, NEG_SLOPE * acc)
                new_h.append(acc)
            h = new_h
        return h[0]                      # final layer has a single channel

    n_sub = x_ref.shape[0] // SUB_ROWS   # static
    if n_sub == 1:
        o_ref[...] = sub_block(x_ref[...])
    else:
        def body(r, carry):
            row = pl.multiple_of(r * SUB_ROWS, SUB_ROWS)
            o_ref[pl.ds(row, SUB_ROWS), :] = sub_block(x_ref[pl.ds(row, SUB_ROWS), :])
            return carry
        lax.fori_loop(0, n_sub, body, 0, unroll=min(2, n_sub))


def mlp_forward(x, packed_params, dims=DIMS, *, tile_rows=256):
    """x: (N, 1) float32.  packed_params: flat f32 (all W row-major, then b, per layer)."""
    assert tile_rows % SUB_ROWS == 0
    n = x.shape[0]

    rows_needed = pl.cdiv(n, LANE)
    rows_8 = _round_up(rows_needed, SUB_ROWS)
    tile_rows_eff = min(tile_rows, rows_8)
    # If one grid step would cover everything but the batch is big enough,
    # split into >=2 parallel steps (v7x has 2 TensorCores).
    if rows_8 > SUB_ROWS and rows_8 <= tile_rows_eff:
        tile_rows_eff = max(SUB_ROWS, _round_up(rows_8 // 2, SUB_ROWS))
    rows_padded = _round_up(rows_8, tile_rows_eff)
    n_pad = rows_padded * LANE

    x_flat = jnp.pad(x[:, 0].astype(jnp.float32), (0, n_pad - n))
    x2d = x_flat.reshape(rows_padded, LANE)   # batch folded onto (sublane, lane)

    # Honest cost estimate: compute(VPU)-dominated, tiny HBM footprint.
    flops = 2 * n_pad * sum(dims[i] * dims[i + 1] for i in range(len(dims) - 1))
    bytes_accessed = 4 * n_pad * 2 + 4 * packed_params.size

    out2d = pl.pallas_call(
        functools.partial(mlp_kernel, dims=dims),
        out_shape=jax.ShapeDtypeStruct((rows_padded, LANE), jnp.float32),
        grid_spec=pltpu.PrefetchScalarGridSpec(
            num_scalar_prefetch=0,
            grid=(rows_padded // tile_rows_eff,),
            in_specs=[
                # single resident SMEM buffer holding every weight & bias
                pl.BlockSpec(memory_space=pltpu.MemorySpace.SMEM),
                # lane- and sublane-dense batch tile
                pl.BlockSpec((tile_rows_eff, LANE), lambda i: (i, 0)),
            ],
            out_specs=pl.BlockSpec((tile_rows_eff, LANE), lambda i: (i, 0)),
        ),
        compiler_params=pltpu.CompilerParams(
            dimension_semantics=("parallel",)),
        cost_estimate=pl.CostEstimate(
            flops=flops, transcendentals=0, bytes_accessed=bytes_accessed),
    )(packed_params, x2d)

    return out2d.reshape(n_pad)[:n].reshape(n, 1)


def init_params(key, dims=DIMS):
    """Deterministic init matching nn.Linear shapes.  Returns (packed, layers)."""
    layers, chunks = [], []
    for i in range(len(dims) - 1):
        fan_in, fan_out = dims[i], dims[i + 1]
        key, kw, kb = jax.random.split(key, 3)
        bound = 1.0 / (fan_in ** 0.5)
        w = jax.random.uniform(kw, (fan_out, fan_in), jnp.float32, -bound, bound)
        b = jax.random.uniform(kb, (fan_out,), jnp.float32, -bound, bound)
        layers.append((w, b))
        chunks.append(w.reshape(-1))
        chunks.append(b)
    return jnp.concatenate(chunks), layers


def reference_forward(x, layers):
    h = x
    for i, (w, b) in enumerate(layers):
        h = h @ w.T + b
        if i < len(layers) - 1:
            h = jnp.where(h > 0, h, NEG_SLOPE * h)
    return h


if __name__ == "__main__":
    key = jax.random.PRNGKey(0)
    packed, layers = init_params(key)

    # Same input as the module: 300 rows of linspace(-1, 1), shape (300, 1).
    n_rows = 300
    x = jnp.linspace(-1.0, 1.0, n_rows, dtype=jnp.float32).reshape(n_rows, 1)

    out = mlp_forward(x, packed)
    out = jax.block_until_ready(out)

    ref = reference_forward(x, layers)
    assert out.shape == (n_rows, 1)
    assert jnp.allclose(out, ref, atol=1e-5, rtol=1e-5), "mismatch vs reference"

    print("KERNEL_OK")
</pallas_src>

<mosaic_0001>
module attributes {stable_mosaic.version = 11 : i64} {
  func.func @mlp_kernel(%arg0: i32, %arg1: memref<572xf32, #tpu.memory_space<smem>>, %arg2: memref<8x128xf32, #tpu.memory_space<vmem>>, %arg3: memref<8x128xf32, #tpu.memory_space<vmem>>) attributes {dimension_semantics = [#tpu.dimension_semantics<parallel>], iteration_bounds = array<i64: 1>, scalar_prefetch = 0 : i64, scratch_operands = 0 : i64, tpu.core_type = #tpu.core_type<tc>, window_params = [{transform_indices = @transform_0, window_bounds = array<i64: 572>}, {transform_indices = @transform_1, window_bounds = array<i64: 8, 128>}, {transform_indices = @transform_2, window_bounds = array<i64: 8, 128>}]} {
    %c0 = arith.constant 0 : index
    %c0_0 = arith.constant 0 : index
    %0 = vector.load %arg2[%c0, %c0_0] : memref<8x128xf32, #tpu.memory_space<vmem>>, vector<8x128xf32>
    %c0_1 = arith.constant 0 : index
    %1 = memref.load %arg1[%c0_1] : memref<572xf32, #tpu.memory_space<smem>>
    %2 = vector.broadcast %1 : f32 to vector<8x128xf32>
    %3 = arith.mulf %0, %2 : vector<8x128xf32>
    %c10 = arith.constant 10 : index
    %4 = memref.load %arg1[%c10] : memref<572xf32, #tpu.memory_space<smem>>
    %5 = vector.broadcast %4 : f32 to vector<8x128xf32>
    %6 = arith.addf %3, %5 : vector<8x128xf32>
    %cst = arith.constant 0.00999999977 : f32
    %7 = vector.broadcast %cst : f32 to vector<8x128xf32>
    %8 = arith.mulf %7, %6 : vector<8x128xf32>
    %9 = arith.maximumf %6, %8 : vector<8x128xf32>
    %c1 = arith.constant 1 : index
    %10 = memref.load %arg1[%c1] : memref<572xf32, #tpu.memory_space<smem>>
    %11 = vector.broadcast %10 : f32 to vector<8x128xf32>
    %12 = arith.mulf %0, %11 : vector<8x128xf32>
    %c11 = arith.constant 11 : index
    %13 = memref.load %arg1[%c11] : memref<572xf32, #tpu.memory_space<smem>>
    %14 = vector.broadcast %13 : f32 to vector<8x128xf32>
    %15 = arith.addf %12, %14 : vector<8x128xf32>
    %cst_2 = arith.constant 0.00999999977 : f32
    %16 = vector.broadcast %cst_2 : f32 to vector<8x128xf32>
    %17 = arith.mulf %16, %15 : vector<8x128xf32>
    %18 = arith.maximumf %15, %17 : vector<8x128xf32>
    %c2 = arith.constant 2 : index
    %19 = memref.load %arg1[%c2] : memref<572xf32, #tpu.memory_space<smem>>
    %20 = vector.broadcast %19 : f32 to vector<8x128xf32>
    %21 = arith.mulf %0, %20 : vector<8x128xf32>
    %c12 = arith.constant 12 : index
    %22 = memref.load %arg1[%c12] : memref<572xf32, #tpu.memory_space<smem>>
    %23 = vector.broadcast %22 : f32 to vector<8x128xf32>
    %24 = arith.addf %21, %23 : vector<8x128xf32>
    %cst_3 = arith.constant 0.00999999977 : f32
    %25 = vector.broadcast %cst_3 : f32 to vector<8x128xf32>
    %26 = arith.mulf %25, %24 : vector<8x128xf32>
    %27 = arith.maximumf %24, %26 : vector<8x128xf32>
    %c3 = arith.constant 3 : index
    %28 = memref.load %arg1[%c3] : memref<572xf32, #tpu.memory_space<smem>>
    %29 = vector.broadcast %28 : f32 to vector<8x128xf32>
    %30 = arith.mulf %0, %29 : vector<8x128xf32>
    %c13 = arith.constant 13 : index
    %31 = memref.load %arg1[%c13] : memref<572xf32, #tpu.memory_space<smem>>
    %32 = vector.broadcast %31 : f32 to vector<8x128xf32>
    %33 = arith.addf %30, %32 : vector<8x128xf32>
    %cst_4 = arith.constant 0.00999999977 : f32
    %34 = vector.broadcast %cst_4 : f32 to vector<8x128xf32>
    %35 = arith.mulf %34, %33 : vector<8x128xf32>
    %36 = arith.maximumf %33, %35 : vector<8x128xf32>
    %c4 = arith.constant 4 : index
    %37 = memref.load %arg1[%c4] : memref<572xf32, #tpu.memory_space<smem>>
    %38 = vector.broadcast %37 : f32 to vector<8x128xf32>
    %39 = arith.mulf %0, %38 : vector<8x128xf32>
    %c14 = arith.constant 14 : index
    %40 = memref.load %arg1[%c14] : memref<572xf32, #tpu.memory_space<smem>>
    %41 = vector.broadcast %40 : f32 to vector<8x128xf32>
    %42 = arith.addf %39, %41 : vector<8x128xf32>
    %cst_5 = arith.constant 0.00999999977 : f32
    %43 = vector.broadcast %cst_5 : f32 to vector<8x128xf32>
    %44 = arith.mulf %43, %42 : vector<8x128xf32>
    %45 = arith.maximumf %42, %44 : vector<8x128xf32>
    %c5 = arith.constant 5 : index
    %46 = memref.load %arg1[%c5] : memref<572xf32, #tpu.memory_space<smem>>
    %47 = vector.broadcast %46 : f32 to vector<8x128xf32>
    %48 = arith.mulf %0, %47 : vector<8x128xf32>
    %c15 = arith.constant 15 : index
    %49 = memref.load %arg1[%c15] : memref<572xf32, #tpu.memory_space<smem>>
    %50 = vector.broadcast %49 : f32 to vector<8x128xf32>
    %51 = arith.addf %48, %50 : vector<8x128xf32>
    %cst_6 = arith.constant 0.00999999977 : f32
    %52 = vector.broadcast %cst_6 : f32 to vector<8x128xf32>
    %53 = arith.mulf %52, %51 : vector<8x128xf32>
    %54 = arith.maximumf %51, %53 : vector<8x128xf32>
    %c6 = arith.constant 6 : index
    %55 = memref.load %arg1[%c6] : memref<572xf32, #tpu.memory_space<smem>>
    %56 = vector.broadcast %55 : f32 to vector<8x128xf32>
    %57 = arith.mulf %0, %56 : vector<8x128xf32>
    %c16 = arith.constant 16 : index
    %58 = memref.load %arg1[%c16] : memref<572xf32, #tpu.memory_space<smem>>
    %59 = vector.broadcast %58 : f32 to vector<8x128xf32>
    %60 = arith.addf %57, %59 : vector<8x128xf32>
    %cst_7 = arith.constant 0.00999999977 : f32
    %61 = vector.broadcast %cst_7 : f32 to vector<8x128xf32>
    %62 = arith.mulf %61, %60 : vector<8x128xf32>
    %63 = arith.maximumf %60, %62 : vector<8x128xf32>
    %c7 = arith.constant 7 : index
    %64 = memref.load %arg1[%c7] : memref<572xf32, #tpu.memory_space<smem>>
    %65 = vector.broadcast %64 : f32 to vector<8x128xf32>
    %66 = arith.mulf %0, %65 : vector<8x128xf32>
    %c17 = arith.constant 17 : index
    %67 = memref.load %arg1[%c17] : memref<572xf32, #tpu.memory_space<smem>>
    %68 = vector.broadcast %67 : f32 to vector<8x128xf32>
    %69 = arith.addf %66, %68 : vector<8x128xf32>
    %cst_8 = arith.constant 0.00999999977 : f32
    %70 = vector.broadcast %cst_8 : f32 to vector<8x128xf32>
    %71 = arith.mulf %70, %69 : vector<8x128xf32>
    %72 = arith.maximumf %69, %71 : vector<8x128xf32>
    %c8 = arith.constant 8 : index
    %73 = memref.load %arg1[%c8] : memref<572xf32, #tpu.memory_space<smem>>
    %74 = vector.broadcast %73 : f32 to vector<8x128xf32>
    %75 = arith.mulf %0, %74 : vector<8x128xf32>
    %c18 = arith.constant 18 : index
    %76 = memref.load %arg1[%c18] : memref<572xf32, #tpu.memory_space<smem>>
    %77 = vector.broadcast %76 : f32 to vector<8x128xf32>
    %78 = arith.addf %75, %77 : vector<8x128xf32>
    %cst_9 = arith.constant 0.00999999977 : f32
    %79 = vector.broadcast %cst_9 : f32 to vector<8x128xf32>
    %80 = arith.mulf %79, %78 : vector<8x128xf32>
    %81 = arith.maximumf %78, %80 : vector<8x128xf32>
    %c9 = arith.constant 9 : index
    %82 = memref.load %arg1[%c9] : memref<572xf32, #tpu.memory_space<smem>>
    %83 = vector.broadcast %82 : f32 to vector<8x128xf32>
    %84 = arith.mulf %0, %83 : vector<8x128xf32>
    %c19 = arith.constant 19 : index
    %85 = memref.load %arg1[%c19] : memref<572xf32, #tpu.memory_space<smem>>
    %86 = vector.broadcast %85 : f32 to vector<8x128xf32>
    %87 = arith.addf %84, %86 : vector<8x128xf32>
    %cst_10 = arith.constant 0.00999999977 : f32
    %88 = vector.broadcast %cst_10 : f32 to vector<8x128xf32>
    %89 = arith.mulf %88, %87 : vector<8x128xf32>
    %90 = arith.maximumf %87, %89 : vector<8x128xf32>
    %c20 = arith.constant 20 : index
    %91 = memref.load %arg1[%c20] : memref<572xf32, #tpu.memory_space<smem>>
    %92 = vector.broadcast %91 : f32 to vector<8x128xf32>
    %93 = arith.mulf %9, %92 : vector<8x128xf32>
    %c21 = arith.constant 21 : index
    %94 = memref.load %arg1[%c21] : memref<572xf32, #tpu.memory_space<smem>>
    %95 = vector.broadcast %94 : f32 to vector<8x128xf32>
    %96 = arith.mulf %18, %95 : vector<8x128xf32>
    %97 = arith.addf %93, %96 : vector<8x128xf32>
    %c22 = arith.constant 22 : index
    %98 = memref.load %arg1[%c22] : memref<572xf32, #tpu.memory_space<smem>>
    %99 = vector.broadcast %98 : f32 to vector<8x128xf32>
    %100 = arith.mulf %27, %99 : vector<8x128xf32>
    %101 = arith.addf %97, %100 : vector<8x128xf32>
    %c23 = arith.constant 23 : index
    %102 = memref.load %arg1[%c23] : memref<572xf32, #tpu.memory_space<smem>>
    %103 = vector.broadcast %102 : f32 to vector<8x128xf32>
    %104 = arith.mulf %36, %103 : vector<8x128xf32>
    %105 = arith.addf %101, %104 : vector<8x128xf32>
    %c24 = arith.constant 24 : index
    %106 = memref.load %arg1[%c24] : memref<572xf32, #tpu.memory_space<smem>>
    %107 = vector.broadcast %106 : f32 to vector<8x128xf32>
    %108 = arith.mulf %45, %107 : vector<8x128xf32>
    %109 = arith.addf %105, %108 : vector<8x128xf32>
    %c25 = arith.constant 25 : index
    %110 = memref.load %arg1[%c25] : memref<572xf32, #tpu.memory_space<smem>>
    %111 = vector.broadcast %110 : f32 to vector<8x128xf32>
    %112 = arith.mulf %54, %111 : vector<8x128xf32>
    %113 = arith.addf %109, %112 : vector<8x128xf32>
    %c26 = arith.constant 26 : index
    %114 = memref.load %arg1[%c26] : memref<572xf32, #tpu.memory_space<smem>>
    %115 = vector.broadcast %114 : f32 to vector<8x128xf32>
    %116 = arith.mulf %63, %115 : vector<8x128xf32>
    %117 = arith.addf %113, %116 : vector<8x128xf32>
    %c27 = arith.constant 27 : index
    %118 = memref.load %arg1[%c27] : memref<572xf32, #tpu.memory_space<smem>>
    %119 = vector.broadcast %118 : f32 to vector<8x128xf32>
    %120 = arith.mulf %72, %119 : vector<8x128xf32>
    %121 = arith.addf %117, %120 : vector<8x128xf32>
    %c28 = arith.constant 28 : index
    %122 = memref.load %arg1[%c28] : memref<572xf32, #tpu.memory_space<smem>>
    %123 = vector.broadcast %122 : f32 to vector<8x128xf32>
    %124 = arith.mulf %81, %123 : vector<8x128xf32>
    %125 = arith.addf %121, %124 : vector<8x128xf32>
    %c29 = arith.constant 29 : index
    %126 = memref.load %arg1[%c29] : memref<572xf32, #tpu.memory_space<smem>>
    %127 = vector.broadcast %126 : f32 to vector<8x128xf32>
    %128 = arith.mulf %90, %127 : vector<8x128xf32>
    %129 = arith.addf %125, %128 : vector<8x128xf32>
    %c200 = arith.constant 200 : index
    %130 = memref.load %arg1[%c200] : memref<572xf32, #tpu.memory_space<smem>>
    %131 = vector.broadcast %130 : f32 to vector<8x128xf32>
    %132 = arith.addf %129, %131 : vector<8x128xf32>
    %cst_11 = arith.constant 0.00999999977 : f32
    %133 = vector.broadcast %cst_11 : f32 to vector<8x128xf32>
    %134 = arith.mulf %133, %132 : vector<8x128xf32>
    %135 = arith.maximumf %132, %134 : vector<8x128xf32>
    %c30 = arith.constant 30 : index
    %136 = memref.load %arg1[%c30] : memref<572xf32, #tpu.memory_space<smem>>
    %137 = vector.broadcast %136 : f32 to vector<8x128xf32>
    %138 = arith.mulf %9, %137 : vector<8x128xf32>
    %c31 = arith.constant 31 : index
    %139 = memref.load %arg1[%c31] : memref<572xf32, #tpu.memory_space<smem>>
    %140 = vector.broadcast %139 : f32 to vector<8x128xf32>
    %141 = arith.mulf %18, %140 : vector<8x128xf32>
    %142 = arith.addf %138, %141 : vector<8x128xf32>
    %c32 = arith.constant 32 : index
    %143 = memref.load %arg1[%c32] : memref<572xf32, #tpu.memory_space<smem>>
    %144 = vector.broadcast %143 : f32 to vector<8x128xf32>
    %145 = arith.mulf %27, %144 : vector<8x128xf32>
    %146 = arith.addf %142, %145 : vector<8x128xf32>
    %c33 = arith.constant 33 : index
    %147 = memref.load %arg1[%c33] : memref<572xf32, #tpu.memory_space<smem>>
    %148 = vector.broadcast %147 : f32 to vector<8x128xf32>
    %149 = arith.mulf %36, %148 : vector<8x128xf32>
    %150 = arith.addf %146, %149 : vector<8x128xf32>
    %c34 = arith.constant 34 : index
    %151 = memref.load %arg1[%c34] : memref<572xf32, #tpu.memory_space<smem>>
    %152 = vector.broadcast %151 : f32 to vector<8x128xf32>
    %153 = arith.mulf %45, %152 : vector<8x128xf32>
    %154 = arith.addf %150, %153 : vector<8x128xf32>
    %c35 = arith.constant 35 : index
    %155 = memref.load %arg1[%c35] : memref<572xf32, #tpu.memory_space<smem>>
    %156 = vector.broadcast %155 : f32 to vector<8x128xf32>
    %157 = arith.mulf %54, %156 : vector<8x128xf32>
    %158 = arith.addf %154, %157 : vector<8x128xf32>
    %c36 = arith.constant 36 : index
    %159 = memref.load %arg1[%c36] : memref<572xf32, #tpu.memory_space<smem>>
    %160 = vector.broadcast %159 : f32 to vector<8x128xf32>
    %161 = arith.mulf %63, %160 : vector<8x128xf32>
    %162 = arith.addf %158, %161 : vector<8x128xf32>
    %c37 = arith.constant 37 : index
    %163 = memref.load %arg1[%c37] : memref<572xf32, #tpu.memory_space<smem>>
    %164 = vector.broadcast %163 : f32 to vector<8x128xf32>
    %165 = arith.mulf %72, %164 : vector<8x128xf32>
    %166 = arith.addf %162, %165 : vector<8x128xf32>
    %c38 = arith.constant 38 : index
    %167 = memref.load %arg1[%c38] : memref<572xf32, #tpu.memory_space<smem>>
    %168 = vector.broadcast %167 : f32 to vector<8x128xf32>
    %169 = arith.mulf %81, %168 : vector<8x128xf32>
    %170 = arith.addf %166, %169 : vector<8x128xf32>
    %c39 = arith.constant 39 : index
    %171 = memref.load %arg1[%c39] : memref<572xf32, #tpu.memory_space<smem>>
    %172 = vector.broadcast %171 : f32 to vector<8x128xf32>
    %173 = arith.mulf %90, %172 : vector<8x128xf32>
    %174 = arith.addf %170, %173 : vector<8x128xf32>
    %c201 = arith.constant 201 : index
    %175 = memref.load %arg1[%c201] : memref<572xf32, #tpu.memory_space<smem>>
    %176 = vector.broadcast %175 : f32 to vector<8x128xf32>
    %177 = arith.addf %174, %176 : vector<8x128xf32>
    %cst_12 = arith.constant 0.00999999977 : f32
    %178 = vector.broadcast %cst_12 : f32 to vector<8x128xf32>
    %179 = arith.mulf %178, %177 : vector<8x128xf32>
    %180 = arith.maximumf %177, %179 : vector<8x128xf32>
    %c40 = arith.constant 40 : index
    %181 = memref.load %arg1[%c40] : memref<572xf32, #tpu.memory_space<smem>>
    %182 = vector.broadcast %181 : f32 to vector<8x128xf32>
    %183 = arith.mulf %9, %182 : vector<8x128xf32>
    %c41 = arith.constant 41 : index
    %184 = memref.load %arg1[%c41] : memref<572xf32, #tpu.memory_space<smem>>
    %185 = vector.broadcast %184 : f32 to vector<8x128xf32>
    %186 = arith.mulf %18, %185 : vector<8x128xf32>
    %187 = arith.addf %183, %186 : vector<8x128xf32>
    %c42 = arith.constant 42 : index
    %188 = memref.load %arg1[%c42] : memref<572xf32, #tpu.memory_space<smem>>
    %189 = vector.broadcast %188 : f32 to vector<8x128xf32>
    %190 = arith.mulf %27, %189 : vector<8x128xf32>
    %191 = arith.addf %187, %190 : vector<8x128xf32>
    %c43 = arith.constant 43 : index
    %192 = memref.load %arg1[%c43] : memref<572xf32, #tpu.memory_space<smem>>
    %193 = vector.broadcast %192 : f32 to vector<8x128xf32>
    %194 = arith.mulf %36, %193 : vector<8x128xf32>
    %195 = arith.addf %191, %194 : vector<8x128xf32>
    %c44 = arith.constant 44 : index
    %196 = memref.load %arg1[%c44] : memref<572xf32, #tpu.memory_space<smem>>
    %197 = vector.broadcast %196 : f32 to vector<8x128xf32>
    %198 = arith.mulf %45, %197 : vector<8x128xf32>
    %199 = arith.addf %195, %198 : vector<8x128xf32>
    %c45 = arith.constant 45 : index
    %200 = memref.load %arg1[%c45] : memref<572xf32, #tpu.memory_space<smem>>
    %201 = vector.broadcast %200 : f32 to vector<8x128xf32>
    %202 = arith.mulf %54, %201 : vector<8x128xf32>
    %203 = arith.addf %199, %202 : vector<8x128xf32>
    %c46 = arith.constant 46 : index
    %204 = memref.load %arg1[%c46] : memref<572xf32, #tpu.memory_space<smem>>
    %205 = vector.broadcast %204 : f32 to vector<8x128xf32>
    %206 = arith.mulf %63, %205 : vector<8x128xf32>
    %207 = arith.addf %203, %206 : vector<8x128xf32>
    %c47 = arith.constant 47 : index
    %208 = memref.load %arg1[%c47] : memref<572xf32, #tpu.memory_space<smem>>
    %209 = vector.broadcast %208 : f32 to vector<8x128xf32>
    %210 = arith.mulf %72, %209 : vector<8x128xf32>
    %211 = arith.addf %207, %210 : vector<8x128xf32>
    %c48 = arith.constant 48 : index
    %212 = memref.load %arg1[%c48] : memref<572xf32, #tpu.memory_space<smem>>
    %213 = vector.broadcast %212 : f32 to vector<8x128xf32>
    %214 = arith.mulf %81, %213 : vector<8x128xf32>
    %215 = arith.addf %211, %214 : vector<8x128xf32>
    %c49 = arith.constant 49 : index
    %216 = memref.load %arg1[%c49] : memref<572xf32, #tpu.memory_space<smem>>
    %217 = vector.broadcast %216 : f32 to vector<8x128xf32>
    %218 = arith.mulf %90, %217 : vector<8x128xf32>
    %219 = arith.addf %215, %218 : vector<8x128xf32>
    %c202 = arith.constant 202 : index
    %220 = memref.load %arg1[%c202] : memref<572xf32, #tpu.memory_space<smem>>
    %221 = vector.broadcast %220 : f32 to vector<8x128xf32>
    %222 = arith.addf %219, %221 : vector<8x128xf32>
    %cst_13 = arith.constant 0.00999999977 : f32
    %223 = vector.broadcast %cst_13 : f32 to vector<8x128xf32>
    %224 = arith.mulf %223, %222 : vector<8x128xf32>
    %225 = arith.maximumf %222, %224 : vector<8x128xf32>
    %c50 = arith.constant 50 : index
    %226 = memref.load %arg1[%c50] : memref<572xf32, #tpu.memory_space<smem>>
    %227 = vector.broadcast %226 : f32 to vector<8x128xf32>
    %228 = arith.mulf %9, %227 : vector<8x128xf32>
    %c51 = arith.constant 51 : index
    %229 = memref.load %arg1[%c51] : memref<572xf32, #tpu.memory_space<smem>>
    %230 = vector.broadcast %229 : f32 to vector<8x128xf32>
    %231 = arith.mulf %18, %230 : vector<8x128xf32>
    %232 = arith.addf %228, %231 : vector<8x128xf32>
    %c52 = arith.constant 52 : index
    %233 = memref.load %arg1[%c52] : memref<572xf32, #tpu.memory_space<smem>>
    %234 = vector.broadcast %233 : f32 to vector<8x128xf32>
    %235 = arith.mulf %27, %234 : vector<8x128xf32>
    %236 = arith.addf %232, %235 : vector<8x128xf32>
    %c53 = arith.constant 53 : index
    %237 = memref.load %arg1[%c53] : memref<572xf32, #tpu.memory_space<smem>>
    %238 = vector.broadcast %237 : f32 to vector<8x128xf32>
    %239 = arith.mulf %36, %238 : vector<8x128xf32>
    %240 = arith.addf %236, %239 : vector<8x128xf32>
    %c54 = arith.constant 54 : index
    %241 = memref.load %arg1[%c54] : memref<572xf32, #tpu.memory_space<smem>>
    %242 = vector.broadcast %241 : f32 to vector<8x128xf32>
    %243 = arith.mulf %45, %242 : vector<8x128xf32>
    %244 = arith.addf %240, %243 : vector<8x128xf32>
    %c55 = arith.constant 55 : index
    %245 = memref.load %arg1[%c55] : memref<572xf32, #tpu.memory_space<smem>>
    %246 = vector.broadcast %245 : f32 to vector<8x128xf32>
    %247 = arith.mulf %54, %246 : vector<8x128xf32>
    %248 = arith.addf %244, %247 : vector<8x128xf32>
    %c56 = arith.constant 56 : index
    %249 = memref.load %arg1[%c56] : memref<572xf32, #tpu.memory_space<smem>>
    %250 = vector.broadcast %249 : f32 to vector<8x128xf32>
    %251 = arith.mulf %63, %250 : vector<8x128xf32>
    %252 = arith.addf %248, %251 : vector<8x128xf32>
    %c57 = arith.constant 57 : index
    %253 = memref.load %arg1[%c57] : memref<572xf32, #tpu.memory_space<smem>>
    %254 = vector.broadcast %253 : f32 to vector<8x128xf32>
    %255 = arith.mulf %72, %254 : vector<8x128xf32>
    %256 = arith.addf %252, %255 : vector<8x128xf32>
    %c58 = arith.constant 58 : index
    %257 = memref.load %arg1[%c58] : memref<572xf32, #tpu.memory_space<smem>>
    %258 = vector.broadcast %257 : f32 to vector<8x128xf32>
    %259 = arith.mulf %81, %258 : vector<8x128xf32>
    %260 = arith.addf %256, %259 : vector<8x128xf32>
    %c59 = arith.constant 59 : index
    %261 = memref.load %arg1[%c59] : memref<572xf32, #tpu.memory_space<smem>>
    %262 = vector.broadcast %261 : f32 to vector<8x128xf32>
    %263 = arith.mulf %90, %262 : vector<8x128xf32>
    %264 = arith.addf %260, %263 : vector<8x128xf32>
    %c203 = arith.constant 203 : index
    %265 = memref.load %arg1[%c203] : memref<572xf32, #tpu.memory_space<smem>>
    %266 = vector.broadcast %265 : f32 to vector<8x128xf32>
    %267 = arith.addf %264, %266 : vector<8x128xf32>
    %cst_14 = arith.constant 0.00999999977 : f32
    %268 = vector.broadcast %cst_14 : f32 to vector<8x128xf32>
    %269 = arith.mulf %268, %267 : vector<8x128xf32>
    %270 = arith.maximumf %267, %269 : vector<8x128xf32>
    %c60 = arith.constant 60 : index
    %271 = memref.load %arg1[%c60] : memref<572xf32, #tpu.memory_space<smem>>
    %272 = vector.broadcast %271 : f32 to vector<8x128xf32>
    %273 = arith.mulf %9, %272 : vector<8x128xf32>
    %c61 = arith.constant 61 : index
    %274 = memref.load %arg1[%c61] : memref<572xf32, #tpu.memory_space<smem>>
    %275 = vector.broadcast %274 : f32 to vector<8x128xf32>
    %276 = arith.mulf %18, %275 : vector<8x128xf32>
    %277 = arith.addf %273, %276 : vector<8x128xf32>
    %c62 = arith.constant 62 : index
    %278 = memref.load %arg1[%c62] : memref<572xf32, #tpu.memory_space<smem>>
    %279 = vector.broadcast %278 : f32 to vector<8x128xf32>
    %280 = arith.mulf %27, %279 : vector<8x128xf32>
    %281 = arith.addf %277, %280 : vector<8x128xf32>
    %c63 = arith.constant 63 : index
    %282 = memref.load %arg1[%c63] : memref<572xf32, #tpu.memory_space<smem>>
    %283 = vector.broadcast %282 : f32 to vector<8x128xf32>
    %284 = arith.mulf %36, %283 : vector<8x128xf32>
    %285 = arith.addf %281, %284 : vector<8x128xf32>
    %c64 = arith.constant 64 : index
    %286 = memref.load %arg1[%c64] : memref<572xf32, #tpu.memory_space<smem>>
    %287 = vector.broadcast %286 : f32 to vector<8x128xf32>
    %288 = arith.mulf %45, %287 : vector<8x128xf32>
    %289 = arith.addf %285, %288 : vector<8x128xf32>
    %c65 = arith.constant 65 : index
    %290 = memref.load %arg1[%c65] : memref<572xf32, #tpu.memory_space<smem>>
    %291 = vector.broadcast %290 : f32 to vector<8x128xf32>
    %292 = arith.mulf %54, %291 : vector<8x128xf32>
    %293 = arith.addf %289, %292 : vector<8x128xf32>
    %c66 = arith.constant 66 : index
    %294 = memref.load %arg1[%c66] : memref<572xf32, #tpu.memory_space<smem>>
    %295 = vector.broadcast %294 : f32 to vector<8x128xf32>
    %296 = arith.mulf %63, %295 : vector<8x128xf32>
    %297 = arith.addf %293, %296 : vector<8x128xf32>
    %c67 = arith.constant 67 : index
    %298 = memref.load %arg1[%c67] : memref<572xf32, #tpu.memory_space<smem>>
    %299 = vector.broadcast %298 : f32 to vector<8x128xf32>
    %300 = arith.mulf %72, %299 : vector<8x128xf32>
    %301 = arith.addf %297, %300 : vector<8x128xf32>
    %c68 = arith.constant 68 : index
    %302 = memref.load %arg1[%c68] : memref<572xf32, #tpu.memory_space<smem>>
    %303 = vector.broadcast %302 : f32 to vector<8x128xf32>
    %304 = arith.mulf %81, %303 : vector<8x128xf32>
    %305 = arith.addf %301, %304 : vector<8x128xf32>
    %c69 = arith.constant 69 : index
    %306 = memref.load %arg1[%c69] : memref<572xf32, #tpu.memory_space<smem>>
    %307 = vector.broadcast %306 : f32 to vector<8x128xf32>
    %308 = arith.mulf %90, %307 : vector<8x128xf32>
    %309 = arith.addf %305, %308 : vector<8x128xf32>
    %c204 = arith.constant 204 : index
    %310 = memref.load %arg1[%c204] : memref<572xf32, #tpu.memory_space<smem>>
    %311 = vector.broadcast %310 : f32 to vector<8x128xf32>
    %312 = arith.addf %309, %311 : vector<8x128xf32>
    %cst_15 = arith.constant 0.00999999977 : f32
    %313 = vector.broadcast %cst_15 : f32 to vector<8x128xf32>
    %314 = arith.mulf %313, %312 : vector<8x128xf32>
    %315 = arith.maximumf %312, %314 : vector<8x128xf32>
    %c70 = arith.constant 70 : index
    %316 = memref.load %arg1[%c70] : memref<572xf32, #tpu.memory_space<smem>>
    %317 = vector.broadcast %316 : f32 to vector<8x128xf32>
    %318 = arith.mulf %9, %317 : vector<8x128xf32>
    %c71 = arith.constant 71 : index
    %319 = memref.load %arg1[%c71] : memref<572xf32, #tpu.memory_space<smem>>
    %320 = vector.broadcast %319 : f32 to vector<8x128xf32>
    %321 = arith.mulf %18, %320 : vector<8x128xf32>
    %322 = arith.addf %318, %321 : vector<8x128xf32>
    %c72 = arith.constant 72 : index
    %323 = memref.load %arg1[%c72] : memref<572xf32, #tpu.memory_space<smem>>
    %324 = vector.broadcast %323 : f32 to vector<8x128xf32>
    %325 = arith.mulf %27, %324 : vector<8x128xf32>
    %326 = arith.addf %322, %325 : vector<8x128xf32>
    %c73 = arith.constant 73 : index
    %327 = memref.load %arg1[%c73] : memref<572xf32, #tpu.memory_space<smem>>
    %328 = vector.broadcast %327 : f32 to vector<8x128xf32>
    %329 = arith.mulf %36, %328 : vector<8x128xf32>
    %330 = arith.addf %326, %329 : vector<8x128xf32>
    %c74 = arith.constant 74 : index
    %331 = memref.load %arg1[%c74] : memref<572xf32, #tpu.memory_space<smem>>
    %332 = vector.broadcast %331 : f32 to vector<8x128xf32>
    %333 = arith.mulf %45, %332 : vector<8x128xf32>
    %334 = arith.addf %330, %333 : vector<8x128xf32>
    %c75 = arith.constant 75 : index
    %335 = memref.load %arg1[%c75] : memref<572xf32, #tpu.memory_space<smem>>
    %336 = vector.broadcast %335 : f32 to vector<8x128xf32>
    %337 = arith.mulf %54, %336 : vector<8x128xf32>
    %338 = arith.addf %334, %337 : vector<8x128xf32>
    %c76 = arith.constant 76 : index
    %339 = memref.load %arg1[%c76] : memref<572xf32, #tpu.memory_space<smem>>
    %340 = vector.broadcast %339 : f32 to vector<8x128xf32>
    %341 = arith.mulf %63, %340 : vector<8x128xf32>
    %342 = arith.addf %338, %341 : vector<8x128xf32>
    %c77 = arith.constant 77 : index
    %343 = memref.load %arg1[%c77] : memref<572xf32, #tpu.memory_space<smem>>
    %344 = vector.broadcast %343 : f32 to vector<8x128xf32>
    %345 = arith.mulf %72, %344 : vector<8x128xf32>
    %346 = arith.addf %342, %345 : vector<8x128xf32>
    %c78 = arith.constant 78 : index
    %347 = memref.load %arg1[%c78] : memref<572xf32, #tpu.memory_space<smem>>
    %348 = vector.broadcast %347 : f32 to vector<8x128xf32>
    %349 = arith.mulf %81, %348 : vector<8x128xf32>
    %350 = arith.addf %346, %349 : vector<8x128xf32>
    %c79 = arith.constant 79 : index
    %351 = memref.load %arg1[%c79] : memref<572xf32, #tpu.memory_space<smem>>
    %352 = vector.broadcast %351 : f32 to vector<8x128xf32>
    %353 = arith.mulf %90, %352 : vector<8x128xf32>
    %354 = arith.addf %350, %353 : vector<8x128xf32>
    %c205 = arith.constant 205 : index
    %355 = memref.load %arg1[%c205] : memref<572xf32, #tpu.memory_space<smem>>
    %356 = vector.broadcast %355 : f32 to vector<8x128xf32>
    %357 = arith.addf %354, %356 : vector<8x128xf32>
    %cst_16 = arith.constant 0.00999999977 : f32
    %358 = vector.broadcast %cst_16 : f32 to vector<8x128xf32>
    %359 = arith.mulf %358, %357 : vector<8x128xf32>
    %360 = arith.maximumf %357, %359 : vector<8x128xf32>
    %c80 = arith.constant 80 : index
    %361 = memref.load %arg1[%c80] : memref<572xf32, #tpu.memory_space<smem>>
    %362 = vector.broadcast %361 : f32 to vector<8x128xf32>
    %363 = arith.mulf %9, %362 : vector<8x128xf32>
    %c81 = arith.constant 81 : index
    %364 = memref.load %arg1[%c81] : memref<572xf32, #tpu.memory_space<smem>>
    %365 = vector.broadcast %364 : f32 to vector<8x128xf32>
    %366 = arith.mulf %18, %365 : vector<8x128xf32>
    %367 = arith.addf %363, %366 : vector<8x128xf32>
    %c82 = arith.constant 82 : index
    %368 = memref.load %arg1[%c82] : memref<572xf32, #tpu.memory_space<smem>>
    %369 = vector.broadcast %368 : f32 to vector<8x128xf32>
    %370 = arith.mulf %27, %369 : vector<8x128xf32>
    %371 = arith.addf %367, %370 : vector<8x128xf32>
    %c83 = arith.constant 83 : index
    %372 = memref.load %arg1[%c83] : memref<572xf32, #tpu.memory_space<smem>>
    %373 = vector.broadcast %372 : f32 to vector<8x128xf32>
    %374 = arith.mulf %36, %373 : vector<8x128xf32>
    %375 = arith.addf %371, %374 : vector<8x128xf32>
    %c84 = arith.constant 84 : index
    %376 = memref.load %arg1[%c84] : memref<572xf32, #tpu.memory_space<smem>>
    %377 = vector.broadcast %376 : f32 to vector<8x128xf32>
    %378 = arith.mulf %45, %377 : vector<8x128xf32>
    %379 = arith.addf %375, %378 : vector<8x128xf32>
    %c85 = arith.constant 85 : index
    %380 = memref.load %arg1[%c85] : memref<572xf32, #tpu.memory_space<smem>>
    %381 = vector.broadcast %380 : f32 to vector<8x128xf32>
    %382 = arith.mulf %54, %381 : vector<8x128xf32>
    %383 = arith.addf %379, %382 : vector<8x128xf32>
    %c86 = arith.constant 86 : index
    %384 = memref.load %arg1[%c86] : memref<572xf32, #tpu.memory_space<smem>>
    %385 = vector.broadcast %384 : f32 to vector<8x128xf32>
    %386 = arith.mulf %63, %385 : vector<8x128xf32>
    %387 = arith.addf %383, %386 : vector<8x128xf32>
    %c87 = arith.constant 87 : index
    %388 = memref.load %arg1[%c87] : memref<572xf32, #tpu.memory_space<smem>>
    %389 = vector.broadcast %388 : f32 to vector<8x128xf32>
    %390 = arith.mulf %72, %389 : vector<8x128xf32>
    %391 = arith.addf %387, %390 : vector<8x128xf32>
    %c88 = arith.constant 88 : index
    %392 = memref.load %arg1[%c88] : memref<572xf32, #tpu.memory_space<smem>>
    %393 = vector.broadcast %392 : f32 to vector<8x128xf32>
    %394 = arith.mulf %81, %393 : vector<8x128xf32>
    %395 = arith.addf %391, %394 : vector<8x128xf32>
    %c89 = arith.constant 89 : index
    %396 = memref.load %arg1[%c89] : memref<572xf32, #tpu.memory_space<smem>>
    %397 = vector.broadcast %396 : f32 to vector<8x128xf32>
    %398 = arith.mulf %90, %397 : vector<8x128xf32>
    %399 = arith.addf %395, %398 : vector<8x128xf32>
    %c206 = arith.constant 206 : index
    %400 = memref.load %arg1[%c206] : memref<572xf32, #tpu.memory_space<smem>>
    %401 = vector.broadcast %400 : f32 to vector<8x128xf32>
    %402 = arith.addf %399, %401 : vector<8x128xf32>
    %cst_17 = arith.constant 0.00999999977 : f32
    %403 = vector.broadcast %cst_17 : f32 to vector<8x128xf32>
    %404 = arith.mulf %403, %402 : vector<8x128xf32>
    %405 = arith.maximumf %402, %404 : vector<8x128xf32>
    %c90 = arith.constant 90 : index
    %406 = memref.load %arg1[%c90] : memref<572xf32, #tpu.memory_space<smem>>
    %407 = vector.broadcast %406 : f32 to vector<8x128xf32>
    %408 = arith.mulf %9, %407 : vector<8x128xf32>
    %c91 = arith.constant 91 : index
    %409 = memref.load %arg1[%c91] : memref<572xf32, #tpu.memory_space<smem>>
    %410 = vector.broadcast %409 : f32 to vector<8x128xf32>
    %411 = arith.mulf %18, %410 : vector<8x128xf32>
    %412 = arith.addf %408, %411 : vector<8x128xf32>
    %c92 = arith.constant 92 : index
    %413 = memref.load %arg1[%c92] : memref<572xf32, #tpu.memory_space<smem>>
    %414 = vector.broadcast %413 : f32 to vector<8x128xf32>
    %415 = arith.mulf %27, %414 : vector<8x128xf32>
    %416 = arith.addf %412, %415 : vector<8x128xf32>
    %c93 = arith.constant 93 : index
    %417 = memref.load %arg1[%c93] : memref<572xf32, #tpu.memory_space<smem>>
    %418 = vector.broadcast %417 : f32 to vector<8x128xf32>
    %419 = arith.mulf %36, %418 : vector<8x128xf32>
    %420 = arith.addf %416, %419 : vector<8x128xf32>
    %c94 = arith.constant 94 : index
    %421 = memref.load %arg1[%c94] : memref<572xf32, #tpu.memory_space<smem>>
    %422 = vector.broadcast %421 : f32 to vector<8x128xf32>
    %423 = arith.mulf %45, %422 : vector<8x128xf32>
    %424 = arith.addf %420, %423 : vector<8x128xf32>
    %c95 = arith.constant 95 : index
    %425 = memref.load %arg1[%c95] : memref<572xf32, #tpu.memory_space<smem>>
    %426 = vector.broadcast %425 : f32 to vector<8x128xf32>
    %427 = arith.mulf %54, %426 : vector<8x128xf32>
    %428 = arith.addf %424, %427 : vector<8x128xf32>
    %c96 = arith.constant 96 : index
    %429 = memref.load %arg1[%c96] : memref<572xf32, #tpu.memory_space<smem>>
    %430 = vector.broadcast %429 : f32 to vector<8x128xf32>
    %431 = arith.mulf %63, %430 : vector<8x128xf32>
    %432 = arith.addf %428, %431 : vector<8x128xf32>
    %c97 = arith.constant 97 : index
    %433 = memref.load %arg1[%c97] : memref<572xf32, #tpu.memory_space<smem>>
    %434 = vector.broadcast %433 : f32 to vector<8x128xf32>
    %435 = arith.mulf %72, %434 : vector<8x128xf32>
    %436 = arith.addf %432, %435 : vector<8x128xf32>
    %c98 = arith.constant 98 : index
    %437 = memref.load %arg1[%c98] : memref<572xf32, #tpu.memory_space<smem>>
    %438 = vector.broadcast %437 : f32 to vector<8x128xf32>
    %439 = arith.mulf %81, %438 : vector<8x128xf32>
    %440 = arith.addf %436, %439 : vector<8x128xf32>
    %c99 = arith.constant 99 : index
    %441 = memref.load %arg1[%c99] : memref<572xf32, #tpu.memory_space<smem>>
    %442 = vector.broadcast %441 : f32 to vector<8x128xf32>
    %443 = arith.mulf %90, %442 : vector<8x128xf32>
    %444 = arith.addf %440, %443 : vector<8x128xf32>
    %c207 = arith.constant 207 : index
    %445 = memref.load %arg1[%c207] : memref<572xf32, #tpu.memory_space<smem>>
    %446 = vector.broadcast %445 : f32 to vector<8x128xf32>
    %447 = arith.addf %444, %446 : vector<8x128xf32>
    %cst_18 = arith.constant 0.00999999977 : f32
    %448 = vector.broadcast %cst_18 : f32 to vector<8x128xf32>
    %449 = arith.mulf %448, %447 : vector<8x128xf32>
    %450 = arith.maximumf %447, %449 : vector<8x128xf32>
    %c100 = arith.constant 100 : index
    %451 = memref.load %arg1[%c100] : memref<572xf32, #tpu.memory_space<smem>>
    %452 = vector.broadcast %451 : f32 to vector<8x128xf32>
    %453 = arith.mulf %9, %452 : vector<8x128xf32>
    %c101 = arith.constant 101 : index
    %454 = memref.load %arg1[%c101] : memref<572xf32, #tpu.memory_space<smem>>
    %455 = vector.broadcast %454 : f32 to vector<8x128xf32>
    %456 = arith.mulf %18, %455 : vector<8x128xf32>
    %457 = arith.addf %453, %456 : vector<8x128xf32>
    %c102 = arith.constant 102 : index
    %458 = memref.load %arg1[%c102] : memref<572xf32, #tpu.memory_space<smem>>
    %459 = vector.broadcast %458 : f32 to vector<8x128xf32>
    %460 = arith.mulf %27, %459 : vector<8x128xf32>
    %461 = arith.addf %457, %460 : vector<8x128xf32>
    %c103 = arith.constant 103 : index
    %462 = memref.load %arg1[%c103] : memref<572xf32, #tpu.memory_space<smem>>
    %463 = vector.broadcast %462 : f32 to vector<8x128xf32>
    %464 = arith.mulf %36, %463 : vector<8x128xf32>
    %465 = arith.addf %461, %464 : vector<8x128xf32>
    %c104 = arith.constant 104 : index
    %466 = memref.load %arg1[%c104] : memref<572xf32, #tpu.memory_space<smem>>
    %467 = vector.broadcast %466 : f32 to vector<8x128xf32>
    %468 = arith.mulf %45, %467 : vector<8x128xf32>
    %469 = arith.addf %465, %468 : vector<8x128xf32>
    %c105 = arith.constant 105 : index
    %470 = memref.load %arg1[%c105] : memref<572xf32, #tpu.memory_space<smem>>
    %471 = vector.broadcast %470 : f32 to vector<8x128xf32>
    %472 = arith.mulf %54, %471 : vector<8x128xf32>
    %473 = arith.addf %469, %472 : vector<8x128xf32>
    %c106 = arith.constant 106 : index
    %474 = memref.load %arg1[%c106] : memref<572xf32, #tpu.memory_space<smem>>
    %475 = vector.broadcast %474 : f32 to vector<8x128xf32>
    %476 = arith.mulf %63, %475 : vector<8x128xf32>
    %477 = arith.addf %473, %476 : vector<8x128xf32>
    %c107 = arith.constant 107 : index
    %478 = memref.load %arg1[%c107] : memref<572xf32, #tpu.memory_space<smem>>
    %479 = vector.broadcast %478 : f32 to vector<8x128xf32>
    %480 = arith.mulf %72, %479 : vector<8x128xf32>
    %481 = arith.addf %477, %480 : vector<8x128xf32>
    %c108 = arith.constant 108 : index
    %482 = memref.load %arg1[%c108] : memref<572xf32, #tpu.memory_space<smem>>
    %483 = vector.broadcast %482 : f32 to vector<8x128xf32>
    %484 = arith.mulf %81, %483 : vector<8x128xf32>
    %485 = arith.addf %481, %484 : vector<8x128xf32>
    %c109 = arith.constant 109 : index
    %486 = memref.load %arg1[%c109] : memref<572xf32, #tpu.memory_space<smem>>
    %487 = vector.broadcast %486 : f32 to vector<8x128xf32>
    %488 = arith.mulf %90, %487 : vector<8x128xf32>
    %489 = arith.addf %485, %488 : vector<8x128xf32>
    %c208 = arith.constant 208 : index
    %490 = memref.load %arg1[%c208] : memref<572xf32, #tpu.memory_space<smem>>
    %491 = vector.broadcast %490 : f32 to vector<8x128xf32>
    %492 = arith.addf %489, %491 : vector<8x128xf32>
    %cst_19 = arith.constant 0.00999999977 : f32
    %493 = vector.broadcast %cst_19 : f32 to vector<8x128xf32>
    %494 = arith.mulf %493, %492 : vector<8x128xf32>
    %495 = arith.maximumf %492, %494 : vector<8x128xf32>
    %c110 = arith.constant 110 : index
    %496 = memref.load %arg1[%c110] : memref<572xf32, #tpu.memory_space<smem>>
    %497 = vector.broadcast %496 : f32 to vector<8x128xf32>
    %498 = arith.mulf %9, %497 : vector<8x128xf32>
    %c111 = arith.constant 111 : index
    %499 = memref.load %arg1[%c111] : memref<572xf32, #tpu.memory_space<smem>>
    %500 = vector.broadcast %499 : f32 to vector<8x128xf32>
    %501 = arith.mulf %18, %500 : vector<8x128xf32>
    %502 = arith.addf %498, %501 : vector<8x128xf32>
    %c112 = arith.constant 112 : index
    %503 = memref.load %arg1[%c112] : memref<572xf32, #tpu.memory_space<smem>>
    %504 = vector.broadcast %503 : f32 to vector<8x128xf32>
    %505 = arith.mulf %27, %504 : vector<8x128xf32>
    %506 = arith.addf %502, %505 : vector<8x128xf32>
    %c113 = arith.constant 113 : index
    %507 = memref.load %arg1[%c113] : memref<572xf32, #tpu.memory_space<smem>>
    %508 = vector.broadcast %507 : f32 to vector<8x128xf32>
    %509 = arith.mulf %36, %508 : vector<8x128xf32>
    %510 = arith.addf %506, %509 : vector<8x128xf32>
    %c114 = arith.constant 114 : index
    %511 = memref.load %arg1[%c114] : memref<572xf32, #tpu.memory_space<smem>>
    %512 = vector.broadcast %511 : f32 to vector<8x128xf32>
    %513 = arith.mulf %45, %512 : vector<8x128xf32>
    %514 = arith.addf %510, %513 : vector<8x128xf32>
    %c115 = arith.constant 115 : index
    %515 = memref.load %arg1[%c115] : memref<572xf32, #tpu.memory_space<smem>>
    %516 = vector.broadcast %515 : f32 to vector<8x128xf32>
    %517 = arith.mulf %54, %516 : vector<8x128xf32>
    %518 = arith.addf %514, %517 : vector<8x128xf32>
    %c116 = arith.constant 116 : index
    %519 = memref.load %arg1[%c116] : memref<572xf32, #tpu.memory_space<smem>>
    %520 = vector.broadcast %519 : f32 to vector<8x128xf32>
    %521 = arith.mulf %63, %520 : vector<8x128xf32>
    %522 = arith.addf %518, %521 : vector<8x128xf32>
    %c117 = arith.constant 117 : index
    %523 = memref.load %arg1[%c117] : memref<572xf32, #tpu.memory_space<smem>>
    %524 = vector.broadcast %523 : f32 to vector<8x128xf32>
    %525 = arith.mulf %72, %524 : vector<8x128xf32>
    %526 = arith.addf %522, %525 : vector<8x128xf32>
    %c118 = arith.constant 118 : index
    %527 = memref.load %arg1[%c118] : memref<572xf32, #tpu.memory_space<smem>>
    %528 = vector.broadcast %527 : f32 to vector<8x128xf32>
    %529 = arith.mulf %81, %528 : vector<8x128xf32>
    %530 = arith.addf %526, %529 : vector<8x128xf32>
    %c119 = arith.constant 119 : index
    %531 = memref.load %arg1[%c119] : memref<572xf32, #tpu.memory_space<smem>>
    %532 = vector.broadcast %531 : f32 to vector<8x128xf32>
    %533 = arith.mulf %90, %532 : vector<8x128xf32>
    %534 = arith.addf %530, %533 : vector<8x128xf32>
    %c209 = arith.constant 209 : index
    %535 = memref.load %arg1[%c209] : memref<572xf32, #tpu.memory_space<smem>>
    %536 = vector.broadcast %535 : f32 to vector<8x128xf32>
    %537 = arith.addf %534, %536 : vector<8x128xf32>
    %cst_20 = arith.constant 0.00999999977 : f32
    %538 = vector.broadcast %cst_20 : f32 to vector<8x128xf32>
    %539 = arith.mulf %538, %537 : vector<8x128xf32>
    %540 = arith.maximumf %537, %539 : vector<8x128xf32>
    %c120 = arith.constant 120 : index
    %541 = memref.load %arg1[%c120] : memref<572xf32, #tpu.memory_space<smem>>
    %542 = vector.broadcast %541 : f32 to vector<8x128xf32>
    %543 = arith.mulf %9, %542 : vector<8x128xf32>
    %c121 = arith.constant 121 : index
    %544 = memref.load %arg1[%c121] : memref<572xf32, #tpu.memory_space<smem>>
    %545 = vector.broadcast %544 : f32 to vector<8x128xf32>
    %546 = arith.mulf %18, %545 : vector<8x128xf32>
    %547 = arith.addf %543, %546 : vector<8x128xf32>
    %c122 = arith.constant 122 : index
    %548 = memref.load %arg1[%c122] : memref<572xf32, #tpu.memory_space<smem>>
    %549 = vector.broadcast %548 : f32 to vector<8x128xf32>
    %550 = arith.mulf %27, %549 : vector<8x128xf32>
    %551 = arith.addf %547, %550 : vector<8x128xf32>
    %c123 = arith.constant 123 : index
    %552 = memref.load %arg1[%c123] : memref<572xf32, #tpu.memory_space<smem>>
    %553 = vector.broadcast %552 : f32 to vector<8x128xf32>
    %554 = arith.mulf %36, %553 : vector<8x128xf32>
    %555 = arith.addf %551, %554 : vector<8x128xf32>
    %c124 = arith.constant 124 : index
    %556 = memref.load %arg1[%c124] : memref<572xf32, #tpu.memory_space<smem>>
    %557 = vector.broadcast %556 : f32 to vector<8x128xf32>
    %558 = arith.mulf %45, %557 : vector<8x128xf32>
    %559 = arith.addf %555, %558 : vector<8x128xf32>
    %c125 = arith.constant 125 : index
    %560 = memref.load %arg1[%c125] : memref<572xf32, #tpu.memory_space<smem>>
    %561 = vector.broadcast %560 : f32 to vector<8x128xf32>
    %562 = arith.mulf %54, %561 : vector<8x128xf32>
    %563 = arith.addf %559, %562 : vector<8x128xf32>
    %c126 = arith.constant 126 : index
    %564 = memref.load %arg1[%c126] : memref<572xf32, #tpu.memory_space<smem>>
    %565 = vector.broadcast %564 : f32 to vector<8x128xf32>
    %566 = arith.mulf %63, %565 : vector<8x128xf32>
    %567 = arith.addf %563, %566 : vector<8x128xf32>
    %c127 = arith.constant 127 : index
    %568 = memref.load %arg1[%c127] : memref<572xf32, #tpu.memory_space<smem>>
    %569 = vector.broadcast %568 : f32 to vector<8x128xf32>
    %570 = arith.mulf %72, %569 : vector<8x128xf32>
    %571 = arith.addf %567, %570 : vector<8x128xf32>
    %c128 = arith.constant 128 : index
    %572 = memref.load %arg1[%c128] : memref<572xf32, #tpu.memory_space<smem>>
    %573 = vector.broadcast %572 : f32 to vector<8x128xf32>
    %574 = arith.mulf %81, %573 : vector<8x128xf32>
    %575 = arith.addf %571, %574 : vector<8x128xf32>
    %c129 = arith.constant 129 : index
    %576 = memref.load %arg1[%c129] : memref<572xf32, #tpu.memory_space<smem>>
    %577 = vector.broadcast %576 : f32 to vector<8x128xf32>
    %578 = arith.mulf %90, %577 : vector<8x128xf32>
    %579 = arith.addf %575, %578 : vector<8x128xf32>
    %c210 = arith.constant 210 : index
    %580 = memref.load %arg1[%c210] : memref<572xf32, #tpu.memory_space<smem>>
    %581 = vector.broadcast %580 : f32 to vector<8x128xf32>
    %582 = arith.addf %579, %581 : vector<8x128xf32>
    %cst_21 = arith.constant 0.00999999977 : f32
    %583 = vector.broadcast %cst_21 : f32 to vector<8x128xf32>
    %584 = arith.mulf %583, %582 : vector<8x128xf32>
    %585 = arith.maximumf %582, %584 : vector<8x128xf32>
    %c130 = arith.constant 130 : index
    %586 = memref.load %arg1[%c130] : memref<572xf32, #tpu.memory_space<smem>>
    %587 = vector.broadcast %586 : f32 to vector<8x128xf32>
    %588 = arith.mulf %9, %587 : vector<8x128xf32>
    %c131 = arith.constant 131 : index
    %589 = memref.load %arg1[%c131] : memref<572xf32, #tpu.memory_space<smem>>
    %590 = vector.broadcast %589 : f32 to vector<8x128xf32>
    %591 = arith.mulf %18, %590 : vector<8x128xf32>
    %592 = arith.addf %588, %591 : vector<8x128xf32>
    %c132 = arith.constant 132 : index
    %593 = memref.load %arg1[%c132] : memref<572xf32, #tpu.memory_space<smem>>
    %594 = vector.broadcast %593 : f32 to vector<8x128xf32>
    %595 = arith.mulf %27, %594 : vector<8x128xf32>
    %596 = arith.addf %592, %595 : vector<8x128xf32>
    %c133 = arith.constant 133 : index
    %597 = memref.load %arg1[%c133] : memref<572xf32, #tpu.memory_space<smem>>
    %598 = vector.broadcast %597 : f32 to vector<8x128xf32>
    %599 = arith.mulf %36, %598 : vector<8x128xf32>
    %600 = arith.addf %596, %599 : vector<8x128xf32>
    %c134 = arith.constant 134 : index
    %601 = memref.load %arg1[%c134] : memref<572xf32, #tpu.memory_space<smem>>
    %602 = vector.broadcast %601 : f32 to vector<8x128xf32>
    %603 = arith.mulf %45, %602 : vector<8x128xf32>
    %604 = arith.addf %600, %603 : vector<8x128xf32>
    %c135 = arith.constant 135 : index
    %605 = memref.load %arg1[%c135] : memref<572xf32, #tpu.memory_space<smem>>
    %606 = vector.broadcast %605 : f32 to vector<8x128xf32>
    %607 = arith.mulf %54, %606 : vector<8x128xf32>
    %608 = arith.addf %604, %607 : vector<8x128xf32>
    %c136 = arith.constant 136 : index
    %609 = memref.load %arg1[%c136] : memref<572xf32, #tpu.memory_space<smem>>
    %610 = vector.broadcast %609 : f32 to vector<8x128xf32>
    %611 = arith.mulf %63, %610 : vector<8x128xf32>
    %612 = arith.addf %608, %611 : vector<8x128xf32>
    %c137 = arith.constant 137 : index
    %613 = memref.load %arg1[%c137] : memref<572xf32, #tpu.memory_space<smem>>
    %614 = vector.broadcast %613 : f32 to vector<8x128xf32>
    %615 = arith.mulf %72, %614 : vector<8x128xf32>
    %616 = arith.addf %612, %615 : vector<8x128xf32>
    %c138 = arith.constant 138 : index
    %617 = memref.load %arg1[%c138] : memref<572xf32, #tpu.memory_space<smem>>
    %618 = vector.broadcast %617 : f32 to vector<8x128xf32>
    %619 = arith.mulf %81, %618 : vector<8x128xf32>
    %620 = arith.addf %616, %619 : vector<8x128xf32>
    %c139 = arith.constant 139 : index
    %621 = memref.load %arg1[%c139] : memref<572xf32, #tpu.memory_space<smem>>
    %622 = vector.broadcast %621 : f32 to vector<8x128xf32>
    %623 = arith.mulf %90, %622 : vector<8x128xf32>
    %624 = arith.addf %620, %623 : vector<8x128xf32>
    %c211 = arith.constant 211 : index
    %625 = memref.load %arg1[%c211] : memref<572xf32, #tpu.memory_space<smem>>
    %626 = vector.broadcast %625 : f32 to vector<8x128xf32>
    %627 = arith.addf %624, %626 : vector<8x128xf32>
    %cst_22 = arith.constant 0.00999999977 : f32
    %628 = vector.broadcast %cst_22 : f32 to vector<8x128xf32>
    %629 = arith.mulf %628, %627 : vector<8x128xf32>
    %630 = arith.maximumf %627, %629 : vector<8x128xf32>
    %c140 = arith.constant 140 : index
    %631 = memref.load %arg1[%c140] : memref<572xf32, #tpu.memory_space<smem>>
    %632 = vector.broadcast %631 : f32 to vector<8x128xf32>
    %633 = arith.mulf %9, %632 : vector<8x128xf32>
    %c141 = arith.constant 141 : index
    %634 = memref.load %arg1[%c141] : memref<572xf32, #tpu.memory_space<smem>>
    %635 = vector.broadcast %634 : f32 to vector<8x128xf32>
    %636 = arith.mulf %18, %635 : vector<8x128xf32>
    %637 = arith.addf %633, %636 : vector<8x128xf32>
    %c142 = arith.constant 142 : index
    %638 = memref.load %arg1[%c142] : memref<572xf32, #tpu.memory_space<smem>>
    %639 = vector.broadcast %638 : f32 to vector<8x128xf32>
    %640 = arith.mulf %27, %639 : vector<8x128xf32>
    %641 = arith.addf %637, %640 : vector<8x128xf32>
    %c143 = arith.constant 143 : index
    %642 = memref.load %arg1[%c143] : memref<572xf32, #tpu.memory_space<smem>>
    %643 = vector.broadcast %642 : f32 to vector<8x128xf32>
    %644 = arith.mulf %36, %643 : vector<8x128xf32>
    %645 = arith.addf %641, %644 : vector<8x128xf32>
    %c144 = arith.constant 144 : index
    %646 = memref.load %arg1[%c144] : memref<572xf32, #tpu.memory_space<smem>>
    %647 = vector.broadcast %646 : f32 to vector<8x128xf32>
    %648 = arith.mulf %45, %647 : vector<8x128xf32>
    %649 = arith.addf %645, %648 : vector<8x128xf32>
    %c145 = arith.constant 145 : index
    %650 = memref.load %arg1[%c145] : memref<572xf32, #tpu.memory_space<smem>>
    %651 = vector.broadcast %650 : f32 to vector<8x128xf32>
    %652 = arith.mulf %54, %651 : vector<8x128xf32>
    %653 = arith.addf %649, %652 : vector<8x128xf32>
    %c146 = arith.constant 146 : index
    %654 = memref.load %arg1[%c146] : memref<572xf32, #tpu.memory_space<smem>>
    %655 = vector.broadcast %654 : f32 to vector<8x128xf32>
    %656 = arith.mulf %63, %655 : vector<8x128xf32>
    %657 = arith.addf %653, %656 : vector<8x128xf32>
    %c147 = arith.constant 147 : index
    %658 = memref.load %arg1[%c147] : memref<572xf32, #tpu.memory_space<smem>>
    %659 = vector.broadcast %658 : f32 to vector<8x128xf32>
    %660 = arith.mulf %72, %659 : vector<8x128xf32>
    %661 = arith.addf %657, %660 : vector<8x128xf32>
    %c148 = arith.constant 148 : index
    %662 = memref.load %arg1[%c148] : memref<572xf32, #tpu.memory_space<smem>>
    %663 = vector.broadcast %662 : f32 to vector<8x128xf32>
    %664 = arith.mulf %81, %663 : vector<8x128xf32>
    %665 = arith.addf %661, %664 : vector<8x128xf32>
    %c149 = arith.constant 149 : index
    %666 = memref.load %arg1[%c149] : memref<572xf32, #tpu.memory_space<smem>>
    %667 = vector.broadcast %666 : f32 to vector<8x128xf32>
    %668 = arith.mulf %90, %667 : vector<8x128xf32>
    %669 = arith.addf %665, %668 : vector<8x128xf32>
    %c212 = arith.constant 212 : index
    %670 = memref.load %arg1[%c212] : memref<572xf32, #tpu.memory_space<smem>>
    %671 = vector.broadcast %670 : f32 to vector<8x128xf32>
    %672 = arith.addf %669, %671 : vector<8x128xf32>
    %cst_23 = arith.constant 0.00999999977 : f32
    %673 = vector.broadcast %cst_23 : f32 to vector<8x128xf32>
    %674 = arith.mulf %673, %672 : vector<8x128xf32>
    %675 = arith.maximumf %672, %674 : vector<8x128xf32>
    %c150 = arith.constant 150 : index
    %676 = memref.load %arg1[%c150] : memref<572xf32, #tpu.memory_space<smem>>
    %677 = vector.broadcast %676 : f32 to vector<8x128xf32>
    %678 = arith.mulf %9, %677 : vector<8x128xf32>
    %c151 = arith.constant 151 : index
    %679 = memref.load %arg1[%c151] : memref<572xf32, #tpu.memory_space<smem>>
    %680 = vector.broadcast %679 : f32 to vector<8x128xf32>
    %681 = arith.mulf %18, %680 : vector<8x128xf32>
    %682 = arith.addf %678, %681 : vector<8x128xf32>
    %c152 = arith.constant 152 : index
    %683 = memref.load %arg1[%c152] : memref<572xf32, #tpu.memory_space<smem>>
    %684 = vector.broadcast %683 : f32 to vector<8x128xf32>
    %685 = arith.mulf %27, %684 : vector<8x128xf32>
    %686 = arith.addf %682, %685 : vector<8x128xf32>
    %c153 = arith.constant 153 : index
    %687 = memref.load %arg1[%c153] : memref<572xf32, #tpu.memory_space<smem>>
    %688 = vector.broadcast %687 : f32 to vector<8x128xf32>
    %689 = arith.mulf %36, %688 : vector<8x128xf32>
    %690 = arith.addf %686, %689 : vector<8x128xf32>
    %c154 = arith.constant 154 : index
    %691 = memref.load %arg1[%c154] : memref<572xf32, #tpu.memory_space<smem>>
    %692 = vector.broadcast %691 : f32 to vector<8x128xf32>
    %693 = arith.mulf %45, %692 : vector<8x128xf32>
    %694 = arith.addf %690, %693 : vector<8x128xf32>
    %c155 = arith.constant 155 : index
    %695 = memref.load %arg1[%c155] : memref<572xf32, #tpu.memory_space<smem>>
    %696 = vector.broadcast %695 : f32 to vector<8x128xf32>
    %697 = arith.mulf %54, %696 : vector<8x128xf32>
    %698 = arith.addf %694, %697 : vector<8x128xf32>
    %c156 = arith.constant 156 : index
    %699 = memref.load %arg1[%c156] : memref<572xf32, #tpu.memory_space<smem>>
    %700 = vector.broadcast %699 : f32 to vector<8x128xf32>
    %701 = arith.mulf %63, %700 : vector<8x128xf32>
    %702 = arith.addf %698, %701 : vector<8x128xf32>
    %c157 = arith.constant 157 : index
    %703 = memref.load %arg1[%c157] : memref<572xf32, #tpu.memory_space<smem>>
    %704 = vector.broadcast %703 : f32 to vector<8x128xf32>
    %705 = arith.mulf %72, %704 : vector<8x128xf32>
    %706 = arith.addf %702, %705 : vector<8x128xf32>
    %c158 = arith.constant 158 : index
    %707 = memref.load %arg1[%c158] : memref<572xf32, #tpu.memory_space<smem>>
    %708 = vector.broadcast %707 : f32 to vector<8x128xf32>
    %709 = arith.mulf %81, %708 : vector<8x128xf32>
    %710 = arith.addf %706, %709 : vector<8x128xf32>
    %c159 = arith.constant 159 : index
    %711 = memref.load %arg1[%c159] : memref<572xf32, #tpu.memory_space<smem>>
    %712 = vector.broadcast %711 : f32 to vector<8x128xf32>
    %713 = arith.mulf %90, %712 : vector<8x128xf32>
    %714 = arith.addf %710, %713 : vector<8x128xf32>
    %c213 = arith.constant 213 : index
    %715 = memref.load %arg1[%c213] : memref<572xf32, #tpu.memory_space<smem>>
    %716 = vector.broadcast %715 : f32 to vector<8x128xf32>
    %717 = arith.addf %714, %716 : vector<8x128xf32>
    %cst_24 = arith.constant 0.00999999977 : f32
    %718 = vector.broadcast %cst_24 : f32 to vector<8x128xf32>
    %719 = arith.mulf %718, %717 : vector<8x128xf32>
    %720 = arith.maximumf %717, %719 : vector<8x128xf32>
    %c160 = arith.constant 160 : index
    %721 = memref.load %arg1[%c160] : memref<572xf32, #tpu.memory_space<smem>>
    %722 = vector.broadcast %721 : f32 to vector<8x128xf32>
    %723 = arith.mulf %9, %722 : vector<8x128xf32>
    %c161 = arith.constant 161 : index
    %724 = memref.load %arg1[%c161] : memref<572xf32, #tpu.memory_space<smem>>
    %725 = vector.broadcast %724 : f32 to vector<8x128xf32>
    %726 = arith.mulf %18, %725 : vector<8x128xf32>
    %727 = arith.addf %723, %726 : vector<8x128xf32>
    %c162 = arith.constant 162 : index
    %728 = memref.load %arg1[%c162] : memref<572xf32, #tpu.memory_space<smem>>
    %729 = vector.broadcast %728 : f32 to vector<8x128xf32>
    %730 = arith.mulf %27, %729 : vector<8x128xf32>
    %731 = arith.addf %727, %730 : vector<8x128xf32>
    %c163 = arith.constant 163 : index
    %732 = memref.load %arg1[%c163] : memref<572xf32, #tpu.memory_space<smem>>
    %733 = vector.broadcast %732 : f32 to vector<8x128xf32>
    %734 = arith.mulf %36, %733 : vector<8x128xf32>
    %735 = arith.addf %731, %734 : vector<8x128xf32>
    %c164 = arith.constant 164 : index
    %736 = memref.load %arg1[%c164] : memref<572xf32, #tpu.memory_space<smem>>
    %737 = vector.broadcast %736 : f32 to vector<8x128xf32>
    %738 = arith.mulf %45, %737 : vector<8x128xf32>
    %739 = arith.addf %735, %738 : vector<8x128xf32>
    %c165 = arith.constant 165 : index
    %740 = memref.load %arg1[%c165] : memref<572xf32, #tpu.memory_space<smem>>
    %741 = vector.broadcast %740 : f32 to vector<8x128xf32>
    %742 = arith.mulf %54, %741 : vector<8x128xf32>
    %743 = arith.addf %739, %742 : vector<8x128xf32>
    %c166 = arith.constant 166 : index
    %744 = memref.load %arg1[%c166] : memref<572xf32, #tpu.memory_space<smem>>
    %745 = vector.broadcast %744 : f32 to vector<8x128xf32>
    %746 = arith.mulf %63, %745 : vector<8x128xf32>
    %747 = arith.addf %743, %746 : vector<8x128xf32>
    %c167 = arith.constant 167 : index
    %748 = memref.load %arg1[%c167] : memref<572xf32, #tpu.memory_space<smem>>
    %749 = vector.broadcast %748 : f32 to vector<8x128xf32>
    %750 = arith.mulf %72, %749 : vector<8x128xf32>
    %751 = arith.addf %747, %750 : vector<8x128xf32>
    %c168 = arith.constant 168 : index
    %752 = memref.load %arg1[%c168] : memref<572xf32, #tpu.memory_space<smem>>
    %753 = vector.broadcast %752 : f32 to vector<8x128xf32>
    %754 = arith.mulf %81, %753 : vector<8x128xf32>
    %755 = arith.addf %751, %754 : vector<8x128xf32>
    %c169 = arith.constant 169 : index
    %756 = memref.load %arg1[%c169] : memref<572xf32, #tpu.memory_space<smem>>
    %757 = vector.broadcast %756 : f32 to vector<8x128xf32>
    %758 = arith.mulf %90, %757 : vector<8x128xf32>
    %759 = arith.addf %755, %758 : vector<8x128xf32>
    %c214 = arith.constant 214 : index
    %760 = memref.load %arg1[%c214] : memref<572xf32, #tpu.memory_space<smem>>
    %761 = vector.broadcast %760 : f32 to vector<8x128xf32>
    %762 = arith.addf %759, %761 : vector<8x128xf32>
    %cst_25 = arith.constant 0.00999999977 : f32
    %763 = vector.broadcast %cst_25 : f32 to vector<8x128xf32>
    %764 = arith.mulf %763, %762 : vector<8x128xf32>
    %765 = arith.maximumf %762, %764 : vector<8x128xf32>
    %c170 = arith.constant 170 : index
    %766 = memref.load %arg1[%c170] : memref<572xf32, #tpu.memory_space<smem>>
    %767 = vector.broadcast %766 : f32 to vector<8x128xf32>
    %768 = arith.mulf %9, %767 : vector<8x128xf32>
    %c171 = arith.constant 171 : index
    %769 = memref.load %arg1[%c171] : memref<572xf32, #tpu.memory_space<smem>>
    %770 = vector.broadcast %769 : f32 to vector<8x128xf32>
    %771 = arith.mulf %18, %770 : vector<8x128xf32>
    %772 = arith.addf %768, %771 : vector<8x128xf32>
    %c172 = arith.constant 172 : index
    %773 = memref.load %arg1[%c172] : memref<572xf32, #tpu.memory_space<smem>>
    %774 = vector.broadcast %773 : f32 to vector<8x128xf32>
    %775 = arith.mulf %27, %774 : vector<8x128xf32>
    %776 = arith.addf %772, %775 : vector<8x128xf32>
    %c173 = arith.constant 173 : index
    %777 = memref.load %arg1[%c173] : memref<572xf32, #tpu.memory_space<smem>>
    %778 = vector.broadcast %777 : f32 to vector<8x128xf32>
    %779 = arith.mulf %36, %778 : vector<8x128xf32>
    %780 = arith.addf %776, %779 : vector<8x128xf32>
    %c174 = arith.constant 174 : index
    %781 = memref.load %arg1[%c174] : memref<572xf32, #tpu.memory_space<smem>>
    %782 = vector.broadcast %781 : f32 to vector<8x128xf32>
    %783 = arith.mulf %45, %782 : vector<8x128xf32>
    %784 = arith.addf %780, %783 : vector<8x128xf32>
    %c175 = arith.constant 175 : index
    %785 = memref.load %arg1[%c175] : memref<572xf32, #tpu.memory_space<smem>>
    %786 = vector.broadcast %785 : f32 to vector<8x128xf32>
    %787 = arith.mulf %54, %786 : vector<8x128xf32>
    %788 = arith.addf %784, %787 : vector<8x128xf32>
    %c176 = arith.constant 176 : index
    %789 = memref.load %arg1[%c176] : memref<572xf32, #tpu.memory_space<smem>>
    %790 = vector.broadcast %789 : f32 to vector<8x128xf32>
    %791 = arith.mulf %63, %790 : vector<8x128xf32>
    %792 = arith.addf %788, %791 : vector<8x128xf32>
    %c177 = arith.constant 177 : index
    %793 = memref.load %arg1[%c177] : memref<572xf32, #tpu.memory_space<smem>>
    %794 = vector.broadcast %793 : f32 to vector<8x128xf32>
    %795 = arith.mulf %72, %794 : vector<8x128xf32>
    %796 = arith.addf %792, %795 : vector<8x128xf32>
    %c178 = arith.constant 178 : index
    %797 = memref.load %arg1[%c178] : memref<572xf32, #tpu.memory_space<smem>>
    %798 = vector.broadcast %797 : f32 to vector<8x128xf32>
    %799 = arith.mulf %81, %798 : vector<8x128xf32>
    %800 = arith.addf %796, %799 : vector<8x128xf32>
    %c179 = arith.constant 179 : index
    %801 = memref.load %arg1[%c179] : memref<572xf32, #tpu.memory_space<smem>>
    %802 = vector.broadcast %801 : f32 to vector<8x128xf32>
    %803 = arith.mulf %90, %802 : vector<8x128xf32>
    %804 = arith.addf %800, %803 : vector<8x128xf32>
    %c215 = arith.constant 215 : index
    %805 = memref.load %arg1[%c215] : memref<572xf32, #tpu.memory_space<smem>>
    %806 = vector.broadcast %805 : f32 to vector<8x128xf32>
    %807 = arith.addf %804, %806 : vector<8x128xf32>
    %cst_26 = arith.constant 0.00999999977 : f32
    %808 = vector.broadcast %cst_26 : f32 to vector<8x128xf32>
    %809 = arith.mulf %808, %807 : vector<8x128xf32>
    %810 = arith.maximumf %807, %809 : vector<8x128xf32>
    %c180 = arith.constant 180 : index
    %811 = memref.load %arg1[%c180] : memref<572xf32, #tpu.memory_space<smem>>
    %812 = vector.broadcast %811 : f32 to vector<8x128xf32>
    %813 = arith.mulf %9, %812 : vector<8x128xf32>
    %c181 = arith.constant 181 : index
    %814 = memref.load %arg1[%c181] : memref<572xf32, #tpu.memory_space<smem>>
    %815 = vector.broadcast %814 : f32 to vector<8x128xf32>
    %816 = arith.mulf %18, %815 : vector<8x128xf32>
    %817 = arith.addf %813, %816 : vector<8x128xf32>
    %c182 = arith.constant 182 : index
    %818 = memref.load %arg1[%c182] : memref<572xf32, #tpu.memory_space<smem>>
    %819 = vector.broadcast %818 : f32 to vector<8x128xf32>
    %820 = arith.mulf %27, %819 : vector<8x128xf32>
    %821 = arith.addf %817, %820 : vector<8x128xf32>
    %c183 = arith.constant 183 : index
    %822 = memref.load %arg1[%c183] : memref<572xf32, #tpu.memory_space<smem>>
    %823 = vector.broadcast %822 : f32 to vector<8x128xf32>
    %824 = arith.mulf %36, %823 : vector<8x128xf32>
    %825 = arith.addf %821, %824 : vector<8x128xf32>
    %c184 = arith.constant 184 : index
    %826 = memref.load %arg1[%c184] : memref<572xf32, #tpu.memory_space<smem>>
    %827 = vector.broadcast %826 : f32 to vector<8x128xf32>
    %828 = arith.mulf %45, %827 : vector<8x128xf32>
    %829 = arith.addf %825, %828 : vector<8x128xf32>
    %c185 = arith.constant 185 : index
    %830 = memref.load %arg1[%c185] : memref<572xf32, #tpu.memory_space<smem>>
    %831 = vector.broadcast %830 : f32 to vector<8x128xf32>
    %832 = arith.mulf %54, %831 : vector<8x128xf32>
    %833 = arith.addf %829, %832 : vector<8x128xf32>
    %c186 = arith.constant 186 : index
    %834 = memref.load %arg1[%c186] : memref<572xf32, #tpu.memory_space<smem>>
    %835 = vector.broadcast %834 : f32 to vector<8x128xf32>
    %836 = arith.mulf %63, %835 : vector<8x128xf32>
    %837 = arith.addf %833, %836 : vector<8x128xf32>
    %c187 = arith.constant 187 : index
    %838 = memref.load %arg1[%c187] : memref<572xf32, #tpu.memory_space<smem>>
    %839 = vector.broadcast %838 : f32 to vector<8x128xf32>
    %840 = arith.mulf %72, %839 : vector<8x128xf32>
    %841 = arith.addf %837, %840 : vector<8x128xf32>
    %c188 = arith.constant 188 : index
    %842 = memref.load %arg1[%c188] : memref<572xf32, #tpu.memory_space<smem>>
    %843 = vector.broadcast %842 : f32 to vector<8x128xf32>
    %844 = arith.mulf %81, %843 : vector<8x128xf32>
    %845 = arith.addf %841, %844 : vector<8x128xf32>
    %c189 = arith.constant 189 : index
    %846 = memref.load %arg1[%c189] : memref<572xf32, #tpu.memory_space<smem>>
    %847 = vector.broadcast %846 : f32 to vector<8x128xf32>
    %848 = arith.mulf %90, %847 : vector<8x128xf32>
    %849 = arith.addf %845, %848 : vector<8x128xf32>
    %c216 = arith.constant 216 : index
    %850 = memref.load %arg1[%c216] : memref<572xf32, #tpu.memory_space<smem>>
    %851 = vector.broadcast %850 : f32 to vector<8x128xf32>
    %852 = arith.addf %849, %851 : vector<8x128xf32>
    %cst_27 = arith.constant 0.00999999977 : f32
    %853 = vector.broadcast %cst_27 : f32 to vector<8x128xf32>
    %854 = arith.mulf %853, %852 : vector<8x128xf32>
    %855 = arith.maximumf %852, %854 : vector<8x128xf32>
    %c190 = arith.constant 190 : index
    %856 = memref.load %arg1[%c190] : memref<572xf32, #tpu.memory_space<smem>>
    %857 = vector.broadcast %856 : f32 to vector<8x128xf32>
    %858 = arith.mulf %9, %857 : vector<8x128xf32>
    %c191 = arith.constant 191 : index
    %859 = memref.load %arg1[%c191] : memref<572xf32, #tpu.memory_space<smem>>
    %860 = vector.broadcast %859 : f32 to vector<8x128xf32>
    %861 = arith.mulf %18, %860 : vector<8x128xf32>
    %862 = arith.addf %858, %861 : vector<8x128xf32>
    %c192 = arith.constant 192 : index
    %863 = memref.load %arg1[%c192] : memref<572xf32, #tpu.memory_space<smem>>
    %864 = vector.broadcast %863 : f32 to vector<8x128xf32>
    %865 = arith.mulf %27, %864 : vector<8x128xf32>
    %866 = arith.addf %862, %865 : vector<8x128xf32>
    %c193 = arith.constant 193 : index
    %867 = memref.load %arg1[%c193] : memref<572xf32, #tpu.memory_space<smem>>
    %868 = vector.broadcast %867 : f32 to vector<8x128xf32>
    %869 = arith.mulf %36, %868 : vector<8x128xf32>
    %870 = arith.addf %866, %869 : vector<8x128xf32>
    %c194 = arith.constant 194 : index
    %871 = memref.load %arg1[%c194] : memref<572xf32, #tpu.memory_space<smem>>
    %872 = vector.broadcast %871 : f32 to vector<8x128xf32>
    %873 = arith.mulf %45, %872 : vector<8x128xf32>
    %874 = arith.addf %870, %873 : vector<8x128xf32>
    %c195 = arith.constant 195 : index
    %875 = memref.load %arg1[%c195] : memref<572xf32, #tpu.memory_space<smem>>
    %876 = vector.broadcast %875 : f32 to vector<8x128xf32>
    %877 = arith.mulf %54, %876 : vector<8x128xf32>
    %878 = arith.addf %874, %877 : vector<8x128xf32>
    %c196 = arith.constant 196 : index
    %879 = memref.load %arg1[%c196] : memref<572xf32, #tpu.memory_space<smem>>
    %880 = vector.broadcast %879 : f32 to vector<8x128xf32>
    %881 = arith.mulf %63, %880 : vector<8x128xf32>
    %882 = arith.addf %878, %881 : vector<8x128xf32>
    %c197 = arith.constant 197 : index
    %883 = memref.load %arg1[%c197] : memref<572xf32, #tpu.memory_space<smem>>
    %884 = vector.broadcast %883 : f32 to vector<8x128xf32>
    %885 = arith.mulf %72, %884 : vector<8x128xf32>
    %886 = arith.addf %882, %885 : vector<8x128xf32>
    %c198 = arith.constant 198 : index
    %887 = memref.load %arg1[%c198] : memref<572xf32, #tpu.memory_space<smem>>
    %888 = vector.broadcast %887 : f32 to vector<8x128xf32>
    %889 = arith.mulf %81, %888 : vector<8x128xf32>
    %890 = arith.addf %886, %889 : vector<8x128xf32>
    %c199 = arith.constant 199 : index
    %891 = memref.load %arg1[%c199] : memref<572xf32, #tpu.memory_space<smem>>
    %892 = vector.broadcast %891 : f32 to vector<8x128xf32>
    %893 = arith.mulf %90, %892 : vector<8x128xf32>
    %894 = arith.addf %890, %893 : vector<8x128xf32>
    %c217 = arith.constant 217 : index
    %895 = memref.load %arg1[%c217] : memref<572xf32, #tpu.memory_space<smem>>
    %896 = vector.broadcast %895 : f32 to vector<8x128xf32>
    %897 = arith.addf %894, %896 : vector<8x128xf32>
    %cst_28 = arith.constant 0.00999999977 : f32
    %898 = vector.broadcast %cst_28 : f32 to vector<8x128xf32>
    %899 = arith.mulf %898, %897 : vector<8x128xf32>
    %900 = arith.maximumf %897, %899 : vector<8x128xf32>
    %c218 = arith.constant 218 : index
    %901 = memref.load %arg1[%c218] : memref<572xf32, #tpu.memory_space<smem>>
    %902 = vector.broadcast %901 : f32 to vector<8x128xf32>
    %903 = arith.mulf %135, %902 : vector<8x128xf32>
    %c219 = arith.constant 219 : index
    %904 = memref.load %arg1[%c219] : memref<572xf32, #tpu.memory_space<smem>>
    %905 = vector.broadcast %904 : f32 to vector<8x128xf32>
    %906 = arith.mulf %180, %905 : vector<8x128xf32>
    %907 = arith.addf %903, %906 : vector<8x128xf32>
    %c220 = arith.constant 220 : index
    %908 = memref.load %arg1[%c220] : memref<572xf32, #tpu.memory_space<smem>>
    %909 = vector.broadcast %908 : f32 to vector<8x128xf32>
    %910 = arith.mulf %225, %909 : vector<8x128xf32>
    %911 = arith.addf %907, %910 : vector<8x128xf32>
    %c221 = arith.constant 221 : index
    %912 = memref.load %arg1[%c221] : memref<572xf32, #tpu.memory_space<smem>>
    %913 = vector.broadcast %912 : f32 to vector<8x128xf32>
    %914 = arith.mulf %270, %913 : vector<8x128xf32>
    %915 = arith.addf %911, %914 : vector<8x128xf32>
    %c222 = arith.constant 222 : index
    %916 = memref.load %arg1[%c222] : memref<572xf32, #tpu.memory_space<smem>>
    %917 = vector.broadcast %916 : f32 to vector<8x128xf32>
    %918 = arith.mulf %315, %917 : vector<8x128xf32>
    %919 = arith.addf %915, %918 : vector<8x128xf32>
    %c223 = arith.constant 223 : index
    %920 = memref.load %arg1[%c223] : memref<572xf32, #tpu.memory_space<smem>>
    %921 = vector.broadcast %920 : f32 to vector<8x128xf32>
    %922 = arith.mulf %360, %921 : vector<8x128xf32>
    %923 = arith.addf %919, %922 : vector<8x128xf32>
    %c224 = arith.constant 224 : index
    %924 = memref.load %arg1[%c224] : memref<572xf32, #tpu.memory_space<smem>>
    %925 = vector.broadcast %924 : f32 to vector<8x128xf32>
    %926 = arith.mulf %405, %925 : vector<8x128xf32>
    %927 = arith.addf %923, %926 : vector<8x128xf32>
    %c225 = arith.constant 225 : index
    %928 = memref.load %arg1[%c225] : memref<572xf32, #tpu.memory_space<smem>>
    %929 = vector.broadcast %928 : f32 to vector<8x128xf32>
    %930 = arith.mulf %450, %929 : vector<8x128xf32>
    %931 = arith.addf %927, %930 : vector<8x128xf32>
    %c226 = arith.constant 226 : index
    %932 = memref.load %arg1[%c226] : memref<572xf32, #tpu.memory_space<smem>>
    %933 = vector.broadcast %932 : f32 to vector<8x128xf32>
    %934 = arith.mulf %495, %933 : vector<8x128xf32>
    %935 = arith.addf %931, %934 : vector<8x128xf32>
    %c227 = arith.constant 227 : index
    %936 = memref.load %arg1[%c227] : memref<572xf32, #tpu.memory_space<smem>>
    %937 = vector.broadcast %936 : f32 to vector<8x128xf32>
    %938 = arith.mulf %540, %937 : vector<8x128xf32>
    %939 = arith.addf %935, %938 : vector<8x128xf32>
    %c228 = arith.constant 228 : index
    %940 = memref.load %arg1[%c228] : memref<572xf32, #tpu.memory_space<smem>>
    %941 = vector.broadcast %940 : f32 to vector<8x128xf32>
    %942 = arith.mulf %585, %941 : vector<8x128xf32>
    %943 = arith.addf %939, %942 : vector<8x128xf32>
    %c229 = arith.constant 229 : index
    %944 = memref.load %arg1[%c229] : memref<572xf32, #tpu.memory_space<smem>>
    %945 = vector.broadcast %944 : f32 to vector<8x128xf32>
    %946 = arith.mulf %630, %945 : vector<8x128xf32>
    %947 = arith.addf %943, %946 : vector<8x128xf32>
    %c230 = arith.constant 230 : index
    %948 = memref.load %arg1[%c230] : memref<572xf32, #tpu.memory_space<smem>>
    %949 = vector.broadcast %948 : f32 to vector<8x128xf32>
    %950 = arith.mulf %675, %949 : vector<8x128xf32>
    %951 = arith.addf %947, %950 : vector<8x128xf32>
    %c231 = arith.constant 231 : index
    %952 = memref.load %arg1[%c231] : memref<572xf32, #tpu.memory_space<smem>>
    %953 = vector.broadcast %952 : f32 to vector<8x128xf32>
    %954 = arith.mulf %720, %953 : vector<8x128xf32>
    %955 = arith.addf %951, %954 : vector<8x128xf32>
    %c232 = arith.constant 232 : index
    %956 = memref.load %arg1[%c232] : memref<572xf32, #tpu.memory_space<smem>>
    %957 = vector.broadcast %956 : f32 to vector<8x128xf32>
    %958 = arith.mulf %765, %957 : vector<8x128xf32>
    %959 = arith.addf %955, %958 : vector<8x128xf32>
    %c233 = arith.constant 233 : index
    %960 = memref.load %arg1[%c233] : memref<572xf32, #tpu.memory_space<smem>>
    %961 = vector.broadcast %960 : f32 to vector<8x128xf32>
    %962 = arith.mulf %810, %961 : vector<8x128xf32>
    %963 = arith.addf %959, %962 : vector<8x128xf32>
    %c234 = arith.constant 234 : index
    %964 = memref.load %arg1[%c234] : memref<572xf32, #tpu.memory_space<smem>>
    %965 = vector.broadcast %964 : f32 to vector<8x128xf32>
    %966 = arith.mulf %855, %965 : vector<8x128xf32>
    %967 = arith.addf %963, %966 : vector<8x128xf32>
    %c235 = arith.constant 235 : index
    %968 = memref.load %arg1[%c235] : memref<572xf32, #tpu.memory_space<smem>>
    %969 = vector.broadcast %968 : f32 to vector<8x128xf32>
    %970 = arith.mulf %900, %969 : vector<8x128xf32>
    %971 = arith.addf %967, %970 : vector<8x128xf32>
    %c488 = arith.constant 488 : index
    %972 = memref.load %arg1[%c488] : memref<572xf32, #tpu.memory_space<smem>>
    %973 = vector.broadcast %972 : f32 to vector<8x128xf32>
    %974 = arith.addf %971, %973 : vector<8x128xf32>
    %cst_29 = arith.constant 0.00999999977 : f32
    %975 = vector.broadcast %cst_29 : f32 to vector<8x128xf32>
    %976 = arith.mulf %975, %974 : vector<8x128xf32>
    %977 = arith.maximumf %974, %976 : vector<8x128xf32>
    %c236 = arith.constant 236 : index
    %978 = memref.load %arg1[%c236] : memref<572xf32, #tpu.memory_space<smem>>
    %979 = vector.broadcast %978 : f32 to vector<8x128xf32>
    %980 = arith.mulf %135, %979 : vector<8x128xf32>
    %c237 = arith.constant 237 : index
    %981 = memref.load %arg1[%c237] : memref<572xf32, #tpu.memory_space<smem>>
    %982 = vector.broadcast %981 : f32 to vector<8x128xf32>
    %983 = arith.mulf %180, %982 : vector<8x128xf32>
    %984 = arith.addf %980, %983 : vector<8x128xf32>
    %c238 = arith.constant 238 : index
    %985 = memref.load %arg1[%c238] : memref<572xf32, #tpu.memory_space<smem>>
    %986 = vector.broadcast %985 : f32 to vector<8x128xf32>
    %987 = arith.mulf %225, %986 : vector<8x128xf32>
    %988 = arith.addf %984, %987 : vector<8x128xf32>
    %c239 = arith.constant 239 : index
    %989 = memref.load %arg1[%c239] : memref<572xf32, #tpu.memory_space<smem>>
    %990 = vector.broadcast %989 : f32 to vector<8x128xf32>
    %991 = arith.mulf %270, %990 : vector<8x128xf32>
    %992 = arith.addf %988, %991 : vector<8x128xf32>
    %c240 = arith.constant 240 : index
    %993 = memref.load %arg1[%c240] : memref<572xf32, #tpu.memory_space<smem>>
    %994 = vector.broadcast %993 : f32 to vector<8x128xf32>
    %995 = arith.mulf %315, %994 : vector<8x128xf32>
    %996 = arith.addf %992, %995 : vector<8x128xf32>
    %c241 = arith.constant 241 : index
    %997 = memref.load %arg1[%c241] : memref<572xf32, #tpu.memory_space<smem>>
    %998 = vector.broadcast %997 : f32 to vector<8x128xf32>
    %999 = arith.mulf %360, %998 : vector<8x128xf32>
    %1000 = arith.addf %996, %999 : vector<8x128xf32>
    %c242 = arith.constant 242 : index
    %1001 = memref.load %arg1[%c242] : memref<572xf32, #tpu.memory_space<smem>>
    %1002 = vector.broadcast %1001 : f32 to vector<8x128xf32>
    %1003 = arith.mulf %405, %1002 : vector<8x128xf32>
    %1004 = arith.addf %1000, %1003 : vector<8x128xf32>
    %c243 = arith.constant 243 : index
    %1005 = memref.load %arg1[%c243] : memref<572xf32, #tpu.memory_space<smem>>
    %1006 = vector.broadcast %1005 : f32 to vector<8x128xf32>
    %1007 = arith.mulf %450, %1006 : vector<8x128xf32>
    %1008 = arith.addf %1004, %1007 : vector<8x128xf32>
    %c244 = arith.constant 244 : index
    %1009 = memref.load %arg1[%c244] : memref<572xf32, #tpu.memory_space<smem>>
    %1010 = vector.broadcast %1009 : f32 to vector<8x128xf32>
    %1011 = arith.mulf %495, %1010 : vector<8x128xf32>
    %1012 = arith.addf %1008, %1011 : vector<8x128xf32>
    %c245 = arith.constant 245 : index
    %1013 = memref.load %arg1[%c245] : memref<572xf32, #tpu.memory_space<smem>>
    %1014 = vector.broadcast %1013 : f32 to vector<8x128xf32>
    %1015 = arith.mulf %540, %1014 : vector<8x128xf32>
    %1016 = arith.addf %1012, %1015 : vector<8x128xf32>
    %c246 = arith.constant 246 : index
    %1017 = memref.load %arg1[%c246] : memref<572xf32, #tpu.memory_space<smem>>
    %1018 = vector.broadcast %1017 : f32 to vector<8x128xf32>
    %1019 = arith.mulf %585, %1018 : vector<8x128xf32>
    %1020 = arith.addf %1016, %1019 : vector<8x128xf32>
    %c247 = arith.constant 247 : index
    %1021 = memref.load %arg1[%c247] : memref<572xf32, #tpu.memory_space<smem>>
    %1022 = vector.broadcast %1021 : f32 to vector<8x128xf32>
    %1023 = arith.mulf %630, %1022 : vector<8x128xf32>
    %1024 = arith.addf %1020, %1023 : vector<8x128xf32>
    %c248 = arith.constant 248 : index
    %1025 = memref.load %arg1[%c248] : memref<572xf32, #tpu.memory_space<smem>>
    %1026 = vector.broadcast %1025 : f32 to vector<8x128xf32>
    %1027 = arith.mulf %675, %1026 : vector<8x128xf32>
    %1028 = arith.addf %1024, %1027 : vector<8x128xf32>
    %c249 = arith.constant 249 : index
    %1029 = memref.load %arg1[%c249] : memref<572xf32, #tpu.memory_space<smem>>
    %1030 = vector.broadcast %1029 : f32 to vector<8x128xf32>
    %1031 = arith.mulf %720, %1030 : vector<8x128xf32>
    %1032 = arith.addf %1028, %1031 : vector<8x128xf32>
    %c250 = arith.constant 250 : index
    %1033 = memref.load %arg1[%c250] : memref<572xf32, #tpu.memory_space<smem>>
    %1034 = vector.broadcast %1033 : f32 to vector<8x128xf32>
    %1035 = arith.mulf %765, %1034 : vector<8x128xf32>
    %1036 = arith.addf %1032, %1035 : vector<8x128xf32>
    %c251 = arith.constant 251 : index
    %1037 = memref.load %arg1[%c251] : memref<572xf32, #tpu.memory_space<smem>>
    %1038 = vector.broadcast %1037 : f32 to vector<8x128xf32>
    %1039 = arith.mulf %810, %1038 : vector<8x128xf32>
    %1040 = arith.addf %1036, %1039 : vector<8x128xf32>
    %c252 = arith.constant 252 : index
    %1041 = memref.load %arg1[%c252] : memref<572xf32, #tpu.memory_space<smem>>
    %1042 = vector.broadcast %1041 : f32 to vector<8x128xf32>
    %1043 = arith.mulf %855, %1042 : vector<8x128xf32>
    %1044 = arith.addf %1040, %1043 : vector<8x128xf32>
    %c253 = arith.constant 253 : index
    %1045 = memref.load %arg1[%c253] : memref<572xf32, #tpu.memory_space<smem>>
    %1046 = vector.broadcast %1045 : f32 to vector<8x128xf32>
    %1047 = arith.mulf %900, %1046 : vector<8x128xf32>
    %1048 = arith.addf %1044, %1047 : vector<8x128xf32>
    %c489 = arith.constant 489 : index
    %1049 = memref.load %arg1[%c489] : memref<572xf32, #tpu.memory_space<smem>>
    %1050 = vector.broadcast %1049 : f32 to vector<8x128xf32>
    %1051 = arith.addf %1048, %1050 : vector<8x128xf32>
    %cst_30 = arith.constant 0.00999999977 : f32
    %1052 = vector.broadcast %cst_30 : f32 to vector<8x128xf32>
    %1053 = arith.mulf %1052, %1051 : vector<8x128xf32>
    %1054 = arith.maximumf %1051, %1053 : vector<8x128xf32>
    %c254 = arith.constant 254 : index
    %1055 = memref.load %arg1[%c254] : memref<572xf32, #tpu.memory_space<smem>>
    %1056 = vector.broadcast %1055 : f32 to vector<8x128xf32>
    %1057 = arith.mulf %135, %1056 : vector<8x128xf32>
    %c255 = arith.constant 255 : index
    %1058 = memref.load %arg1[%c255] : memref<572xf32, #tpu.memory_space<smem>>
    %1059 = vector.broadcast %1058 : f32 to vector<8x128xf32>
    %1060 = arith.mulf %180, %1059 : vector<8x128xf32>
    %1061 = arith.addf %1057, %1060 : vector<8x128xf32>
    %c256 = arith.constant 256 : index
    %1062 = memref.load %arg1[%c256] : memref<572xf32, #tpu.memory_space<smem>>
    %1063 = vector.broadcast %1062 : f32 to vector<8x128xf32>
    %1064 = arith.mulf %225, %1063 : vector<8x128xf32>
    %1065 = arith.addf %1061, %1064 : vector<8x128xf32>
    %c257 = arith.constant 257 : index
    %1066 = memref.load %arg1[%c257] : memref<572xf32, #tpu.memory_space<smem>>
    %1067 = vector.broadcast %1066 : f32 to vector<8x128xf32>
    %1068 = arith.mulf %270, %1067 : vector<8x128xf32>
    %1069 = arith.addf %1065, %1068 : vector<8x128xf32>
    %c258 = arith.constant 258 : index
    %1070 = memref.load %arg1[%c258] : memref<572xf32, #tpu.memory_space<smem>>
    %1071 = vector.broadcast %1070 : f32 to vector<8x128xf32>
    %1072 = arith.mulf %315, %1071 : vector<8x128xf32>
    %1073 = arith.addf %1069, %1072 : vector<8x128xf32>
    %c259 = arith.constant 259 : index
    %1074 = memref.load %arg1[%c259] : memref<572xf32, #tpu.memory_space<smem>>
    %1075 = vector.broadcast %1074 : f32 to vector<8x128xf32>
    %1076 = arith.mulf %360, %1075 : vector<8x128xf32>
    %1077 = arith.addf %1073, %1076 : vector<8x128xf32>
    %c260 = arith.constant 260 : index
    %1078 = memref.load %arg1[%c260] : memref<572xf32, #tpu.memory_space<smem>>
    %1079 = vector.broadcast %1078 : f32 to vector<8x128xf32>
    %1080 = arith.mulf %405, %1079 : vector<8x128xf32>
    %1081 = arith.addf %1077, %1080 : vector<8x128xf32>
    %c261 = arith.constant 261 : index
    %1082 = memref.load %arg1[%c261] : memref<572xf32, #tpu.memory_space<smem>>
    %1083 = vector.broadcast %1082 : f32 to vector<8x128xf32>
    %1084 = arith.mulf %450, %1083 : vector<8x128xf32>
    %1085 = arith.addf %1081, %1084 : vector<8x128xf32>
    %c262 = arith.constant 262 : index
    %1086 = memref.load %arg1[%c262] : memref<572xf32, #tpu.memory_space<smem>>
    %1087 = vector.broadcast %1086 : f32 to vector<8x128xf32>
    %1088 = arith.mulf %495, %1087 : vector<8x128xf32>
    %1089 = arith.addf %1085, %1088 : vector<8x128xf32>
    %c263 = arith.constant 263 : index
    %1090 = memref.load %arg1[%c263] : memref<572xf32, #tpu.memory_space<smem>>
    %1091 = vector.broadcast %1090 : f32 to vector<8x128xf32>
    %1092 = arith.mulf %540, %1091 : vector<8x128xf32>
    %1093 = arith.addf %1089, %1092 : vector<8x128xf32>
    %c264 = arith.constant 264 : index
    %1094 = memref.load %arg1[%c264] : memref<572xf32, #tpu.memory_space<smem>>
    %1095 = vector.broadcast %1094 : f32 to vector<8x128xf32>
    %1096 = arith.mulf %585, %1095 : vector<8x128xf32>
    %1097 = arith.addf %1093, %1096 : vector<8x128xf32>
    %c265 = arith.constant 265 : index
    %1098 = memref.load %arg1[%c265] : memref<572xf32, #tpu.memory_space<smem>>
    %1099 = vector.broadcast %1098 : f32 to vector<8x128xf32>
    %1100 = arith.mulf %630, %1099 : vector<8x128xf32>
    %1101 = arith.addf %1097, %1100 : vector<8x128xf32>
    %c266 = arith.constant 266 : index
    %1102 = memref.load %arg1[%c266] : memref<572xf32, #tpu.memory_space<smem>>
    %1103 = vector.broadcast %1102 : f32 to vector<8x128xf32>
    %1104 = arith.mulf %675, %1103 : vector<8x128xf32>
    %1105 = arith.addf %1101, %1104 : vector<8x128xf32>
    %c267 = arith.constant 267 : index
    %1106 = memref.load %arg1[%c267] : memref<572xf32, #tpu.memory_space<smem>>
    %1107 = vector.broadcast %1106 : f32 to vector<8x128xf32>
    %1108 = arith.mulf %720, %1107 : vector<8x128xf32>
    %1109 = arith.addf %1105, %1108 : vector<8x128xf32>
    %c268 = arith.constant 268 : index
    %1110 = memref.load %arg1[%c268] : memref<572xf32, #tpu.memory_space<smem>>
    %1111 = vector.broadcast %1110 : f32 to vector<8x128xf32>
    %1112 = arith.mulf %765, %1111 : vector<8x128xf32>
    %1113 = arith.addf %1109, %1112 : vector<8x128xf32>
    %c269 = arith.constant 269 : index
    %1114 = memref.load %arg1[%c269] : memref<572xf32, #tpu.memory_space<smem>>
    %1115 = vector.broadcast %1114 : f32 to vector<8x128xf32>
    %1116 = arith.mulf %810, %1115 : vector<8x128xf32>
    %1117 = arith.addf %1113, %1116 : vector<8x128xf32>
    %c270 = arith.constant 270 : index
    %1118 = memref.load %arg1[%c270] : memref<572xf32, #tpu.memory_space<smem>>
    %1119 = vector.broadcast %1118 : f32 to vector<8x128xf32>
    %1120 = arith.mulf %855, %1119 : vector<8x128xf32>
    %1121 = arith.addf %1117, %1120 : vector<8x128xf32>
    %c271 = arith.constant 271 : index
    %1122 = memref.load %arg1[%c271] : memref<572xf32, #tpu.memory_space<smem>>
    %1123 = vector.broadcast %1122 : f32 to vector<8x128xf32>
    %1124 = arith.mulf %900, %1123 : vector<8x128xf32>
    %1125 = arith.addf %1121, %1124 : vector<8x128xf32>
    %c490 = arith.constant 490 : index
    %1126 = memref.load %arg1[%c490] : memref<572xf32, #tpu.memory_space<smem>>
    %1127 = vector.broadcast %1126 : f32 to vector<8x128xf32>
    %1128 = arith.addf %1125, %1127 : vector<8x128xf32>
    %cst_31 = arith.constant 0.00999999977 : f32
    %1129 = vector.broadcast %cst_31 : f32 to vector<8x128xf32>
    %1130 = arith.mulf %1129, %1128 : vector<8x128xf32>
    %1131 = arith.maximumf %1128, %1130 : vector<8x128xf32>
    %c272 = arith.constant 272 : index
    %1132 = memref.load %arg1[%c272] : memref<572xf32, #tpu.memory_space<smem>>
    %1133 = vector.broadcast %1132 : f32 to vector<8x128xf32>
    %1134 = arith.mulf %135, %1133 : vector<8x128xf32>
    %c273 = arith.constant 273 : index
    %1135 = memref.load %arg1[%c273] : memref<572xf32, #tpu.memory_space<smem>>
    %1136 = vector.broadcast %1135 : f32 to vector<8x128xf32>
    %1137 = arith.mulf %180, %1136 : vector<8x128xf32>
    %1138 = arith.addf %1134, %1137 : vector<8x128xf32>
    %c274 = arith.constant 274 : index
    %1139 = memref.load %arg1[%c274] : memref<572xf32, #tpu.memory_space<smem>>
    %1140 = vector.broadcast %1139 : f32 to vector<8x128xf32>
    %1141 = arith.mulf %225, %1140 : vector<8x128xf32>
    %1142 = arith.addf %1138, %1141 : vector<8x128xf32>
    %c275 = arith.constant 275 : index
    %1143 = memref.load %arg1[%c275] : memref<572xf32, #tpu.memory_space<smem>>
    %1144 = vector.broadcast %1143 : f32 to vector<8x128xf32>
    %1145 = arith.mulf %270, %1144 : vector<8x128xf32>
    %1146 = arith.addf %1142, %1145 : vector<8x128xf32>
    %c276 = arith.constant 276 : index
    %1147 = memref.load %arg1[%c276] : memref<572xf32, #tpu.memory_space<smem>>
    %1148 = vector.broadcast %1147 : f32 to vector<8x128xf32>
    %1149 = arith.mulf %315, %1148 : vector<8x128xf32>
    %1150 = arith.addf %1146, %1149 : vector<8x128xf32>
    %c277 = arith.constant 277 : index
    %1151 = memref.load %arg1[%c277] : memref<572xf32, #tpu.memory_space<smem>>
    %1152 = vector.broadcast %1151 : f32 to vector<8x128xf32>
    %1153 = arith.mulf %360, %1152 : vector<8x128xf32>
    %1154 = arith.addf %1150, %1153 : vector<8x128xf32>
    %c278 = arith.constant 278 : index
    %1155 = memref.load %arg1[%c278] : memref<572xf32, #tpu.memory_space<smem>>
    %1156 = vector.broadcast %1155 : f32 to vector<8x128xf32>
    %1157 = arith.mulf %405, %1156 : vector<8x128xf32>
    %1158 = arith.addf %1154, %1157 : vector<8x128xf32>
    %c279 = arith.constant 279 : index
    %1159 = memref.load %arg1[%c279] : memref<572xf32, #tpu.memory_space<smem>>
    %1160 = vector.broadcast %1159 : f32 to vector<8x128xf32>
    %1161 = arith.mulf %450, %1160 : vector<8x128xf32>
    %1162 = arith.addf %1158, %1161 : vector<8x128xf32>
    %c280 = arith.constant 280 : index
    %1163 = memref.load %arg1[%c280] : memref<572xf32, #tpu.memory_space<smem>>
    %1164 = vector.broadcast %1163 : f32 to vector<8x128xf32>
    %1165 = arith.mulf %495, %1164 : vector<8x128xf32>
    %1166 = arith.addf %1162, %1165 : vector<8x128xf32>
    %c281 = arith.constant 281 : index
    %1167 = memref.load %arg1[%c281] : memref<572xf32, #tpu.memory_space<smem>>
    %1168 = vector.broadcast %1167 : f32 to vector<8x128xf32>
    %1169 = arith.mulf %540, %1168 : vector<8x128xf32>
    %1170 = arith.addf %1166, %1169 : vector<8x128xf32>
    %c282 = arith.constant 282 : index
    %1171 = memref.load %arg1[%c282] : memref<572xf32, #tpu.memory_space<smem>>
    %1172 = vector.broadcast %1171 : f32 to vector<8x128xf32>
    %1173 = arith.mulf %585, %1172 : vector<8x128xf32>
    %1174 = arith.addf %1170, %1173 : vector<8x128xf32>
    %c283 = arith.constant 283 : index
    %1175 = memref.load %arg1[%c283] : memref<572xf32, #tpu.memory_space<smem>>
    %1176 = vector.broadcast %1175 : f32 to vector<8x128xf32>
    %1177 = arith.mulf %630, %1176 : vector<8x128xf32>
    %1178 = arith.addf %1174, %1177 : vector<8x128xf32>
    %c284 = arith.constant 284 : index
    %1179 = memref.load %arg1[%c284] : memref<572xf32, #tpu.memory_space<smem>>
    %1180 = vector.broadcast %1179 : f32 to vector<8x128xf32>
    %1181 = arith.mulf %675, %1180 : vector<8x128xf32>
    %1182 = arith.addf %1178, %1181 : vector<8x128xf32>
    %c285 = arith.constant 285 : index
    %1183 = memref.load %arg1[%c285] : memref<572xf32, #tpu.memory_space<smem>>
    %1184 = vector.broadcast %1183 : f32 to vector<8x128xf32>
    %1185 = arith.mulf %720, %1184 : vector<8x128xf32>
    %1186 = arith.addf %1182, %1185 : vector<8x128xf32>
    %c286 = arith.constant 286 : index
    %1187 = memref.load %arg1[%c286] : memref<572xf32, #tpu.memory_space<smem>>
    %1188 = vector.broadcast %1187 : f32 to vector<8x128xf32>
    %1189 = arith.mulf %765, %1188 : vector<8x128xf32>
    %1190 = arith.addf %1186, %1189 : vector<8x128xf32>
    %c287 = arith.constant 287 : index
    %1191 = memref.load %arg1[%c287] : memref<572xf32, #tpu.memory_space<smem>>
    %1192 = vector.broadcast %1191 : f32 to vector<8x128xf32>
    %1193 = arith.mulf %810, %1192 : vector<8x128xf32>
    %1194 = arith.addf %1190, %1193 : vector<8x128xf32>
    %c288 = arith.constant 288 : index
    %1195 = memref.load %arg1[%c288] : memref<572xf32, #tpu.memory_space<smem>>
    %1196 = vector.broadcast %1195 : f32 to vector<8x128xf32>
    %1197 = arith.mulf %855, %1196 : vector<8x128xf32>
    %1198 = arith.addf %1194, %1197 : vector<8x128xf32>
    %c289 = arith.constant 289 : index
    %1199 = memref.load %arg1[%c289] : memref<572xf32, #tpu.memory_space<smem>>
    %1200 = vector.broadcast %1199 : f32 to vector<8x128xf32>
    %1201 = arith.mulf %900, %1200 : vector<8x128xf32>
    %1202 = arith.addf %1198, %1201 : vector<8x128xf32>
    %c491 = arith.constant 491 : index
    %1203 = memref.load %arg1[%c491] : memref<572xf32, #tpu.memory_space<smem>>
    %1204 = vector.broadcast %1203 : f32 to vector<8x128xf32>
    %1205 = arith.addf %1202, %1204 : vector<8x128xf32>
    %cst_32 = arith.constant 0.00999999977 : f32
    %1206 = vector.broadcast %cst_32 : f32 to vector<8x128xf32>
    %1207 = arith.mulf %1206, %1205 : vector<8x128xf32>
    %1208 = arith.maximumf %1205, %1207 : vector<8x128xf32>
    %c290 = arith.constant 290 : index
    %1209 = memref.load %arg1[%c290] : memref<572xf32, #tpu.memory_space<smem>>
    %1210 = vector.broadcast %1209 : f32 to vector<8x128xf32>
    %1211 = arith.mulf %135, %1210 : vector<8x128xf32>
    %c291 = arith.constant 291 : index
    %1212 = memref.load %arg1[%c291] : memref<572xf32, #tpu.memory_space<smem>>
    %1213 = vector.broadcast %1212 : f32 to vector<8x128xf32>
    %1214 = arith.mulf %180, %1213 : vector<8x128xf32>
    %1215 = arith.addf %1211, %1214 : vector<8x128xf32>
    %c292 = arith.constant 292 : index
    %1216 = memref.load %arg1[%c292] : memref<572xf32, #tpu.memory_space<smem>>
    %1217 = vector.broadcast %1216 : f32 to vector<8x128xf32>
    %1218 = arith.mulf %225, %1217 : vector<8x128xf32>
    %1219 = arith.addf %1215, %1218 : vector<8x128xf32>
    %c293 = arith.constant 293 : index
    %1220 = memref.load %arg1[%c293] : memref<572xf32, #tpu.memory_space<smem>>
    %1221 = vector.broadcast %1220 : f32 to vector<8x128xf32>
    %1222 = arith.mulf %270, %1221 : vector<8x128xf32>
    %1223 = arith.addf %1219, %1222 : vector<8x128xf32>
    %c294 = arith.constant 294 : index
    %1224 = memref.load %arg1[%c294] : memref<572xf32, #tpu.memory_space<smem>>
    %1225 = vector.broadcast %1224 : f32 to vector<8x128xf32>
    %1226 = arith.mulf %315, %1225 : vector<8x128xf32>
    %1227 = arith.addf %1223, %1226 : vector<8x128xf32>
    %c295 = arith.constant 295 : index
    %1228 = memref.load %arg1[%c295] : memref<572xf32, #tpu.memory_space<smem>>
    %1229 = vector.broadcast %1228 : f32 to vector<8x128xf32>
    %1230 = arith.mulf %360, %1229 : vector<8x128xf32>
    %1231 = arith.addf %1227, %1230 : vector<8x128xf32>
    %c296 = arith.constant 296 : index
    %1232 = memref.load %arg1[%c296] : memref<572xf32, #tpu.memory_space<smem>>
    %1233 = vector.broadcast %1232 : f32 to vector<8x128xf32>
    %1234 = arith.mulf %405, %1233 : vector<8x128xf32>
    %1235 = arith.addf %1231, %1234 : vector<8x128xf32>
    %c297 = arith.constant 297 : index
    %1236 = memref.load %arg1[%c297] : memref<572xf32, #tpu.memory_space<smem>>
    %1237 = vector.broadcast %1236 : f32 to vector<8x128xf32>
    %1238 = arith.mulf %450, %1237 : vector<8x128xf32>
    %1239 = arith.addf %1235, %1238 : vector<8x128xf32>
    %c298 = arith.constant 298 : index
    %1240 = memref.load %arg1[%c298] : memref<572xf32, #tpu.memory_space<smem>>
    %1241 = vector.broadcast %1240 : f32 to vector<8x128xf32>
    %1242 = arith.mulf %495, %1241 : vector<8x128xf32>
    %1243 = arith.addf %1239, %1242 : vector<8x128xf32>
    %c299 = arith.constant 299 : index
    %1244 = memref.load %arg1[%c299] : memref<572xf32, #tpu.memory_space<smem>>
    %1245 = vector.broadcast %1244 : f32 to vector<8x128xf32>
    %1246 = arith.mulf %540, %1245 : vector<8x128xf32>
    %1247 = arith.addf %1243, %1246 : vector<8x128xf32>
    %c300 = arith.constant 300 : index
    %1248 = memref.load %arg1[%c300] : memref<572xf32, #tpu.memory_space<smem>>
    %1249 = vector.broadcast %1248 : f32 to vector<8x128xf32>
    %1250 = arith.mulf %585, %1249 : vector<8x128xf32>
    %1251 = arith.addf %1247, %1250 : vector<8x128xf32>
    %c301 = arith.constant 301 : index
    %1252 = memref.load %arg1[%c301] : memref<572xf32, #tpu.memory_space<smem>>
    %1253 = vector.broadcast %1252 : f32 to vector<8x128xf32>
    %1254 = arith.mulf %630, %1253 : vector<8x128xf32>
    %1255 = arith.addf %1251, %1254 : vector<8x128xf32>
    %c302 = arith.constant 302 : index
    %1256 = memref.load %arg1[%c302] : memref<572xf32, #tpu.memory_space<smem>>
    %1257 = vector.broadcast %1256 : f32 to vector<8x128xf32>
    %1258 = arith.mulf %675, %1257 : vector<8x128xf32>
    %1259 = arith.addf %1255, %1258 : vector<8x128xf32>
    %c303 = arith.constant 303 : index
    %1260 = memref.load %arg1[%c303] : memref<572xf32, #tpu.memory_space<smem>>
    %1261 = vector.broadcast %1260 : f32 to vector<8x128xf32>
    %1262 = arith.mulf %720, %1261 : vector<8x128xf32>
    %1263 = arith.addf %1259, %1262 : vector<8x128xf32>
    %c304 = arith.constant 304 : index
    %1264 = memref.load %arg1[%c304] : memref<572xf32, #tpu.memory_space<smem>>
    %1265 = vector.broadcast %1264 : f32 to vector<8x128xf32>
    %1266 = arith.mulf %765, %1265 : vector<8x128xf32>
    %1267 = arith.addf %1263, %1266 : vector<8x128xf32>
    %c305 = arith.constant 305 : index
    %1268 = memref.load %arg1[%c305] : memref<572xf32, #tpu.memory_space<smem>>
    %1269 = vector.broadcast %1268 : f32 to vector<8x128xf32>
    %1270 = arith.mulf %810, %1269 : vector<8x128xf32>
    %1271 = arith.addf %1267, %1270 : vector<8x128xf32>
    %c306 = arith.constant 306 : index
    %1272 = memref.load %arg1[%c306] : memref<572xf32, #tpu.memory_space<smem>>
    %1273 = vector.broadcast %1272 : f32 to vector<8x128xf32>
    %1274 = arith.mulf %855, %1273 : vector<8x128xf32>
    %1275 = arith.addf %1271, %1274 : vector<8x128xf32>
    %c307 = arith.constant 307 : index
    %1276 = memref.load %arg1[%c307] : memref<572xf32, #tpu.memory_space<smem>>
    %1277 = vector.broadcast %1276 : f32 to vector<8x128xf32>
    %1278 = arith.mulf %900, %1277 : vector<8x128xf32>
    %1279 = arith.addf %1275, %1278 : vector<8x128xf32>
    %c492 = arith.constant 492 : index
    %1280 = memref.load %arg1[%c492] : memref<572xf32, #tpu.memory_space<smem>>
    %1281 = vector.broadcast %1280 : f32 to vector<8x128xf32>
    %1282 = arith.addf %1279, %1281 : vector<8x128xf32>
    %cst_33 = arith.constant 0.00999999977 : f32
    %1283 = vector.broadcast %cst_33 : f32 to vector<8x128xf32>
    %1284 = arith.mulf %1283, %1282 : vector<8x128xf32>
    %1285 = arith.maximumf %1282, %1284 : vector<8x128xf32>
    %c308 = arith.constant 308 : index
    %1286 = memref.load %arg1[%c308] : memref<572xf32, #tpu.memory_space<smem>>
    %1287 = vector.broadcast %1286 : f32 to vector<8x128xf32>
    %1288 = arith.mulf %135, %1287 : vector<8x128xf32>
    %c309 = arith.constant 309 : index
    %1289 = memref.load %arg1[%c309] : memref<572xf32, #tpu.memory_space<smem>>
    %1290 = vector.broadcast %1289 : f32 to vector<8x128xf32>
    %1291 = arith.mulf %180, %1290 : vector<8x128xf32>
    %1292 = arith.addf %1288, %1291 : vector<8x128xf32>
    %c310 = arith.constant 310 : index
    %1293 = memref.load %arg1[%c310] : memref<572xf32, #tpu.memory_space<smem>>
    %1294 = vector.broadcast %1293 : f32 to vector<8x128xf32>
    %1295 = arith.mulf %225, %1294 : vector<8x128xf32>
    %1296 = arith.addf %1292, %1295 : vector<8x128xf32>
    %c311 = arith.constant 311 : index
    %1297 = memref.load %arg1[%c311] : memref<572xf32, #tpu.memory_space<smem>>
    %1298 = vector.broadcast %1297 : f32 to vector<8x128xf32>
    %1299 = arith.mulf %270, %1298 : vector<8x128xf32>
    %1300 = arith.addf %1296, %1299 : vector<8x128xf32>
    %c312 = arith.constant 312 : index
    %1301 = memref.load %arg1[%c312] : memref<572xf32, #tpu.memory_space<smem>>
    %1302 = vector.broadcast %1301 : f32 to vector<8x128xf32>
    %1303 = arith.mulf %315, %1302 : vector<8x128xf32>
    %1304 = arith.addf %1300, %1303 : vector<8x128xf32>
    %c313 = arith.constant 313 : index
    %1305 = memref.load %arg1[%c313] : memref<572xf32, #tpu.memory_space<smem>>
    %1306 = vector.broadcast %1305 : f32 to vector<8x128xf32>
    %1307 = arith.mulf %360, %1306 : vector<8x128xf32>
    %1308 = arith.addf %1304, %1307 : vector<8x128xf32>
    %c314 = arith.constant 314 : index
    %1309 = memref.load %arg1[%c314] : memref<572xf32, #tpu.memory_space<smem>>
    %1310 = vector.broadcast %1309 : f32 to vector<8x128xf32>
    %1311 = arith.mulf %405, %1310 : vector<8x128xf32>
    %1312 = arith.addf %1308, %1311 : vector<8x128xf32>
    %c315 = arith.constant 315 : index
    %1313 = memref.load %arg1[%c315] : memref<572xf32, #tpu.memory_space<smem>>
    %1314 = vector.broadcast %1313 : f32 to vector<8x128xf32>
    %1315 = arith.mulf %450, %1314 : vector<8x128xf32>
    %1316 = arith.addf %1312, %1315 : vector<8x128xf32>
    %c316 = arith.constant 316 : index
    %1317 = memref.load %arg1[%c316] : memref<572xf32, #tpu.memory_space<smem>>
    %1318 = vector.broadcast %1317 : f32 to vector<8x128xf32>
    %1319 = arith.mulf %495, %1318 : vector<8x128xf32>
    %1320 = arith.addf %1316, %1319 : vector<8x128xf32>
    %c317 = arith.constant 317 : index
    %1321 = memref.load %arg1[%c317] : memref<572xf32, #tpu.memory_space<smem>>
    %1322 = vector.broadcast %1321 : f32 to vector<8x128xf32>
    %1323 = arith.mulf %540, %1322 : vector<8x128xf32>
    %1324 = arith.addf %1320, %1323 : vector<8x128xf32>
    %c318 = arith.constant 318 : index
    %1325 = memref.load %arg1[%c318] : memref<572xf32, #tpu.memory_space<smem>>
    %1326 = vector.broadcast %1325 : f32 to vector<8x128xf32>
    %1327 = arith.mulf %585, %1326 : vector<8x128xf32>
    %1328 = arith.addf %1324, %1327 : vector<8x128xf32>
    %c319 = arith.constant 319 : index
    %1329 = memref.load %arg1[%c319] : memref<572xf32, #tpu.memory_space<smem>>
    %1330 = vector.broadcast %1329 : f32 to vector<8x128xf32>
    %1331 = arith.mulf %630, %1330 : vector<8x128xf32>
    %1332 = arith.addf %1328, %1331 : vector<8x128xf32>
    %c320 = arith.constant 320 : index
    %1333 = memref.load %arg1[%c320] : memref<572xf32, #tpu.memory_space<smem>>
    %1334 = vector.broadcast %1333 : f32 to vector<8x128xf32>
    %1335 = arith.mulf %675, %1334 : vector<8x128xf32>
    %1336 = arith.addf %1332, %1335 : vector<8x128xf32>
    %c321 = arith.constant 321 : index
    %1337 = memref.load %arg1[%c321] : memref<572xf32, #tpu.memory_space<smem>>
    %1338 = vector.broadcast %1337 : f32 to vector<8x128xf32>
    %1339 = arith.mulf %720, %1338 : vector<8x128xf32>
    %1340 = arith.addf %1336, %1339 : vector<8x128xf32>
    %c322 = arith.constant 322 : index
    %1341 = memref.load %arg1[%c322] : memref<572xf32, #tpu.memory_space<smem>>
    %1342 = vector.broadcast %1341 : f32 to vector<8x128xf32>
    %1343 = arith.mulf %765, %1342 : vector<8x128xf32>
    %1344 = arith.addf %1340, %1343 : vector<8x128xf32>
    %c323 = arith.constant 323 : index
    %1345 = memref.load %arg1[%c323] : memref<572xf32, #tpu.memory_space<smem>>
    %1346 = vector.broadcast %1345 : f32 to vector<8x128xf32>
    %1347 = arith.mulf %810, %1346 : vector<8x128xf32>
    %1348 = arith.addf %1344, %1347 : vector<8x128xf32>
    %c324 = arith.constant 324 : index
    %1349 = memref.load %arg1[%c324] : memref<572xf32, #tpu.memory_space<smem>>
    %1350 = vector.broadcast %1349 : f32 to vector<8x128xf32>
    %1351 = arith.mulf %855, %1350 : vector<8x128xf32>
    %1352 = arith.addf %1348, %1351 : vector<8x128xf32>
    %c325 = arith.constant 325 : index
    %1353 = memref.load %arg1[%c325] : memref<572xf32, #tpu.memory_space<smem>>
    %1354 = vector.broadcast %1353 : f32 to vector<8x128xf32>
    %1355 = arith.mulf %900, %1354 : vector<8x128xf32>
    %1356 = arith.addf %1352, %1355 : vector<8x128xf32>
    %c493 = arith.constant 493 : index
    %1357 = memref.load %arg1[%c493] : memref<572xf32, #tpu.memory_space<smem>>
    %1358 = vector.broadcast %1357 : f32 to vector<8x128xf32>
    %1359 = arith.addf %1356, %1358 : vector<8x128xf32>
    %cst_34 = arith.constant 0.00999999977 : f32
    %1360 = vector.broadcast %cst_34 : f32 to vector<8x128xf32>
    %1361 = arith.mulf %1360, %1359 : vector<8x128xf32>
    %1362 = arith.maximumf %1359, %1361 : vector<8x128xf32>
    %c326 = arith.constant 326 : index
    %1363 = memref.load %arg1[%c326] : memref<572xf32, #tpu.memory_space<smem>>
    %1364 = vector.broadcast %1363 : f32 to vector<8x128xf32>
    %1365 = arith.mulf %135, %1364 : vector<8x128xf32>
    %c327 = arith.constant 327 : index
    %1366 = memref.load %arg1[%c327] : memref<572xf32, #tpu.memory_space<smem>>
    %1367 = vector.broadcast %1366 : f32 to vector<8x128xf32>
    %1368 = arith.mulf %180, %1367 : vector<8x128xf32>
    %1369 = arith.addf %1365, %1368 : vector<8x128xf32>
    %c328 = arith.constant 328 : index
    %1370 = memref.load %arg1[%c328] : memref<572xf32, #tpu.memory_space<smem>>
    %1371 = vector.broadcast %1370 : f32 to vector<8x128xf32>
    %1372 = arith.mulf %225, %1371 : vector<8x128xf32>
    %1373 = arith.addf %1369, %1372 : vector<8x128xf32>
    %c329 = arith.constant 329 : index
    %1374 = memref.load %arg1[%c329] : memref<572xf32, #tpu.memory_space<smem>>
    %1375 = vector.broadcast %1374 : f32 to vector<8x128xf32>
    %1376 = arith.mulf %270, %1375 : vector<8x128xf32>
    %1377 = arith.addf %1373, %1376 : vector<8x128xf32>
    %c330 = arith.constant 330 : index
    %1378 = memref.load %arg1[%c330] : memref<572xf32, #tpu.memory_space<smem>>
    %1379 = vector.broadcast %1378 : f32 to vector<8x128xf32>
    %1380 = arith.mulf %315, %1379 : vector<8x128xf32>
    %1381 = arith.addf %1377, %1380 : vector<8x128xf32>
    %c331 = arith.constant 331 : index
    %1382 = memref.load %arg1[%c331] : memref<572xf32, #tpu.memory_space<smem>>
    %1383 = vector.broadcast %1382 : f32 to vector<8x128xf32>
    %1384 = arith.mulf %360, %1383 : vector<8x128xf32>
    %1385 = arith.addf %1381, %1384 : vector<8x128xf32>
    %c332 = arith.constant 332 : index
    %1386 = memref.load %arg1[%c332] : memref<572xf32, #tpu.memory_space<smem>>
    %1387 = vector.broadcast %1386 : f32 to vector<8x128xf32>
    %1388 = arith.mulf %405, %1387 : vector<8x128xf32>
    %1389 = arith.addf %1385, %1388 : vector<8x128xf32>
    %c333 = arith.constant 333 : index
    %1390 = memref.load %arg1[%c333] : memref<572xf32, #tpu.memory_space<smem>>
    %1391 = vector.broadcast %1390 : f32 to vector<8x128xf32>
    %1392 = arith.mulf %450, %1391 : vector<8x128xf32>
    %1393 = arith.addf %1389, %1392 : vector<8x128xf32>
    %c334 = arith.constant 334 : index
    %1394 = memref.load %arg1[%c334] : memref<572xf32, #tpu.memory_space<smem>>
    %1395 = vector.broadcast %1394 : f32 to vector<8x128xf32>
    %1396 = arith.mulf %495, %1395 : vector<8x128xf32>
    %1397 = arith.addf %1393, %1396 : vector<8x128xf32>
    %c335 = arith.constant 335 : index
    %1398 = memref.load %arg1[%c335] : memref<572xf32, #tpu.memory_space<smem>>
    %1399 = vector.broadcast %1398 : f32 to vector<8x128xf32>
    %1400 = arith.mulf %540, %1399 : vector<8x128xf32>
    %1401 = arith.addf %1397, %1400 : vector<8x128xf32>
    %c336 = arith.constant 336 : index
    %1402 = memref.load %arg1[%c336] : memref<572xf32, #tpu.memory_space<smem>>
    %1403 = vector.broadcast %1402 : f32 to vector<8x128xf32>
    %1404 = arith.mulf %585, %1403 : vector<8x128xf32>
    %1405 = arith.addf %1401, %1404 : vector<8x128xf32>
    %c337 = arith.constant 337 : index
    %1406 = memref.load %arg1[%c337] : memref<572xf32, #tpu.memory_space<smem>>
    %1407 = vector.broadcast %1406 : f32 to vector<8x128xf32>
    %1408 = arith.mulf %630, %1407 : vector<8x128xf32>
    %1409 = arith.addf %1405, %1408 : vector<8x128xf32>
    %c338 = arith.constant 338 : index
    %1410 = memref.load %arg1[%c338] : memref<572xf32, #tpu.memory_space<smem>>
    %1411 = vector.broadcast %1410 : f32 to vector<8x128xf32>
    %1412 = arith.mulf %675, %1411 : vector<8x128xf32>
    %1413 = arith.addf %1409, %1412 : vector<8x128xf32>
    %c339 = arith.constant 339 : index
    %1414 = memref.load %arg1[%c339] : memref<572xf32, #tpu.memory_space<smem>>
    %1415 = vector.broadcast %1414 : f32 to vector<8x128xf32>
    %1416 = arith.mulf %720, %1415 : vector<8x128xf32>
    %1417 = arith.addf %1413, %1416 : vector<8x128xf32>
    %c340 = arith.constant 340 : index
    %1418 = memref.load %arg1[%c340] : memref<572xf32, #tpu.memory_space<smem>>
    %1419 = vector.broadcast %1418 : f32 to vector<8x128xf32>
    %1420 = arith.mulf %765, %1419 : vector<8x128xf32>
    %1421 = arith.addf %1417, %1420 : vector<8x128xf32>
    %c341 = arith.constant 341 : index
    %1422 = memref.load %arg1[%c341] : memref<572xf32, #tpu.memory_space<smem>>
    %1423 = vector.broadcast %1422 : f32 to vector<8x128xf32>
    %1424 = arith.mulf %810, %1423 : vector<8x128xf32>
    %1425 = arith.addf %1421, %1424 : vector<8x128xf32>
    %c342 = arith.constant 342 : index
    %1426 = memref.load %arg1[%c342] : memref<572xf32, #tpu.memory_space<smem>>
    %1427 = vector.broadcast %1426 : f32 to vector<8x128xf32>
    %1428 = arith.mulf %855, %1427 : vector<8x128xf32>
    %1429 = arith.addf %1425, %1428 : vector<8x128xf32>
    %c343 = arith.constant 343 : index
    %1430 = memref.load %arg1[%c343] : memref<572xf32, #tpu.memory_space<smem>>
    %1431 = vector.broadcast %1430 : f32 to vector<8x128xf32>
    %1432 = arith.mulf %900, %1431 : vector<8x128xf32>
    %1433 = arith.addf %1429, %1432 : vector<8x128xf32>
    %c494 = arith.constant 494 : index
    %1434 = memref.load %arg1[%c494] : memref<572xf32, #tpu.memory_space<smem>>
    %1435 = vector.broadcast %1434 : f32 to vector<8x128xf32>
    %1436 = arith.addf %1433, %1435 : vector<8x128xf32>
    %cst_35 = arith.constant 0.00999999977 : f32
    %1437 = vector.broadcast %cst_35 : f32 to vector<8x128xf32>
    %1438 = arith.mulf %1437, %1436 : vector<8x128xf32>
    %1439 = arith.maximumf %1436, %1438 : vector<8x128xf32>
    %c344 = arith.constant 344 : index
    %1440 = memref.load %arg1[%c344] : memref<572xf32, #tpu.memory_space<smem>>
    %1441 = vector.broadcast %1440 : f32 to vector<8x128xf32>
    %1442 = arith.mulf %135, %1441 : vector<8x128xf32>
    %c345 = arith.constant 345 : index
    %1443 = memref.load %arg1[%c345] : memref<572xf32, #tpu.memory_space<smem>>
    %1444 = vector.broadcast %1443 : f32 to vector<8x128xf32>
    %1445 = arith.mulf %180, %1444 : vector<8x128xf32>
    %1446 = arith.addf %1442, %1445 : vector<8x128xf32>
    %c346 = arith.constant 346 : index
    %1447 = memref.load %arg1[%c346] : memref<572xf32, #tpu.memory_space<smem>>
    %1448 = vector.broadcast %1447 : f32 to vector<8x128xf32>
    %1449 = arith.mulf %225, %1448 : vector<8x128xf32>
    %1450 = arith.addf %1446, %1449 : vector<8x128xf32>
    %c347 = arith.constant 347 : index
    %1451 = memref.load %arg1[%c347] : memref<572xf32, #tpu.memory_space<smem>>
    %1452 = vector.broadcast %1451 : f32 to vector<8x128xf32>
    %1453 = arith.mulf %270, %1452 : vector<8x128xf32>
    %1454 = arith.addf %1450, %1453 : vector<8x128xf32>
    %c348 = arith.constant 348 : index
    %1455 = memref.load %arg1[%c348] : memref<572xf32, #tpu.memory_space<smem>>
    %1456 = vector.broadcast %1455 : f32 to vector<8x128xf32>
    %1457 = arith.mulf %315, %1456 : vector<8x128xf32>
    %1458 = arith.addf %1454, %1457 : vector<8x128xf32>
    %c349 = arith.constant 349 : index
    %1459 = memref.load %arg1[%c349] : memref<572xf32, #tpu.memory_space<smem>>
    %1460 = vector.broadcast %1459 : f32 to vector<8x128xf32>
    %1461 = arith.mulf %360, %1460 : vector<8x128xf32>
    %1462 = arith.addf %1458, %1461 : vector<8x128xf32>
    %c350 = arith.constant 350 : index
    %1463 = memref.load %arg1[%c350] : memref<572xf32, #tpu.memory_space<smem>>
    %1464 = vector.broadcast %1463 : f32 to vector<8x128xf32>
    %1465 = arith.mulf %405, %1464 : vector<8x128xf32>
    %1466 = arith.addf %1462, %1465 : vector<8x128xf32>
    %c351 = arith.constant 351 : index
    %1467 = memref.load %arg1[%c351] : memref<572xf32, #tpu.memory_space<smem>>
    %1468 = vector.broadcast %1467 : f32 to vector<8x128xf32>
    %1469 = arith.mulf %450, %1468 : vector<8x128xf32>
    %1470 = arith.addf %1466, %1469 : vector<8x128xf32>
    %c352 = arith.constant 352 : index
    %1471 = memref.load %arg1[%c352] : memref<572xf32, #tpu.memory_space<smem>>
    %1472 = vector.broadcast %1471 : f32 to vector<8x128xf32>
    %1473 = arith.mulf %495, %1472 : vector<8x128xf32>
    %1474 = arith.addf %1470, %1473 : vector<8x128xf32>
    %c353 = arith.constant 353 : index
    %1475 = memref.load %arg1[%c353] : memref<572xf32, #tpu.memory_space<smem>>
    %1476 = vector.broadcast %1475 : f32 to vector<8x128xf32>
    %1477 = arith.mulf %540, %1476 : vector<8x128xf32>
    %1478 = arith.addf %1474, %1477 : vector<8x128xf32>
    %c354 = arith.constant 354 : index
    %1479 = memref.load %arg1[%c354] : memref<572xf32, #tpu.memory_space<smem>>
    %1480 = vector.broadcast %1479 : f32 to vector<8x128xf32>
    %1481 = arith.mulf %585, %1480 : vector<8x128xf32>
    %1482 = arith.addf %1478, %1481 : vector<8x128xf32>
    %c355 = arith.constant 355 : index
    %1483 = memref.load %arg1[%c355] : memref<572xf32, #tpu.memory_space<smem>>
    %1484 = vector.broadcast %1483 : f32 to vector<8x128xf32>
    %1485 = arith.mulf %630, %1484 : vector<8x128xf32>
    %1486 = arith.addf %1482, %1485 : vector<8x128xf32>
    %c356 = arith.constant 356 : index
    %1487 = memref.load %arg1[%c356] : memref<572xf32, #tpu.memory_space<smem>>
    %1488 = vector.broadcast %1487 : f32 to vector<8x128xf32>
    %1489 = arith.mulf %675, %1488 : vector<8x128xf32>
    %1490 = arith.addf %1486, %1489 : vector<8x128xf32>
    %c357 = arith.constant 357 : index
    %1491 = memref.load %arg1[%c357] : memref<572xf32, #tpu.memory_space<smem>>
    %1492 = vector.broadcast %1491 : f32 to vector<8x128xf32>
    %1493 = arith.mulf %720, %1492 : vector<8x128xf32>
    %1494 = arith.addf %1490, %1493 : vector<8x128xf32>
    %c358 = arith.constant 358 : index
    %1495 = memref.load %arg1[%c358] : memref<572xf32, #tpu.memory_space<smem>>
    %1496 = vector.broadcast %1495 : f32 to vector<8x128xf32>
    %1497 = arith.mulf %765, %1496 : vector<8x128xf32>
    %1498 = arith.addf %1494, %1497 : vector<8x128xf32>
    %c359 = arith.constant 359 : index
    %1499 = memref.load %arg1[%c359] : memref<572xf32, #tpu.memory_space<smem>>
    %1500 = vector.broadcast %1499 : f32 to vector<8x128xf32>
    %1501 = arith.mulf %810, %1500 : vector<8x128xf32>
    %1502 = arith.addf %1498, %1501 : vector<8x128xf32>
    %c360 = arith.constant 360 : index
    %1503 = memref.load %arg1[%c360] : memref<572xf32, #tpu.memory_space<smem>>
    %1504 = vector.broadcast %1503 : f32 to vector<8x128xf32>
    %1505 = arith.mulf %855, %1504 : vector<8x128xf32>
    %1506 = arith.addf %1502, %1505 : vector<8x128xf32>
    %c361 = arith.constant 361 : index
    %1507 = memref.load %arg1[%c361] : memref<572xf32, #tpu.memory_space<smem>>
    %1508 = vector.broadcast %1507 : f32 to vector<8x128xf32>
    %1509 = arith.mulf %900, %1508 : vector<8x128xf32>
    %1510 = arith.addf %1506, %1509 : vector<8x128xf32>
    %c495 = arith.constant 495 : index
    %1511 = memref.load %arg1[%c495] : memref<572xf32, #tpu.memory_space<smem>>
    %1512 = vector.broadcast %1511 : f32 to vector<8x128xf32>
    %1513 = arith.addf %1510, %1512 : vector<8x128xf32>
    %cst_36 = arith.constant 0.00999999977 : f32
    %1514 = vector.broadcast %cst_36 : f32 to vector<8x128xf32>
    %1515 = arith.mulf %1514, %1513 : vector<8x128xf32>
    %1516 = arith.maximumf %1513, %1515 : vector<8x128xf32>
    %c362 = arith.constant 362 : index
    %1517 = memref.load %arg1[%c362] : memref<572xf32, #tpu.memory_space<smem>>
    %1518 = vector.broadcast %1517 : f32 to vector<8x128xf32>
    %1519 = arith.mulf %135, %1518 : vector<8x128xf32>
    %c363 = arith.constant 363 : index
    %1520 = memref.load %arg1[%c363] : memref<572xf32, #tpu.memory_space<smem>>
    %1521 = vector.broadcast %1520 : f32 to vector<8x128xf32>
    %1522 = arith.mulf %180, %1521 : vector<8x128xf32>
    %1523 = arith.addf %1519, %1522 : vector<8x128xf32>
    %c364 = arith.constant 364 : index
    %1524 = memref.load %arg1[%c364] : memref<572xf32, #tpu.memory_space<smem>>
    %1525 = vector.broadcast %1524 : f32 to vector<8x128xf32>
    %1526 = arith.mulf %225, %1525 : vector<8x128xf32>
    %1527 = arith.addf %1523, %1526 : vector<8x128xf32>
    %c365 = arith.constant 365 : index
    %1528 = memref.load %arg1[%c365] : memref<572xf32, #tpu.memory_space<smem>>
    %1529 = vector.broadcast %1528 : f32 to vector<8x128xf32>
    %1530 = arith.mulf %270, %1529 : vector<8x128xf32>
    %1531 = arith.addf %1527, %1530 : vector<8x128xf32>
    %c366 = arith.constant 366 : index
    %1532 = memref.load %arg1[%c366] : memref<572xf32, #tpu.memory_space<smem>>
    %1533 = vector.broadcast %1532 : f32 to vector<8x128xf32>
    %1534 = arith.mulf %315, %1533 : vector<8x128xf32>
    %1535 = arith.addf %1531, %1534 : vector<8x128xf32>
    %c367 = arith.constant 367 : index
    %1536 = memref.load %arg1[%c367] : memref<572xf32, #tpu.memory_space<smem>>
    %1537 = vector.broadcast %1536 : f32 to vector<8x128xf32>
    %1538 = arith.mulf %360, %1537 : vector<8x128xf32>
    %1539 = arith.addf %1535, %1538 : vector<8x128xf32>
    %c368 = arith.constant 368 : index
    %1540 = memref.load %arg1[%c368] : memref<572xf32, #tpu.memory_space<smem>>
    %1541 = vector.broadcast %1540 : f32 to vector<8x128xf32>
    %1542 = arith.mulf %405, %1541 : vector<8x128xf32>
    %1543 = arith.addf %1539, %1542 : vector<8x128xf32>
    %c369 = arith.constant 369 : index
    %1544 = memref.load %arg1[%c369] : memref<572xf32, #tpu.memory_space<smem>>
    %1545 = vector.broadcast %1544 : f32 to vector<8x128xf32>
    %1546 = arith.mulf %450, %1545 : vector<8x128xf32>
    %1547 = arith.addf %1543, %1546 : vector<8x128xf32>
    %c370 = arith.constant 370 : index
    %1548 = memref.load %arg1[%c370] : memref<572xf32, #tpu.memory_space<smem>>
    %1549 = vector.broadcast %1548 : f32 to vector<8x128xf32>
    %1550 = arith.mulf %495, %1549 : vector<8x128xf32>
    %1551 = arith.addf %1547, %1550 : vector<8x128xf32>
    %c371 = arith.constant 371 : index
    %1552 = memref.load %arg1[%c371] : memref<572xf32, #tpu.memory_space<smem>>
    %1553 = vector.broadcast %1552 : f32 to vector<8x128xf32>
    %1554 = arith.mulf %540, %1553 : vector<8x128xf32>
    %1555 = arith.addf %1551, %1554 : vector<8x128xf32>
    %c372 = arith.constant 372 : index
    %1556 = memref.load %arg1[%c372] : memref<572xf32, #tpu.memory_space<smem>>
    %1557 = vector.broadcast %1556 : f32 to vector<8x128xf32>
    %1558 = arith.mulf %585, %1557 : vector<8x128xf32>
    %1559 = arith.addf %1555, %1558 : vector<8x128xf32>
    %c373 = arith.constant 373 : index
    %1560 = memref.load %arg1[%c373] : memref<572xf32, #tpu.memory_space<smem>>
    %1561 = vector.broadcast %1560 : f32 to vector<8x128xf32>
    %1562 = arith.mulf %630, %1561 : vector<8x128xf32>
    %1563 = arith.addf %1559, %1562 : vector<8x128xf32>
    %c374 = arith.constant 374 : index
    %1564 = memref.load %arg1[%c374] : memref<572xf32, #tpu.memory_space<smem>>
    %1565 = vector.broadcast %1564 : f32 to vector<8x128xf32>
    %1566 = arith.mulf %675, %1565 : vector<8x128xf32>
    %1567 = arith.addf %1563, %1566 : vector<8x128xf32>
    %c375 = arith.constant 375 : index
    %1568 = memref.load %arg1[%c375] : memref<572xf32, #tpu.memory_space<smem>>
    %1569 = vector.broadcast %1568 : f32 to vector<8x128xf32>
    %1570 = arith.mulf %720, %1569 : vector<8x128xf32>
    %1571 = arith.addf %1567, %1570 : vector<8x128xf32>
    %c376 = arith.constant 376 : index
    %1572 = memref.load %arg1[%c376] : memref<572xf32, #tpu.memory_space<smem>>
    %1573 = vector.broadcast %1572 : f32 to vector<8x128xf32>
    %1574 = arith.mulf %765, %1573 : vector<8x128xf32>
    %1575 = arith.addf %1571, %1574 : vector<8x128xf32>
    %c377 = arith.constant 377 : index
    %1576 = memref.load %arg1[%c377] : memref<572xf32, #tpu.memory_space<smem>>
    %1577 = vector.broadcast %1576 : f32 to vector<8x128xf32>
    %1578 = arith.mulf %810, %1577 : vector<8x128xf32>
    %1579 = arith.addf %1575, %1578 : vector<8x128xf32>
    %c378 = arith.constant 378 : index
    %1580 = memref.load %arg1[%c378] : memref<572xf32, #tpu.memory_space<smem>>
    %1581 = vector.broadcast %1580 : f32 to vector<8x128xf32>
    %1582 = arith.mulf %855, %1581 : vector<8x128xf32>
    %1583 = arith.addf %1579, %1582 : vector<8x128xf32>
    %c379 = arith.constant 379 : index
    %1584 = memref.load %arg1[%c379] : memref<572xf32, #tpu.memory_space<smem>>
    %1585 = vector.broadcast %1584 : f32 to vector<8x128xf32>
    %1586 = arith.mulf %900, %1585 : vector<8x128xf32>
    %1587 = arith.addf %1583, %1586 : vector<8x128xf32>
    %c496 = arith.constant 496 : index
    %1588 = memref.load %arg1[%c496] : memref<572xf32, #tpu.memory_space<smem>>
    %1589 = vector.broadcast %1588 : f32 to vector<8x128xf32>
    %1590 = arith.addf %1587, %1589 : vector<8x128xf32>
    %cst_37 = arith.constant 0.00999999977 : f32
    %1591 = vector.broadcast %cst_37 : f32 to vector<8x128xf32>
    %1592 = arith.mulf %1591, %1590 : vector<8x128xf32>
    %1593 = arith.maximumf %1590, %1592 : vector<8x128xf32>
    %c380 = arith.constant 380 : index
    %1594 = memref.load %arg1[%c380] : memref<572xf32, #tpu.memory_space<smem>>
    %1595 = vector.broadcast %1594 : f32 to vector<8x128xf32>
    %1596 = arith.mulf %135, %1595 : vector<8x128xf32>
    %c381 = arith.constant 381 : index
    %1597 = memref.load %arg1[%c381] : memref<572xf32, #tpu.memory_space<smem>>
    %1598 = vector.broadcast %1597 : f32 to vector<8x128xf32>
    %1599 = arith.mulf %180, %1598 : vector<8x128xf32>
    %1600 = arith.addf %1596, %1599 : vector<8x128xf32>
    %c382 = arith.constant 382 : index
    %1601 = memref.load %arg1[%c382] : memref<572xf32, #tpu.memory_space<smem>>
    %1602 = vector.broadcast %1601 : f32 to vector<8x128xf32>
    %1603 = arith.mulf %225, %1602 : vector<8x128xf32>
    %1604 = arith.addf %1600, %1603 : vector<8x128xf32>
    %c383 = arith.constant 383 : index
    %1605 = memref.load %arg1[%c383] : memref<572xf32, #tpu.memory_space<smem>>
    %1606 = vector.broadcast %1605 : f32 to vector<8x128xf32>
    %1607 = arith.mulf %270, %1606 : vector<8x128xf32>
    %1608 = arith.addf %1604, %1607 : vector<8x128xf32>
    %c384 = arith.constant 384 : index
    %1609 = memref.load %arg1[%c384] : memref<572xf32, #tpu.memory_space<smem>>
    %1610 = vector.broadcast %1609 : f32 to vector<8x128xf32>
    %1611 = arith.mulf %315, %1610 : vector<8x128xf32>
    %1612 = arith.addf %1608, %1611 : vector<8x128xf32>
    %c385 = arith.constant 385 : index
    %1613 = memref.load %arg1[%c385] : memref<572xf32, #tpu.memory_space<smem>>
    %1614 = vector.broadcast %1613 : f32 to vector<8x128xf32>
    %1615 = arith.mulf %360, %1614 : vector<8x128xf32>
    %1616 = arith.addf %1612, %1615 : vector<8x128xf32>
    %c386 = arith.constant 386 : index
    %1617 = memref.load %arg1[%c386] : memref<572xf32, #tpu.memory_space<smem>>
    %1618 = vector.broadcast %1617 : f32 to vector<8x128xf32>
    %1619 = arith.mulf %405, %1618 : vector<8x128xf32>
    %1620 = arith.addf %1616, %1619 : vector<8x128xf32>
    %c387 = arith.constant 387 : index
    %1621 = memref.load %arg1[%c387] : memref<572xf32, #tpu.memory_space<smem>>
    %1622 = vector.broadcast %1621 : f32 to vector<8x128xf32>
    %1623 = arith.mulf %450, %1622 : vector<8x128xf32>
    %1624 = arith.addf %1620, %1623 : vector<8x128xf32>
    %c388 = arith.constant 388 : index
    %1625 = memref.load %arg1[%c388] : memref<572xf32, #tpu.memory_space<smem>>
    %1626 = vector.broadcast %1625 : f32 to vector<8x128xf32>
    %1627 = arith.mulf %495, %1626 : vector<8x128xf32>
    %1628 = arith.addf %1624, %1627 : vector<8x128xf32>
    %c389 = arith.constant 389 : index
    %1629 = memref.load %arg1[%c389] : memref<572xf32, #tpu.memory_space<smem>>
    %1630 = vector.broadcast %1629 : f32 to vector<8x128xf32>
    %1631 = arith.mulf %540, %1630 : vector<8x128xf32>
    %1632 = arith.addf %1628, %1631 : vector<8x128xf32>
    %c390 = arith.constant 390 : index
    %1633 = memref.load %arg1[%c390] : memref<572xf32, #tpu.memory_space<smem>>
    %1634 = vector.broadcast %1633 : f32 to vector<8x128xf32>
    %1635 = arith.mulf %585, %1634 : vector<8x128xf32>
    %1636 = arith.addf %1632, %1635 : vector<8x128xf32>
    %c391 = arith.constant 391 : index
    %1637 = memref.load %arg1[%c391] : memref<572xf32, #tpu.memory_space<smem>>
    %1638 = vector.broadcast %1637 : f32 to vector<8x128xf32>
    %1639 = arith.mulf %630, %1638 : vector<8x128xf32>
    %1640 = arith.addf %1636, %1639 : vector<8x128xf32>
    %c392 = arith.constant 392 : index
    %1641 = memref.load %arg1[%c392] : memref<572xf32, #tpu.memory_space<smem>>
    %1642 = vector.broadcast %1641 : f32 to vector<8x128xf32>
    %1643 = arith.mulf %675, %1642 : vector<8x128xf32>
    %1644 = arith.addf %1640, %1643 : vector<8x128xf32>
    %c393 = arith.constant 393 : index
    %1645 = memref.load %arg1[%c393] : memref<572xf32, #tpu.memory_space<smem>>
    %1646 = vector.broadcast %1645 : f32 to vector<8x128xf32>
    %1647 = arith.mulf %720, %1646 : vector<8x128xf32>
    %1648 = arith.addf %1644, %1647 : vector<8x128xf32>
    %c394 = arith.constant 394 : index
    %1649 = memref.load %arg1[%c394] : memref<572xf32, #tpu.memory_space<smem>>
    %1650 = vector.broadcast %1649 : f32 to vector<8x128xf32>
    %1651 = arith.mulf %765, %1650 : vector<8x128xf32>
    %1652 = arith.addf %1648, %1651 : vector<8x128xf32>
    %c395 = arith.constant 395 : index
    %1653 = memref.load %arg1[%c395] : memref<572xf32, #tpu.memory_space<smem>>
    %1654 = vector.broadcast %1653 : f32 to vector<8x128xf32>
    %1655 = arith.mulf %810, %1654 : vector<8x128xf32>
    %1656 = arith.addf %1652, %1655 : vector<8x128xf32>
    %c396 = arith.constant 396 : index
    %1657 = memref.load %arg1[%c396] : memref<572xf32, #tpu.memory_space<smem>>
    %1658 = vector.broadcast %1657 : f32 to vector<8x128xf32>
    %1659 = arith.mulf %855, %1658 : vector<8x128xf32>
    %1660 = arith.addf %1656, %1659 : vector<8x128xf32>
    %c397 = arith.constant 397 : index
    %1661 = memref.load %arg1[%c397] : memref<572xf32, #tpu.memory_space<smem>>
    %1662 = vector.broadcast %1661 : f32 to vector<8x128xf32>
    %1663 = arith.mulf %900, %1662 : vector<8x128xf32>
    %1664 = arith.addf %1660, %1663 : vector<8x128xf32>
    %c497 = arith.constant 497 : index
    %1665 = memref.load %arg1[%c497] : memref<572xf32, #tpu.memory_space<smem>>
    %1666 = vector.broadcast %1665 : f32 to vector<8x128xf32>
    %1667 = arith.addf %1664, %1666 : vector<8x128xf32>
    %cst_38 = arith.constant 0.00999999977 : f32
    %1668 = vector.broadcast %cst_38 : f32 to vector<8x128xf32>
    %1669 = arith.mulf %1668, %1667 : vector<8x128xf32>
    %1670 = arith.maximumf %1667, %1669 : vector<8x128xf32>
    %c398 = arith.constant 398 : index
    %1671 = memref.load %arg1[%c398] : memref<572xf32, #tpu.memory_space<smem>>
    %1672 = vector.broadcast %1671 : f32 to vector<8x128xf32>
    %1673 = arith.mulf %135, %1672 : vector<8x128xf32>
    %c399 = arith.constant 399 : index
    %1674 = memref.load %arg1[%c399] : memref<572xf32, #tpu.memory_space<smem>>
    %1675 = vector.broadcast %1674 : f32 to vector<8x128xf32>
    %1676 = arith.mulf %180, %1675 : vector<8x128xf32>
    %1677 = arith.addf %1673, %1676 : vector<8x128xf32>
    %c400 = arith.constant 400 : index
    %1678 = memref.load %arg1[%c400] : memref<572xf32, #tpu.memory_space<smem>>
    %1679 = vector.broadcast %1678 : f32 to vector<8x128xf32>
    %1680 = arith.mulf %225, %1679 : vector<8x128xf32>
    %1681 = arith.addf %1677, %1680 : vector<8x128xf32>
    %c401 = arith.constant 401 : index
    %1682 = memref.load %arg1[%c401] : memref<572xf32, #tpu.memory_space<smem>>
    %1683 = vector.broadcast %1682 : f32 to vector<8x128xf32>
    %1684 = arith.mulf %270, %1683 : vector<8x128xf32>
    %1685 = arith.addf %1681, %1684 : vector<8x128xf32>
    %c402 = arith.constant 402 : index
    %1686 = memref.load %arg1[%c402] : memref<572xf32, #tpu.memory_space<smem>>
    %1687 = vector.broadcast %1686 : f32 to vector<8x128xf32>
    %1688 = arith.mulf %315, %1687 : vector<8x128xf32>
    %1689 = arith.addf %1685, %1688 : vector<8x128xf32>
    %c403 = arith.constant 403 : index
    %1690 = memref.load %arg1[%c403] : memref<572xf32, #tpu.memory_space<smem>>
    %1691 = vector.broadcast %1690 : f32 to vector<8x128xf32>
    %1692 = arith.mulf %360, %1691 : vector<8x128xf32>
    %1693 = arith.addf %1689, %1692 : vector<8x128xf32>
    %c404 = arith.constant 404 : index
    %1694 = memref.load %arg1[%c404] : memref<572xf32, #tpu.memory_space<smem>>
    %1695 = vector.broadcast %1694 : f32 to vector<8x128xf32>
    %1696 = arith.mulf %405, %1695 : vector<8x128xf32>
    %1697 = arith.addf %1693, %1696 : vector<8x128xf32>
    %c405 = arith.constant 405 : index
    %1698 = memref.load %arg1[%c405] : memref<572xf32, #tpu.memory_space<smem>>
    %1699 = vector.broadcast %1698 : f32 to vector<8x128xf32>
    %1700 = arith.mulf %450, %1699 : vector<8x128xf32>
    %1701 = arith.addf %1697, %1700 : vector<8x128xf32>
    %c406 = arith.constant 406 : index
    %1702 = memref.load %arg1[%c406] : memref<572xf32, #tpu.memory_space<smem>>
    %1703 = vector.broadcast %1702 : f32 to vector<8x128xf32>
    %1704 = arith.mulf %495, %1703 : vector<8x128xf32>
    %1705 = arith.addf %1701, %1704 : vector<8x128xf32>
    %c407 = arith.constant 407 : index
    %1706 = memref.load %arg1[%c407] : memref<572xf32, #tpu.memory_space<smem>>
    %1707 = vector.broadcast %1706 : f32 to vector<8x128xf32>
    %1708 = arith.mulf %540, %1707 : vector<8x128xf32>
    %1709 = arith.addf %1705, %1708 : vector<8x128xf32>
    %c408 = arith.constant 408 : index
    %1710 = memref.load %arg1[%c408] : memref<572xf32, #tpu.memory_space<smem>>
    %1711 = vector.broadcast %1710 : f32 to vector<8x128xf32>
    %1712 = arith.mulf %585, %1711 : vector<8x128xf32>
    %1713 = arith.addf %1709, %1712 : vector<8x128xf32>
    %c409 = arith.constant 409 : index
    %1714 = memref.load %arg1[%c409] : memref<572xf32, #tpu.memory_space<smem>>
    %1715 = vector.broadcast %1714 : f32 to vector<8x128xf32>
    %1716 = arith.mulf %630, %1715 : vector<8x128xf32>
    %1717 = arith.addf %1713, %1716 : vector<8x128xf32>
    %c410 = arith.constant 410 : index
    %1718 = memref.load %arg1[%c410] : memref<572xf32, #tpu.memory_space<smem>>
    %1719 = vector.broadcast %1718 : f32 to vector<8x128xf32>
    %1720 = arith.mulf %675, %1719 : vector<8x128xf32>
    %1721 = arith.addf %1717, %1720 : vector<8x128xf32>
    %c411 = arith.constant 411 : index
    %1722 = memref.load %arg1[%c411] : memref<572xf32, #tpu.memory_space<smem>>
    %1723 = vector.broadcast %1722 : f32 to vector<8x128xf32>
    %1724 = arith.mulf %720, %1723 : vector<8x128xf32>
    %1725 = arith.addf %1721, %1724 : vector<8x128xf32>
    %c412 = arith.constant 412 : index
    %1726 = memref.load %arg1[%c412] : memref<572xf32, #tpu.memory_space<smem>>
    %1727 = vector.broadcast %1726 : f32 to vector<8x128xf32>
    %1728 = arith.mulf %765, %1727 : vector<8x128xf32>
    %1729 = arith.addf %1725, %1728 : vector<8x128xf32>
    %c413 = arith.constant 413 : index
    %1730 = memref.load %arg1[%c413] : memref<572xf32, #tpu.memory_space<smem>>
    %1731 = vector.broadcast %1730 : f32 to vector<8x128xf32>
    %1732 = arith.mulf %810, %1731 : vector<8x128xf32>
    %1733 = arith.addf %1729, %1732 : vector<8x128xf32>
    %c414 = arith.constant 414 : index
    %1734 = memref.load %arg1[%c414] : memref<572xf32, #tpu.memory_space<smem>>
    %1735 = vector.broadcast %1734 : f32 to vector<8x128xf32>
    %1736 = arith.mulf %855, %1735 : vector<8x128xf32>
    %1737 = arith.addf %1733, %1736 : vector<8x128xf32>
    %c415 = arith.constant 415 : index
    %1738 = memref.load %arg1[%c415] : memref<572xf32, #tpu.memory_space<smem>>
    %1739 = vector.broadcast %1738 : f32 to vector<8x128xf32>
    %1740 = arith.mulf %900, %1739 : vector<8x128xf32>
    %1741 = arith.addf %1737, %1740 : vector<8x128xf32>
    %c498 = arith.constant 498 : index
    %1742 = memref.load %arg1[%c498] : memref<572xf32, #tpu.memory_space<smem>>
    %1743 = vector.broadcast %1742 : f32 to vector<8x128xf32>
    %1744 = arith.addf %1741, %1743 : vector<8x128xf32>
    %cst_39 = arith.constant 0.00999999977 : f32
    %1745 = vector.broadcast %cst_39 : f32 to vector<8x128xf32>
    %1746 = arith.mulf %1745, %1744 : vector<8x128xf32>
    %1747 = arith.maximumf %1744, %1746 : vector<8x128xf32>
    %c416 = arith.constant 416 : index
    %1748 = memref.load %arg1[%c416] : memref<572xf32, #tpu.memory_space<smem>>
    %1749 = vector.broadcast %1748 : f32 to vector<8x128xf32>
    %1750 = arith.mulf %135, %1749 : vector<8x128xf32>
    %c417 = arith.constant 417 : index
    %1751 = memref.load %arg1[%c417] : memref<572xf32, #tpu.memory_space<smem>>
    %1752 = vector.broadcast %1751 : f32 to vector<8x128xf32>
    %1753 = arith.mulf %180, %1752 : vector<8x128xf32>
    %1754 = arith.addf %1750, %1753 : vector<8x128xf32>
    %c418 = arith.constant 418 : index
    %1755 = memref.load %arg1[%c418] : memref<572xf32, #tpu.memory_space<smem>>
    %1756 = vector.broadcast %1755 : f32 to vector<8x128xf32>
    %1757 = arith.mulf %225, %1756 : vector<8x128xf32>
    %1758 = arith.addf %1754, %1757 : vector<8x128xf32>
    %c419 = arith.constant 419 : index
    %1759 = memref.load %arg1[%c419] : memref<572xf32, #tpu.memory_space<smem>>
    %1760 = vector.broadcast %1759 : f32 to vector<8x128xf32>
    %1761 = arith.mulf %270, %1760 : vector<8x128xf32>
    %1762 = arith.addf %1758, %1761 : vector<8x128xf32>
    %c420 = arith.constant 420 : index
    %1763 = memref.load %arg1[%c420] : memref<572xf32, #tpu.memory_space<smem>>
    %1764 = vector.broadcast %1763 : f32 to vector<8x128xf32>
    %1765 = arith.mulf %315, %1764 : vector<8x128xf32>
    %1766 = arith.addf %1762, %1765 : vector<8x128xf32>
    %c421 = arith.constant 421 : index
    %1767 = memref.load %arg1[%c421] : memref<572xf32, #tpu.memory_space<smem>>
    %1768 = vector.broadcast %1767 : f32 to vector<8x128xf32>
    %1769 = arith.mulf %360, %1768 : vector<8x128xf32>
    %1770 = arith.addf %1766, %1769 : vector<8x128xf32>
    %c422 = arith.constant 422 : index
    %1771 = memref.load %arg1[%c422] : memref<572xf32, #tpu.memory_space<smem>>
    %1772 = vector.broadcast %1771 : f32 to vector<8x128xf32>
    %1773 = arith.mulf %405, %1772 : vector<8x128xf32>
    %1774 = arith.addf %1770, %1773 : vector<8x128xf32>
    %c423 = arith.constant 423 : index
    %1775 = memref.load %arg1[%c423] : memref<572xf32, #tpu.memory_space<smem>>
    %1776 = vector.broadcast %1775 : f32 to vector<8x128xf32>
    %1777 = arith.mulf %450, %1776 : vector<8x128xf32>
    %1778 = arith.addf %1774, %1777 : vector<8x128xf32>
    %c424 = arith.constant 424 : index
    %1779 = memref.load %arg1[%c424] : memref<572xf32, #tpu.memory_space<smem>>
    %1780 = vector.broadcast %1779 : f32 to vector<8x128xf32>
    %1781 = arith.mulf %495, %1780 : vector<8x128xf32>
    %1782 = arith.addf %1778, %1781 : vector<8x128xf32>
    %c425 = arith.constant 425 : index
    %1783 = memref.load %arg1[%c425] : memref<572xf32, #tpu.memory_space<smem>>
    %1784 = vector.broadcast %1783 : f32 to vector<8x128xf32>
    %1785 = arith.mulf %540, %1784 : vector<8x128xf32>
    %1786 = arith.addf %1782, %1785 : vector<8x128xf32>
    %c426 = arith.constant 426 : index
    %1787 = memref.load %arg1[%c426] : memref<572xf32, #tpu.memory_space<smem>>
    %1788 = vector.broadcast %1787 : f32 to vector<8x128xf32>
    %1789 = arith.mulf %585, %1788 : vector<8x128xf32>
    %1790 = arith.addf %1786, %1789 : vector<8x128xf32>
    %c427 = arith.constant 427 : index
    %1791 = memref.load %arg1[%c427] : memref<572xf32, #tpu.memory_space<smem>>
    %1792 = vector.broadcast %1791 : f32 to vector<8x128xf32>
    %1793 = arith.mulf %630, %1792 : vector<8x128xf32>
    %1794 = arith.addf %1790, %1793 : vector<8x128xf32>
    %c428 = arith.constant 428 : index
    %1795 = memref.load %arg1[%c428] : memref<572xf32, #tpu.memory_space<smem>>
    %1796 = vector.broadcast %1795 : f32 to vector<8x128xf32>
    %1797 = arith.mulf %675, %1796 : vector<8x128xf32>
    %1798 = arith.addf %1794, %1797 : vector<8x128xf32>
    %c429 = arith.constant 429 : index
    %1799 = memref.load %arg1[%c429] : memref<572xf32, #tpu.memory_space<smem>>
    %1800 = vector.broadcast %1799 : f32 to vector<8x128xf32>
    %1801 = arith.mulf %720, %1800 : vector<8x128xf32>
    %1802 = arith.addf %1798, %1801 : vector<8x128xf32>
    %c430 = arith.constant 430 : index
    %1803 = memref.load %arg1[%c430] : memref<572xf32, #tpu.memory_space<smem>>
    %1804 = vector.broadcast %1803 : f32 to vector<8x128xf32>
    %1805 = arith.mulf %765, %1804 : vector<8x128xf32>
    %1806 = arith.addf %1802, %1805 : vector<8x128xf32>
    %c431 = arith.constant 431 : index
    %1807 = memref.load %arg1[%c431] : memref<572xf32, #tpu.memory_space<smem>>
    %1808 = vector.broadcast %1807 : f32 to vector<8x128xf32>
    %1809 = arith.mulf %810, %1808 : vector<8x128xf32>
    %1810 = arith.addf %1806, %1809 : vector<8x128xf32>
    %c432 = arith.constant 432 : index
    %1811 = memref.load %arg1[%c432] : memref<572xf32, #tpu.memory_space<smem>>
    %1812 = vector.broadcast %1811 : f32 to vector<8x128xf32>
    %1813 = arith.mulf %855, %1812 : vector<8x128xf32>
    %1814 = arith.addf %1810, %1813 : vector<8x128xf32>
    %c433 = arith.constant 433 : index
    %1815 = memref.load %arg1[%c433] : memref<572xf32, #tpu.memory_space<smem>>
    %1816 = vector.broadcast %1815 : f32 to vector<8x128xf32>
    %1817 = arith.mulf %900, %1816 : vector<8x128xf32>
    %1818 = arith.addf %1814, %1817 : vector<8x128xf32>
    %c499 = arith.constant 499 : index
    %1819 = memref.load %arg1[%c499] : memref<572xf32, #tpu.memory_space<smem>>
    %1820 = vector.broadcast %1819 : f32 to vector<8x128xf32>
    %1821 = arith.addf %1818, %1820 : vector<8x128xf32>
    %cst_40 = arith.constant 0.00999999977 : f32
    %1822 = vector.broadcast %cst_40 : f32 to vector<8x128xf32>
    %1823 = arith.mulf %1822, %1821 : vector<8x128xf32>
    %1824 = arith.maximumf %1821, %1823 : vector<8x128xf32>
    %c434 = arith.constant 434 : index
    %1825 = memref.load %arg1[%c434] : memref<572xf32, #tpu.memory_space<smem>>
    %1826 = vector.broadcast %1825 : f32 to vector<8x128xf32>
    %1827 = arith.mulf %135, %1826 : vector<8x128xf32>
    %c435 = arith.constant 435 : index
    %1828 = memref.load %arg1[%c435] : memref<572xf32, #tpu.memory_space<smem>>
    %1829 = vector.broadcast %1828 : f32 to vector<8x128xf32>
    %1830 = arith.mulf %180, %1829 : vector<8x128xf32>
    %1831 = arith.addf %1827, %1830 : vector<8x128xf32>
    %c436 = arith.constant 436 : index
    %1832 = memref.load %arg1[%c436] : memref<572xf32, #tpu.memory_space<smem>>
    %1833 = vector.broadcast %1832 : f32 to vector<8x128xf32>
    %1834 = arith.mulf %225, %1833 : vector<8x128xf32>
    %1835 = arith.addf %1831, %1834 : vector<8x128xf32>
    %c437 = arith.constant 437 : index
    %1836 = memref.load %arg1[%c437] : memref<572xf32, #tpu.memory_space<smem>>
    %1837 = vector.broadcast %1836 : f32 to vector<8x128xf32>
    %1838 = arith.mulf %270, %1837 : vector<8x128xf32>
    %1839 = arith.addf %1835, %1838 : vector<8x128xf32>
    %c438 = arith.constant 438 : index
    %1840 = memref.load %arg1[%c438] : memref<572xf32, #tpu.memory_space<smem>>
    %1841 = vector.broadcast %1840 : f32 to vector<8x128xf32>
    %1842 = arith.mulf %315, %1841 : vector<8x128xf32>
    %1843 = arith.addf %1839, %1842 : vector<8x128xf32>
    %c439 = arith.constant 439 : index
    %1844 = memref.load %arg1[%c439] : memref<572xf32, #tpu.memory_space<smem>>
    %1845 = vector.broadcast %1844 : f32 to vector<8x128xf32>
    %1846 = arith.mulf %360, %1845 : vector<8x128xf32>
    %1847 = arith.addf %1843, %1846 : vector<8x128xf32>
    %c440 = arith.constant 440 : index
    %1848 = memref.load %arg1[%c440] : memref<572xf32, #tpu.memory_space<smem>>
    %1849 = vector.broadcast %1848 : f32 to vector<8x128xf32>
    %1850 = arith.mulf %405, %1849 : vector<8x128xf32>
    %1851 = arith.addf %1847, %1850 : vector<8x128xf32>
    %c441 = arith.constant 441 : index
    %1852 = memref.load %arg1[%c441] : memref<572xf32, #tpu.memory_space<smem>>
    %1853 = vector.broadcast %1852 : f32 to vector<8x128xf32>
    %1854 = arith.mulf %450, %1853 : vector<8x128xf32>
    %1855 = arith.addf %1851, %1854 : vector<8x128xf32>
    %c442 = arith.constant 442 : index
    %1856 = memref.load %arg1[%c442] : memref<572xf32, #tpu.memory_space<smem>>
    %1857 = vector.broadcast %1856 : f32 to vector<8x128xf32>
    %1858 = arith.mulf %495, %1857 : vector<8x128xf32>
    %1859 = arith.addf %1855, %1858 : vector<8x128xf32>
    %c443 = arith.constant 443 : index
    %1860 = memref.load %arg1[%c443] : memref<572xf32, #tpu.memory_space<smem>>
    %1861 = vector.broadcast %1860 : f32 to vector<8x128xf32>
    %1862 = arith.mulf %540, %1861 : vector<8x128xf32>
    %1863 = arith.addf %1859, %1862 : vector<8x128xf32>
    %c444 = arith.constant 444 : index
    %1864 = memref.load %arg1[%c444] : memref<572xf32, #tpu.memory_space<smem>>
    %1865 = vector.broadcast %1864 : f32 to vector<8x128xf32>
    %1866 = arith.mulf %585, %1865 : vector<8x128xf32>
    %1867 = arith.addf %1863, %1866 : vector<8x128xf32>
    %c445 = arith.constant 445 : index
    %1868 = memref.load %arg1[%c445] : memref<572xf32, #tpu.memory_space<smem>>
    %1869 = vector.broadcast %1868 : f32 to vector<8x128xf32>
    %1870 = arith.mulf %630, %1869 : vector<8x128xf32>
    %1871 = arith.addf %1867, %1870 : vector<8x128xf32>
    %c446 = arith.constant 446 : index
    %1872 = memref.load %arg1[%c446] : memref<572xf32, #tpu.memory_space<smem>>
    %1873 = vector.broadcast %1872 : f32 to vector<8x128xf32>
    %1874 = arith.mulf %675, %1873 : vector<8x128xf32>
    %1875 = arith.addf %1871, %1874 : vector<8x128xf32>
    %c447 = arith.constant 447 : index
    %1876 = memref.load %arg1[%c447] : memref<572xf32, #tpu.memory_space<smem>>
    %1877 = vector.broadcast %1876 : f32 to vector<8x128xf32>
    %1878 = arith.mulf %720, %1877 : vector<8x128xf32>
    %1879 = arith.addf %1875, %1878 : vector<8x128xf32>
    %c448 = arith.constant 448 : index
    %1880 = memref.load %arg1[%c448] : memref<572xf32, #tpu.memory_space<smem>>
    %1881 = vector.broadcast %1880 : f32 to vector<8x128xf32>
    %1882 = arith.mulf %765, %1881 : vector<8x128xf32>
    %1883 = arith.addf %1879, %1882 : vector<8x128xf32>
    %c449 = arith.constant 449 : index
    %1884 = memref.load %arg1[%c449] : memref<572xf32, #tpu.memory_space<smem>>
    %1885 = vector.broadcast %1884 : f32 to vector<8x128xf32>
    %1886 = arith.mulf %810, %1885 : vector<8x128xf32>
    %1887 = arith.addf %1883, %1886 : vector<8x128xf32>
    %c450 = arith.constant 450 : index
    %1888 = memref.load %arg1[%c450] : memref<572xf32, #tpu.memory_space<smem>>
    %1889 = vector.broadcast %1888 : f32 to vector<8x128xf32>
    %1890 = arith.mulf %855, %1889 : vector<8x128xf32>
    %1891 = arith.addf %1887, %1890 : vector<8x128xf32>
    %c451 = arith.constant 451 : index
    %1892 = memref.load %arg1[%c451] : memref<572xf32, #tpu.memory_space<smem>>
    %1893 = vector.broadcast %1892 : f32 to vector<8x128xf32>
    %1894 = arith.mulf %900, %1893 : vector<8x128xf32>
    %1895 = arith.addf %1891, %1894 : vector<8x128xf32>
    %c500 = arith.constant 500 : index
    %1896 = memref.load %arg1[%c500] : memref<572xf32, #tpu.memory_space<smem>>
    %1897 = vector.broadcast %1896 : f32 to vector<8x128xf32>
    %1898 = arith.addf %1895, %1897 : vector<8x128xf32>
    %cst_41 = arith.constant 0.00999999977 : f32
    %1899 = vector.broadcast %cst_41 : f32 to vector<8x128xf32>
    %1900 = arith.mulf %1899, %1898 : vector<8x128xf32>
    %1901 = arith.maximumf %1898, %1900 : vector<8x128xf32>
    %c452 = arith.constant 452 : index
    %1902 = memref.load %arg1[%c452] : memref<572xf32, #tpu.memory_space<smem>>
    %1903 = vector.broadcast %1902 : f32 to vector<8x128xf32>
    %1904 = arith.mulf %135, %1903 : vector<8x128xf32>
    %c453 = arith.constant 453 : index
    %1905 = memref.load %arg1[%c453] : memref<572xf32, #tpu.memory_space<smem>>
    %1906 = vector.broadcast %1905 : f32 to vector<8x128xf32>
    %1907 = arith.mulf %180, %1906 : vector<8x128xf32>
    %1908 = arith.addf %1904, %1907 : vector<8x128xf32>
    %c454 = arith.constant 454 : index
    %1909 = memref.load %arg1[%c454] : memref<572xf32, #tpu.memory_space<smem>>
    %1910 = vector.broadcast %1909 : f32 to vector<8x128xf32>
    %1911 = arith.mulf %225, %1910 : vector<8x128xf32>
    %1912 = arith.addf %1908, %1911 : vector<8x128xf32>
    %c455 = arith.constant 455 : index
    %1913 = memref.load %arg1[%c455] : memref<572xf32, #tpu.memory_space<smem>>
    %1914 = vector.broadcast %1913 : f32 to vector<8x128xf32>
    %1915 = arith.mulf %270, %1914 : vector<8x128xf32>
    %1916 = arith.addf %1912, %1915 : vector<8x128xf32>
    %c456 = arith.constant 456 : index
    %1917 = memref.load %arg1[%c456] : memref<572xf32, #tpu.memory_space<smem>>
    %1918 = vector.broadcast %1917 : f32 to vector<8x128xf32>
    %1919 = arith.mulf %315, %1918 : vector<8x128xf32>
    %1920 = arith.addf %1916, %1919 : vector<8x128xf32>
    %c457 = arith.constant 457 : index
    %1921 = memref.load %arg1[%c457] : memref<572xf32, #tpu.memory_space<smem>>
    %1922 = vector.broadcast %1921 : f32 to vector<8x128xf32>
    %1923 = arith.mulf %360, %1922 : vector<8x128xf32>
    %1924 = arith.addf %1920, %1923 : vector<8x128xf32>
    %c458 = arith.constant 458 : index
    %1925 = memref.load %arg1[%c458] : memref<572xf32, #tpu.memory_space<smem>>
    %1926 = vector.broadcast %1925 : f32 to vector<8x128xf32>
    %1927 = arith.mulf %405, %1926 : vector<8x128xf32>
    %1928 = arith.addf %1924, %1927 : vector<8x128xf32>
    %c459 = arith.constant 459 : index
    %1929 = memref.load %arg1[%c459] : memref<572xf32, #tpu.memory_space<smem>>
    %1930 = vector.broadcast %1929 : f32 to vector<8x128xf32>
    %1931 = arith.mulf %450, %1930 : vector<8x128xf32>
    %1932 = arith.addf %1928, %1931 : vector<8x128xf32>
    %c460 = arith.constant 460 : index
    %1933 = memref.load %arg1[%c460] : memref<572xf32, #tpu.memory_space<smem>>
    %1934 = vector.broadcast %1933 : f32 to vector<8x128xf32>
    %1935 = arith.mulf %495, %1934 : vector<8x128xf32>
    %1936 = arith.addf %1932, %1935 : vector<8x128xf32>
    %c461 = arith.constant 461 : index
    %1937 = memref.load %arg1[%c461] : memref<572xf32, #tpu.memory_space<smem>>
    %1938 = vector.broadcast %1937 : f32 to vector<8x128xf32>
    %1939 = arith.mulf %540, %1938 : vector<8x128xf32>
    %1940 = arith.addf %1936, %1939 : vector<8x128xf32>
    %c462 = arith.constant 462 : index
    %1941 = memref.load %arg1[%c462] : memref<572xf32, #tpu.memory_space<smem>>
    %1942 = vector.broadcast %1941 : f32 to vector<8x128xf32>
    %1943 = arith.mulf %585, %1942 : vector<8x128xf32>
    %1944 = arith.addf %1940, %1943 : vector<8x128xf32>
    %c463 = arith.constant 463 : index
    %1945 = memref.load %arg1[%c463] : memref<572xf32, #tpu.memory_space<smem>>
    %1946 = vector.broadcast %1945 : f32 to vector<8x128xf32>
    %1947 = arith.mulf %630, %1946 : vector<8x128xf32>
    %1948 = arith.addf %1944, %1947 : vector<8x128xf32>
    %c464 = arith.constant 464 : index
    %1949 = memref.load %arg1[%c464] : memref<572xf32, #tpu.memory_space<smem>>
    %1950 = vector.broadcast %1949 : f32 to vector<8x128xf32>
    %1951 = arith.mulf %675, %1950 : vector<8x128xf32>
    %1952 = arith.addf %1948, %1951 : vector<8x128xf32>
    %c465 = arith.constant 465 : index
    %1953 = memref.load %arg1[%c465] : memref<572xf32, #tpu.memory_space<smem>>
    %1954 = vector.broadcast %1953 : f32 to vector<8x128xf32>
    %1955 = arith.mulf %720, %1954 : vector<8x128xf32>
    %1956 = arith.addf %1952, %1955 : vector<8x128xf32>
    %c466 = arith.constant 466 : index
    %1957 = memref.load %arg1[%c466] : memref<572xf32, #tpu.memory_space<smem>>
    %1958 = vector.broadcast %1957 : f32 to vector<8x128xf32>
    %1959 = arith.mulf %765, %1958 : vector<8x128xf32>
    %1960 = arith.addf %1956, %1959 : vector<8x128xf32>
    %c467 = arith.constant 467 : index
    %1961 = memref.load %arg1[%c467] : memref<572xf32, #tpu.memory_space<smem>>
    %1962 = vector.broadcast %1961 : f32 to vector<8x128xf32>
    %1963 = arith.mulf %810, %1962 : vector<8x128xf32>
    %1964 = arith.addf %1960, %1963 : vector<8x128xf32>
    %c468 = arith.constant 468 : index
    %1965 = memref.load %arg1[%c468] : memref<572xf32, #tpu.memory_space<smem>>
    %1966 = vector.broadcast %1965 : f32 to vector<8x128xf32>
    %1967 = arith.mulf %855, %1966 : vector<8x128xf32>
    %1968 = arith.addf %1964, %1967 : vector<8x128xf32>
    %c469 = arith.constant 469 : index
    %1969 = memref.load %arg1[%c469] : memref<572xf32, #tpu.memory_space<smem>>
    %1970 = vector.broadcast %1969 : f32 to vector<8x128xf32>
    %1971 = arith.mulf %900, %1970 : vector<8x128xf32>
    %1972 = arith.addf %1968, %1971 : vector<8x128xf32>
    %c501 = arith.constant 501 : index
    %1973 = memref.load %arg1[%c501] : memref<572xf32, #tpu.memory_space<smem>>
    %1974 = vector.broadcast %1973 : f32 to vector<8x128xf32>
    %1975 = arith.addf %1972, %1974 : vector<8x128xf32>
    %cst_42 = arith.constant 0.00999999977 : f32
    %1976 = vector.broadcast %cst_42 : f32 to vector<8x128xf32>
    %1977 = arith.mulf %1976, %1975 : vector<8x128xf32>
    %1978 = arith.maximumf %1975, %1977 : vector<8x128xf32>
    %c470 = arith.constant 470 : index
    %1979 = memref.load %arg1[%c470] : memref<572xf32, #tpu.memory_space<smem>>
    %1980 = vector.broadcast %1979 : f32 to vector<8x128xf32>
    %1981 = arith.mulf %135, %1980 : vector<8x128xf32>
    %c471 = arith.constant 471 : index
    %1982 = memref.load %arg1[%c471] : memref<572xf32, #tpu.memory_space<smem>>
    %1983 = vector.broadcast %1982 : f32 to vector<8x128xf32>
    %1984 = arith.mulf %180, %1983 : vector<8x128xf32>
    %1985 = arith.addf %1981, %1984 : vector<8x128xf32>
    %c472 = arith.constant 472 : index
    %1986 = memref.load %arg1[%c472] : memref<572xf32, #tpu.memory_space<smem>>
    %1987 = vector.broadcast %1986 : f32 to vector<8x128xf32>
    %1988 = arith.mulf %225, %1987 : vector<8x128xf32>
    %1989 = arith.addf %1985, %1988 : vector<8x128xf32>
    %c473 = arith.constant 473 : index
    %1990 = memref.load %arg1[%c473] : memref<572xf32, #tpu.memory_space<smem>>
    %1991 = vector.broadcast %1990 : f32 to vector<8x128xf32>
    %1992 = arith.mulf %270, %1991 : vector<8x128xf32>
    %1993 = arith.addf %1989, %1992 : vector<8x128xf32>
    %c474 = arith.constant 474 : index
    %1994 = memref.load %arg1[%c474] : memref<572xf32, #tpu.memory_space<smem>>
    %1995 = vector.broadcast %1994 : f32 to vector<8x128xf32>
    %1996 = arith.mulf %315, %1995 : vector<8x128xf32>
    %1997 = arith.addf %1993, %1996 : vector<8x128xf32>
    %c475 = arith.constant 475 : index
    %1998 = memref.load %arg1[%c475] : memref<572xf32, #tpu.memory_space<smem>>
    %1999 = vector.broadcast %1998 : f32 to vector<8x128xf32>
    %2000 = arith.mulf %360, %1999 : vector<8x128xf32>
    %2001 = arith.addf %1997, %2000 : vector<8x128xf32>
    %c476 = arith.constant 476 : index
    %2002 = memref.load %arg1[%c476] : memref<572xf32, #tpu.memory_space<smem>>
    %2003 = vector.broadcast %2002 : f32 to vector<8x128xf32>
    %2004 = arith.mulf %405, %2003 : vector<8x128xf32>
    %2005 = arith.addf %2001, %2004 : vector<8x128xf32>
    %c477 = arith.constant 477 : index
    %2006 = memref.load %arg1[%c477] : memref<572xf32, #tpu.memory_space<smem>>
    %2007 = vector.broadcast %2006 : f32 to vector<8x128xf32>
    %2008 = arith.mulf %450, %2007 : vector<8x128xf32>
    %2009 = arith.addf %2005, %2008 : vector<8x128xf32>
    %c478 = arith.constant 478 : index
    %2010 = memref.load %arg1[%c478] : memref<572xf32, #tpu.memory_space<smem>>
    %2011 = vector.broadcast %2010 : f32 to vector<8x128xf32>
    %2012 = arith.mulf %495, %2011 : vector<8x128xf32>
    %2013 = arith.addf %2009, %2012 : vector<8x128xf32>
    %c479 = arith.constant 479 : index
    %2014 = memref.load %arg1[%c479] : memref<572xf32, #tpu.memory_space<smem>>
    %2015 = vector.broadcast %2014 : f32 to vector<8x128xf32>
    %2016 = arith.mulf %540, %2015 : vector<8x128xf32>
    %2017 = arith.addf %2013, %2016 : vector<8x128xf32>
    %c480 = arith.constant 480 : index
    %2018 = memref.load %arg1[%c480] : memref<572xf32, #tpu.memory_space<smem>>
    %2019 = vector.broadcast %2018 : f32 to vector<8x128xf32>
    %2020 = arith.mulf %585, %2019 : vector<8x128xf32>
    %2021 = arith.addf %2017, %2020 : vector<8x128xf32>
    %c481 = arith.constant 481 : index
    %2022 = memref.load %arg1[%c481] : memref<572xf32, #tpu.memory_space<smem>>
    %2023 = vector.broadcast %2022 : f32 to vector<8x128xf32>
    %2024 = arith.mulf %630, %2023 : vector<8x128xf32>
    %2025 = arith.addf %2021, %2024 : vector<8x128xf32>
    %c482 = arith.constant 482 : index
    %2026 = memref.load %arg1[%c482] : memref<572xf32, #tpu.memory_space<smem>>
    %2027 = vector.broadcast %2026 : f32 to vector<8x128xf32>
    %2028 = arith.mulf %675, %2027 : vector<8x128xf32>
    %2029 = arith.addf %2025, %2028 : vector<8x128xf32>
    %c483 = arith.constant 483 : index
    %2030 = memref.load %arg1[%c483] : memref<572xf32, #tpu.memory_space<smem>>
    %2031 = vector.broadcast %2030 : f32 to vector<8x128xf32>
    %2032 = arith.mulf %720, %2031 : vector<8x128xf32>
    %2033 = arith.addf %2029, %2032 : vector<8x128xf32>
    %c484 = arith.constant 484 : index
    %2034 = memref.load %arg1[%c484] : memref<572xf32, #tpu.memory_space<smem>>
    %2035 = vector.broadcast %2034 : f32 to vector<8x128xf32>
    %2036 = arith.mulf %765, %2035 : vector<8x128xf32>
    %2037 = arith.addf %2033, %2036 : vector<8x128xf32>
    %c485 = arith.constant 485 : index
    %2038 = memref.load %arg1[%c485] : memref<572xf32, #tpu.memory_space<smem>>
    %2039 = vector.broadcast %2038 : f32 to vector<8x128xf32>
    %2040 = arith.mulf %810, %2039 : vector<8x128xf32>
    %2041 = arith.addf %2037, %2040 : vector<8x128xf32>
    %c486 = arith.constant 486 : index
    %2042 = memref.load %arg1[%c486] : memref<572xf32, #tpu.memory_space<smem>>
    %2043 = vector.broadcast %2042 : f32 to vector<8x128xf32>
    %2044 = arith.mulf %855, %2043 : vector<8x128xf32>
    %2045 = arith.addf %2041, %2044 : vector<8x128xf32>
    %c487 = arith.constant 487 : index
    %2046 = memref.load %arg1[%c487] : memref<572xf32, #tpu.memory_space<smem>>
    %2047 = vector.broadcast %2046 : f32 to vector<8x128xf32>
    %2048 = arith.mulf %900, %2047 : vector<8x128xf32>
    %2049 = arith.addf %2045, %2048 : vector<8x128xf32>
    %c502 = arith.constant 502 : index
    %2050 = memref.load %arg1[%c502] : memref<572xf32, #tpu.memory_space<smem>>
    %2051 = vector.broadcast %2050 : f32 to vector<8x128xf32>
    %2052 = arith.addf %2049, %2051 : vector<8x128xf32>
    %cst_43 = arith.constant 0.00999999977 : f32
    %2053 = vector.broadcast %cst_43 : f32 to vector<8x128xf32>
    %2054 = arith.mulf %2053, %2052 : vector<8x128xf32>
    %2055 = arith.maximumf %2052, %2054 : vector<8x128xf32>
    %c503 = arith.constant 503 : index
    %2056 = memref.load %arg1[%c503] : memref<572xf32, #tpu.memory_space<smem>>
    %2057 = vector.broadcast %2056 : f32 to vector<8x128xf32>
    %2058 = arith.mulf %977, %2057 : vector<8x128xf32>
    %c504 = arith.constant 504 : index
    %2059 = memref.load %arg1[%c504] : memref<572xf32, #tpu.memory_space<smem>>
    %2060 = vector.broadcast %2059 : f32 to vector<8x128xf32>
    %2061 = arith.mulf %1054, %2060 : vector<8x128xf32>
    %2062 = arith.addf %2058, %2061 : vector<8x128xf32>
    %c505 = arith.constant 505 : index
    %2063 = memref.load %arg1[%c505] : memref<572xf32, #tpu.memory_space<smem>>
    %2064 = vector.broadcast %2063 : f32 to vector<8x128xf32>
    %2065 = arith.mulf %1131, %2064 : vector<8x128xf32>
    %2066 = arith.addf %2062, %2065 : vector<8x128xf32>
    %c506 = arith.constant 506 : index
    %2067 = memref.load %arg1[%c506] : memref<572xf32, #tpu.memory_space<smem>>
    %2068 = vector.broadcast %2067 : f32 to vector<8x128xf32>
    %2069 = arith.mulf %1208, %2068 : vector<8x128xf32>
    %2070 = arith.addf %2066, %2069 : vector<8x128xf32>
    %c507 = arith.constant 507 : index
    %2071 = memref.load %arg1[%c507] : memref<572xf32, #tpu.memory_space<smem>>
    %2072 = vector.broadcast %2071 : f32 to vector<8x128xf32>
    %2073 = arith.mulf %1285, %2072 : vector<8x128xf32>
    %2074 = arith.addf %2070, %2073 : vector<8x128xf32>
    %c508 = arith.constant 508 : index
    %2075 = memref.load %arg1[%c508] : memref<572xf32, #tpu.memory_space<smem>>
    %2076 = vector.broadcast %2075 : f32 to vector<8x128xf32>
    %2077 = arith.mulf %1362, %2076 : vector<8x128xf32>
    %2078 = arith.addf %2074, %2077 : vector<8x128xf32>
    %c509 = arith.constant 509 : index
    %2079 = memref.load %arg1[%c509] : memref<572xf32, #tpu.memory_space<smem>>
    %2080 = vector.broadcast %2079 : f32 to vector<8x128xf32>
    %2081 = arith.mulf %1439, %2080 : vector<8x128xf32>
    %2082 = arith.addf %2078, %2081 : vector<8x128xf32>
    %c510 = arith.constant 510 : index
    %2083 = memref.load %arg1[%c510] : memref<572xf32, #tpu.memory_space<smem>>
    %2084 = vector.broadcast %2083 : f32 to vector<8x128xf32>
    %2085 = arith.mulf %1516, %2084 : vector<8x128xf32>
    %2086 = arith.addf %2082, %2085 : vector<8x128xf32>
    %c511 = arith.constant 511 : index
    %2087 = memref.load %arg1[%c511] : memref<572xf32, #tpu.memory_space<smem>>
    %2088 = vector.broadcast %2087 : f32 to vector<8x128xf32>
    %2089 = arith.mulf %1593, %2088 : vector<8x128xf32>
    %2090 = arith.addf %2086, %2089 : vector<8x128xf32>
    %c512 = arith.constant 512 : index
    %2091 = memref.load %arg1[%c512] : memref<572xf32, #tpu.memory_space<smem>>
    %2092 = vector.broadcast %2091 : f32 to vector<8x128xf32>
    %2093 = arith.mulf %1670, %2092 : vector<8x128xf32>
    %2094 = arith.addf %2090, %2093 : vector<8x128xf32>
    %c513 = arith.constant 513 : index
    %2095 = memref.load %arg1[%c513] : memref<572xf32, #tpu.memory_space<smem>>
    %2096 = vector.broadcast %2095 : f32 to vector<8x128xf32>
    %2097 = arith.mulf %1747, %2096 : vector<8x128xf32>
    %2098 = arith.addf %2094, %2097 : vector<8x128xf32>
    %c514 = arith.constant 514 : index
    %2099 = memref.load %arg1[%c514] : memref<572xf32, #tpu.memory_space<smem>>
    %2100 = vector.broadcast %2099 : f32 to vector<8x128xf32>
    %2101 = arith.mulf %1824, %2100 : vector<8x128xf32>
    %2102 = arith.addf %2098, %2101 : vector<8x128xf32>
    %c515 = arith.constant 515 : index
    %2103 = memref.load %arg1[%c515] : memref<572xf32, #tpu.memory_space<smem>>
    %2104 = vector.broadcast %2103 : f32 to vector<8x128xf32>
    %2105 = arith.mulf %1901, %2104 : vector<8x128xf32>
    %2106 = arith.addf %2102, %2105 : vector<8x128xf32>
    %c516 = arith.constant 516 : index
    %2107 = memref.load %arg1[%c516] : memref<572xf32, #tpu.memory_space<smem>>
    %2108 = vector.broadcast %2107 : f32 to vector<8x128xf32>
    %2109 = arith.mulf %1978, %2108 : vector<8x128xf32>
    %2110 = arith.addf %2106, %2109 : vector<8x128xf32>
    %c517 = arith.constant 517 : index
    %2111 = memref.load %arg1[%c517] : memref<572xf32, #tpu.memory_space<smem>>
    %2112 = vector.broadcast %2111 : f32 to vector<8x128xf32>
    %2113 = arith.mulf %2055, %2112 : vector<8x128xf32>
    %2114 = arith.addf %2110, %2113 : vector<8x128xf32>
    %c563 = arith.constant 563 : index
    %2115 = memref.load %arg1[%c563] : memref<572xf32, #tpu.memory_space<smem>>
    %2116 = vector.broadcast %2115 : f32 to vector<8x128xf32>
    %2117 = arith.addf %2114, %2116 : vector<8x128xf32>
    %cst_44 = arith.constant 0.00999999977 : f32
    %2118 = vector.broadcast %cst_44 : f32 to vector<8x128xf32>
    %2119 = arith.mulf %2118, %2117 : vector<8x128xf32>
    %2120 = arith.maximumf %2117, %2119 : vector<8x128xf32>
    %c518 = arith.constant 518 : index
    %2121 = memref.load %arg1[%c518] : memref<572xf32, #tpu.memory_space<smem>>
    %2122 = vector.broadcast %2121 : f32 to vector<8x128xf32>
    %2123 = arith.mulf %977, %2122 : vector<8x128xf32>
    %c519 = arith.constant 519 : index
    %2124 = memref.load %arg1[%c519] : memref<572xf32, #tpu.memory_space<smem>>
    %2125 = vector.broadcast %2124 : f32 to vector<8x128xf32>
    %2126 = arith.mulf %1054, %2125 : vector<8x128xf32>
    %2127 = arith.addf %2123, %2126 : vector<8x128xf32>
    %c520 = arith.constant 520 : index
    %2128 = memref.load %arg1[%c520] : memref<572xf32, #tpu.memory_space<smem>>
    %2129 = vector.broadcast %2128 : f32 to vector<8x128xf32>
    %2130 = arith.mulf %1131, %2129 : vector<8x128xf32>
    %2131 = arith.addf %2127, %2130 : vector<8x128xf32>
    %c521 = arith.constant 521 : index
    %2132 = memref.load %arg1[%c521] : memref<572xf32, #tpu.memory_space<smem>>
    %2133 = vector.broadcast %2132 : f32 to vector<8x128xf32>
    %2134 = arith.mulf %1208, %2133 : vector<8x128xf32>
    %2135 = arith.addf %2131, %2134 : vector<8x128xf32>
    %c522 = arith.constant 522 : index
    %2136 = memref.load %arg1[%c522] : memref<572xf32, #tpu.memory_space<smem>>
    %2137 = vector.broadcast %2136 : f32 to vector<8x128xf32>
    %2138 = arith.mulf %1285, %2137 : vector<8x128xf32>
    %2139 = arith.addf %2135, %2138 : vector<8x128xf32>
    %c523 = arith.constant 523 : index
    %2140 = memref.load %arg1[%c523] : memref<572xf32, #tpu.memory_space<smem>>
    %2141 = vector.broadcast %2140 : f32 to vector<8x128xf32>
    %2142 = arith.mulf %1362, %2141 : vector<8x128xf32>
    %2143 = arith.addf %2139, %2142 : vector<8x128xf32>
    %c524 = arith.constant 524 : index
    %2144 = memref.load %arg1[%c524] : memref<572xf32, #tpu.memory_space<smem>>
    %2145 = vector.broadcast %2144 : f32 to vector<8x128xf32>
    %2146 = arith.mulf %1439, %2145 : vector<8x128xf32>
    %2147 = arith.addf %2143, %2146 : vector<8x128xf32>
    %c525 = arith.constant 525 : index
    %2148 = memref.load %arg1[%c525] : memref<572xf32, #tpu.memory_space<smem>>
    %2149 = vector.broadcast %2148 : f32 to vector<8x128xf32>
    %2150 = arith.mulf %1516, %2149 : vector<8x128xf32>
    %2151 = arith.addf %2147, %2150 : vector<8x128xf32>
    %c526 = arith.constant 526 : index
    %2152 = memref.load %arg1[%c526] : memref<572xf32, #tpu.memory_space<smem>>
    %2153 = vector.broadcast %2152 : f32 to vector<8x128xf32>
    %2154 = arith.mulf %1593, %2153 : vector<8x128xf32>
    %2155 = arith.addf %2151, %2154 : vector<8x128xf32>
    %c527 = arith.constant 527 : index
    %2156 = memref.load %arg1[%c527] : memref<572xf32, #tpu.memory_space<smem>>
    %2157 = vector.broadcast %2156 : f32 to vector<8x128xf32>
    %2158 = arith.mulf %1670, %2157 : vector<8x128xf32>
    %2159 = arith.addf %2155, %2158 : vector<8x128xf32>
    %c528 = arith.constant 528 : index
    %2160 = memref.load %arg1[%c528] : memref<572xf32, #tpu.memory_space<smem>>
    %2161 = vector.broadcast %2160 : f32 to vector<8x128xf32>
    %2162 = arith.mulf %1747, %2161 : vector<8x128xf32>
    %2163 = arith.addf %2159, %2162 : vector<8x128xf32>
    %c529 = arith.constant 529 : index
    %2164 = memref.load %arg1[%c529] : memref<572xf32, #tpu.memory_space<smem>>
    %2165 = vector.broadcast %2164 : f32 to vector<8x128xf32>
    %2166 = arith.mulf %1824, %2165 : vector<8x128xf32>
    %2167 = arith.addf %2163, %2166 : vector<8x128xf32>
    %c530 = arith.constant 530 : index
    %2168 = memref.load %arg1[%c530] : memref<572xf32, #tpu.memory_space<smem>>
    %2169 = vector.broadcast %2168 : f32 to vector<8x128xf32>
    %2170 = arith.mulf %1901, %2169 : vector<8x128xf32>
    %2171 = arith.addf %2167, %2170 : vector<8x128xf32>
    %c531 = arith.constant 531 : index
    %2172 = memref.load %arg1[%c531] : memref<572xf32, #tpu.memory_space<smem>>
    %2173 = vector.broadcast %2172 : f32 to vector<8x128xf32>
    %2174 = arith.mulf %1978, %2173 : vector<8x128xf32>
    %2175 = arith.addf %2171, %2174 : vector<8x128xf32>
    %c532 = arith.constant 532 : index
    %2176 = memref.load %arg1[%c532] : memref<572xf32, #tpu.memory_space<smem>>
    %2177 = vector.broadcast %2176 : f32 to vector<8x128xf32>
    %2178 = arith.mulf %2055, %2177 : vector<8x128xf32>
    %2179 = arith.addf %2175, %2178 : vector<8x128xf32>
    %c564 = arith.constant 564 : index
    %2180 = memref.load %arg1[%c564] : memref<572xf32, #tpu.memory_space<smem>>
    %2181 = vector.broadcast %2180 : f32 to vector<8x128xf32>
    %2182 = arith.addf %2179, %2181 : vector<8x128xf32>
    %cst_45 = arith.constant 0.00999999977 : f32
    %2183 = vector.broadcast %cst_45 : f32 to vector<8x128xf32>
    %2184 = arith.mulf %2183, %2182 : vector<8x128xf32>
    %2185 = arith.maximumf %2182, %2184 : vector<8x128xf32>
    %c533 = arith.constant 533 : index
    %2186 = memref.load %arg1[%c533] : memref<572xf32, #tpu.memory_space<smem>>
    %2187 = vector.broadcast %2186 : f32 to vector<8x128xf32>
    %2188 = arith.mulf %977, %2187 : vector<8x128xf32>
    %c534 = arith.constant 534 : index
    %2189 = memref.load %arg1[%c534] : memref<572xf32, #tpu.memory_space<smem>>
    %2190 = vector.broadcast %2189 : f32 to vector<8x128xf32>
    %2191 = arith.mulf %1054, %2190 : vector<8x128xf32>
    %2192 = arith.addf %2188, %2191 : vector<8x128xf32>
    %c535 = arith.constant 535 : index
    %2193 = memref.load %arg1[%c535] : memref<572xf32, #tpu.memory_space<smem>>
    %2194 = vector.broadcast %2193 : f32 to vector<8x128xf32>
    %2195 = arith.mulf %1131, %2194 : vector<8x128xf32>
    %2196 = arith.addf %2192, %2195 : vector<8x128xf32>
    %c536 = arith.constant 536 : index
    %2197 = memref.load %arg1[%c536] : memref<572xf32, #tpu.memory_space<smem>>
    %2198 = vector.broadcast %2197 : f32 to vector<8x128xf32>
    %2199 = arith.mulf %1208, %2198 : vector<8x128xf32>
    %2200 = arith.addf %2196, %2199 : vector<8x128xf32>
    %c537 = arith.constant 537 : index
    %2201 = memref.load %arg1[%c537] : memref<572xf32, #tpu.memory_space<smem>>
    %2202 = vector.broadcast %2201 : f32 to vector<8x128xf32>
    %2203 = arith.mulf %1285, %2202 : vector<8x128xf32>
    %2204 = arith.addf %2200, %2203 : vector<8x128xf32>
    %c538 = arith.constant 538 : index
    %2205 = memref.load %arg1[%c538] : memref<572xf32, #tpu.memory_space<smem>>
    %2206 = vector.broadcast %2205 : f32 to vector<8x128xf32>
    %2207 = arith.mulf %1362, %2206 : vector<8x128xf32>
    %2208 = arith.addf %2204, %2207 : vector<8x128xf32>
    %c539 = arith.constant 539 : index
    %2209 = memref.load %arg1[%c539] : memref<572xf32, #tpu.memory_space<smem>>
    %2210 = vector.broadcast %2209 : f32 to vector<8x128xf32>
    %2211 = arith.mulf %1439, %2210 : vector<8x128xf32>
    %2212 = arith.addf %2208, %2211 : vector<8x128xf32>
    %c540 = arith.constant 540 : index
    %2213 = memref.load %arg1[%c540] : memref<572xf32, #tpu.memory_space<smem>>
    %2214 = vector.broadcast %2213 : f32 to vector<8x128xf32>
    %2215 = arith.mulf %1516, %2214 : vector<8x128xf32>
    %2216 = arith.addf %2212, %2215 : vector<8x128xf32>
    %c541 = arith.constant 541 : index
    %2217 = memref.load %arg1[%c541] : memref<572xf32, #tpu.memory_space<smem>>
    %2218 = vector.broadcast %2217 : f32 to vector<8x128xf32>
    %2219 = arith.mulf %1593, %2218 : vector<8x128xf32>
    %2220 = arith.addf %2216, %2219 : vector<8x128xf32>
    %c542 = arith.constant 542 : index
    %2221 = memref.load %arg1[%c542] : memref<572xf32, #tpu.memory_space<smem>>
    %2222 = vector.broadcast %2221 : f32 to vector<8x128xf32>
    %2223 = arith.mulf %1670, %2222 : vector<8x128xf32>
    %2224 = arith.addf %2220, %2223 : vector<8x128xf32>
    %c543 = arith.constant 543 : index
    %2225 = memref.load %arg1[%c543] : memref<572xf32, #tpu.memory_space<smem>>
    %2226 = vector.broadcast %2225 : f32 to vector<8x128xf32>
    %2227 = arith.mulf %1747, %2226 : vector<8x128xf32>
    %2228 = arith.addf %2224, %2227 : vector<8x128xf32>
    %c544 = arith.constant 544 : index
    %2229 = memref.load %arg1[%c544] : memref<572xf32, #tpu.memory_space<smem>>
    %2230 = vector.broadcast %2229 : f32 to vector<8x128xf32>
    %2231 = arith.mulf %1824, %2230 : vector<8x128xf32>
    %2232 = arith.addf %2228, %2231 : vector<8x128xf32>
    %c545 = arith.constant 545 : index
    %2233 = memref.load %arg1[%c545] : memref<572xf32, #tpu.memory_space<smem>>
    %2234 = vector.broadcast %2233 : f32 to vector<8x128xf32>
    %2235 = arith.mulf %1901, %2234 : vector<8x128xf32>
    %2236 = arith.addf %2232, %2235 : vector<8x128xf32>
    %c546 = arith.constant 546 : index
    %2237 = memref.load %arg1[%c546] : memref<572xf32, #tpu.memory_space<smem>>
    %2238 = vector.broadcast %2237 : f32 to vector<8x128xf32>
    %2239 = arith.mulf %1978, %2238 : vector<8x128xf32>
    %2240 = arith.addf %2236, %2239 : vector<8x128xf32>
    %c547 = arith.constant 547 : index
    %2241 = memref.load %arg1[%c547] : memref<572xf32, #tpu.memory_space<smem>>
    %2242 = vector.broadcast %2241 : f32 to vector<8x128xf32>
    %2243 = arith.mulf %2055, %2242 : vector<8x128xf32>
    %2244 = arith.addf %2240, %2243 : vector<8x128xf32>
    %c565 = arith.constant 565 : index
    %2245 = memref.load %arg1[%c565] : memref<572xf32, #tpu.memory_space<smem>>
    %2246 = vector.broadcast %2245 : f32 to vector<8x128xf32>
    %2247 = arith.addf %2244, %2246 : vector<8x128xf32>
    %cst_46 = arith.constant 0.00999999977 : f32
    %2248 = vector.broadcast %cst_46 : f32 to vector<8x128xf32>
    %2249 = arith.mulf %2248, %2247 : vector<8x128xf32>
    %2250 = arith.maximumf %2247, %2249 : vector<8x128xf32>
    %c548 = arith.constant 548 : index
    %2251 = memref.load %arg1[%c548] : memref<572xf32, #tpu.memory_space<smem>>
    %2252 = vector.broadcast %2251 : f32 to vector<8x128xf32>
    %2253 = arith.mulf %977, %2252 : vector<8x128xf32>
    %c549 = arith.constant 549 : index
    %2254 = memref.load %arg1[%c549] : memref<572xf32, #tpu.memory_space<smem>>
    %2255 = vector.broadcast %2254 : f32 to vector<8x128xf32>
    %2256 = arith.mulf %1054, %2255 : vector<8x128xf32>
    %2257 = arith.addf %2253, %2256 : vector<8x128xf32>
    %c550 = arith.constant 550 : index
    %2258 = memref.load %arg1[%c550] : memref<572xf32, #tpu.memory_space<smem>>
    %2259 = vector.broadcast %2258 : f32 to vector<8x128xf32>
    %2260 = arith.mulf %1131, %2259 : vector<8x128xf32>
    %2261 = arith.addf %2257, %2260 : vector<8x128xf32>
    %c551 = arith.constant 551 : index
    %2262 = memref.load %arg1[%c551] : memref<572xf32, #tpu.memory_space<smem>>
    %2263 = vector.broadcast %2262 : f32 to vector<8x128xf32>
    %2264 = arith.mulf %1208, %2263 : vector<8x128xf32>
    %2265 = arith.addf %2261, %2264 : vector<8x128xf32>
    %c552 = arith.constant 552 : index
    %2266 = memref.load %arg1[%c552] : memref<572xf32, #tpu.memory_space<smem>>
    %2267 = vector.broadcast %2266 : f32 to vector<8x128xf32>
    %2268 = arith.mulf %1285, %2267 : vector<8x128xf32>
    %2269 = arith.addf %2265, %2268 : vector<8x128xf32>
    %c553 = arith.constant 553 : index
    %2270 = memref.load %arg1[%c553] : memref<572xf32, #tpu.memory_space<smem>>
    %2271 = vector.broadcast %2270 : f32 to vector<8x128xf32>
    %2272 = arith.mulf %1362, %2271 : vector<8x128xf32>
    %2273 = arith.addf %2269, %2272 : vector<8x128xf32>
    %c554 = arith.constant 554 : index
    %2274 = memref.load %arg1[%c554] : memref<572xf32, #tpu.memory_space<smem>>
    %2275 = vector.broadcast %2274 : f32 to vector<8x128xf32>
    %2276 = arith.mulf %1439, %2275 : vector<8x128xf32>
    %2277 = arith.addf %2273, %2276 : vector<8x128xf32>
    %c555 = arith.constant 555 : index
    %2278 = memref.load %arg1[%c555] : memref<572xf32, #tpu.memory_space<smem>>
    %2279 = vector.broadcast %2278 : f32 to vector<8x128xf32>
    %2280 = arith.mulf %1516, %2279 : vector<8x128xf32>
    %2281 = arith.addf %2277, %2280 : vector<8x128xf32>
    %c556 = arith.constant 556 : index
    %2282 = memref.load %arg1[%c556] : memref<572xf32, #tpu.memory_space<smem>>
    %2283 = vector.broadcast %2282 : f32 to vector<8x128xf32>
    %2284 = arith.mulf %1593, %2283 : vector<8x128xf32>
    %2285 = arith.addf %2281, %2284 : vector<8x128xf32>
    %c557 = arith.constant 557 : index
    %2286 = memref.load %arg1[%c557] : memref<572xf32, #tpu.memory_space<smem>>
    %2287 = vector.broadcast %2286 : f32 to vector<8x128xf32>
    %2288 = arith.mulf %1670, %2287 : vector<8x128xf32>
    %2289 = arith.addf %2285, %2288 : vector<8x128xf32>
    %c558 = arith.constant 558 : index
    %2290 = memref.load %arg1[%c558] : memref<572xf32, #tpu.memory_space<smem>>
    %2291 = vector.broadcast %2290 : f32 to vector<8x128xf32>
    %2292 = arith.mulf %1747, %2291 : vector<8x128xf32>
    %2293 = arith.addf %2289, %2292 : vector<8x128xf32>
    %c559 = arith.constant 559 : index
    %2294 = memref.load %arg1[%c559] : memref<572xf32, #tpu.memory_space<smem>>
    %2295 = vector.broadcast %2294 : f32 to vector<8x128xf32>
    %2296 = arith.mulf %1824, %2295 : vector<8x128xf32>
    %2297 = arith.addf %2293, %2296 : vector<8x128xf32>
    %c560 = arith.constant 560 : index
    %2298 = memref.load %arg1[%c560] : memref<572xf32, #tpu.memory_space<smem>>
    %2299 = vector.broadcast %2298 : f32 to vector<8x128xf32>
    %2300 = arith.mulf %1901, %2299 : vector<8x128xf32>
    %2301 = arith.addf %2297, %2300 : vector<8x128xf32>
    %c561 = arith.constant 561 : index
    %2302 = memref.load %arg1[%c561] : memref<572xf32, #tpu.memory_space<smem>>
    %2303 = vector.broadcast %2302 : f32 to vector<8x128xf32>
    %2304 = arith.mulf %1978, %2303 : vector<8x128xf32>
    %2305 = arith.addf %2301, %2304 : vector<8x128xf32>
    %c562 = arith.constant 562 : index
    %2306 = memref.load %arg1[%c562] : memref<572xf32, #tpu.memory_space<smem>>
    %2307 = vector.broadcast %2306 : f32 to vector<8x128xf32>
    %2308 = arith.mulf %2055, %2307 : vector<8x128xf32>
    %2309 = arith.addf %2305, %2308 : vector<8x128xf32>
    %c566 = arith.constant 566 : index
    %2310 = memref.load %arg1[%c566] : memref<572xf32, #tpu.memory_space<smem>>
    %2311 = vector.broadcast %2310 : f32 to vector<8x128xf32>
    %2312 = arith.addf %2309, %2311 : vector<8x128xf32>
    %cst_47 = arith.constant 0.00999999977 : f32
    %2313 = vector.broadcast %cst_47 : f32 to vector<8x128xf32>
    %2314 = arith.mulf %2313, %2312 : vector<8x128xf32>
    %2315 = arith.maximumf %2312, %2314 : vector<8x128xf32>
    %c567 = arith.constant 567 : index
    %2316 = memref.load %arg1[%c567] : memref<572xf32, #tpu.memory_space<smem>>
    %2317 = vector.broadcast %2316 : f32 to vector<8x128xf32>
    %2318 = arith.mulf %2120, %2317 : vector<8x128xf32>
    %c568 = arith.constant 568 : index
    %2319 = memref.load %arg1[%c568] : memref<572xf32, #tpu.memory_space<smem>>
    %2320 = vector.broadcast %2319 : f32 to vector<8x128xf32>
    %2321 = arith.mulf %2185, %2320 : vector<8x128xf32>
    %2322 = arith.addf %2318, %2321 : vector<8x128xf32>
    %c569 = arith.constant 569 : index
    %2323 = memref.load %arg1[%c569] : memref<572xf32, #tpu.memory_space<smem>>
    %2324 = vector.broadcast %2323 : f32 to vector<8x128xf32>
    %2325 = arith.mulf %2250, %2324 : vector<8x128xf32>
    %2326 = arith.addf %2322, %2325 : vector<8x128xf32>
    %c570 = arith.constant 570 : index
    %2327 = memref.load %arg1[%c570] : memref<572xf32, #tpu.memory_space<smem>>
    %2328 = vector.broadcast %2327 : f32 to vector<8x128xf32>
    %2329 = arith.mulf %2315, %2328 : vector<8x128xf32>
    %2330 = arith.addf %2326, %2329 : vector<8x128xf32>
    %c571 = arith.constant 571 : index
    %2331 = memref.load %arg1[%c571] : memref<572xf32, #tpu.memory_space<smem>>
    %2332 = vector.broadcast %2331 : f32 to vector<8x128xf32>
    %2333 = arith.addf %2330, %2332 : vector<8x128xf32>
    %c0_48 = arith.constant 0 : index
    %c0_49 = arith.constant 0 : index
    %2334 = vector.load %arg3[%c0_48, %c0_49] : memref<8x128xf32, #tpu.memory_space<vmem>>, vector<8x128xf32>
    tpu.vector_store %arg3[%c0_48, %c0_49], %2333 {strides = array<i32>} : memref<8x128xf32, #tpu.memory_space<vmem>>, vector<8x128xf32>,
    return
  }
  func.func @transform_0(%arg0: i32) -> i32 {
    %c0_i32 = arith.constant 0 : i32
    %c0_i32_0 = arith.constant 0 : i32
    return %c0_i32 : i32
  }
  func.func @transform_1(%arg0: i32) -> (i32, i32) {
    %c0_i32 = arith.constant 0 : i32
    %c0_i32_0 = arith.constant 0 : i32
    return %arg0, %c0_i32 : i32, i32
  }
  func.func @transform_2(%arg0: i32) -> (i32, i32) {
    %c0_i32 = arith.constant 0 : i32
    %c0_i32_0 = arith.constant 0 : i32
    return %arg0, %c0_i32 : i32, i32
  }
}

</mosaic_0001>

<llo_original>
// kernel: tpu_custom_call.1
$region0: #{tpu_custom_call.1}
  #allocation0 [shape = 'u32[]', space=smem, size = 0x4, offset = 0x4, fixed_abs, tag = 'smem constant byte address 0x4 - core index']
  #allocation1 [shape = 'u32[144,128]{1,0:T(1,128)}', space=vmem, size = 0x12000, scoped, tag = 'internal scratch']
  %s0 = inlined_call_operand.hbm [shape: f32[572], index: 0, kind: input, shape index: {}]
  %s1 = inlined_call_operand.hbm [shape: f32[8,128], index: 1, kind: input, shape index: {}]
  %s2 = inlined_call_operand.hbm [shape: f32[8,128], index: 2, kind: output, shape index: {}]
  %s3 = sld [smem:[#allocation0]]
  $region26: #{tpu_custom_call.1} parent=0
    _
  %s5 = ssub.s32 1, %s3
  %s6 = scalar_select 0, %s5, %s3
  $region1: #{tpu_custom_call.1} parent=0
    #allocation2 [shape = 'u8[2560]{0}', space=smem, size = 0xa00, scoped, tag = 'input window, operand 0, single buffered']
    #allocation3 [shape = 's32[1]{0}', space=sflag, size = 0x4, scoped, tag = 'scoped memory for tpu_custom_call.1']
    #allocation4 [shape = 's32[1]{0}', space=sflag, size = 0x4, scoped, tag = 'scoped memory for tpu_custom_call.1']
    #allocation5 [shape = 's32[1]{0}', space=sflag, size = 0x4, scoped, tag = 'scoped memory for tpu_custom_call.1']
    #allocation6 [shape = 'u8[4096]{0}', space=vmem, size = 0x1000, scoped, tag = 'input window, operand 1, single buffered']
    #allocation7 [shape = 'u8[4096]{0}', space=vmem, size = 0x1000, scoped, tag = 'output window, operand 0, single buffered']
    %7 = vsyncpa [#allocation5], 0
    %8 = vsyncpa [#allocation3], 0
    %9 = vsyncpa [#allocation4], 0
    // Predicated region
    $region2: #{tpu_custom_call.1} parent=1 // pred_check
      _
    $region3: #{tpu_custom_call.1} parent=1 // pred_check_branch
      %11 = sbr.rel (0) target = $region5
    $region4: #{tpu_custom_call.1} parent=1 // pred_region
      %s13 = ssub.s32 80, 80
      %14 = vsyncadd [#allocation5], %s13
      %17 = dma.hbm_to_smem %s0, 80, [#allocation2], [#allocation5]
    $region5: #{tpu_custom_call.1} parent=1 // pred_fallthru
      _
    // Predicated region
    $region6: #{tpu_custom_call.1} parent=1 // pred_check
      _
    $region7: #{tpu_custom_call.1} parent=1 // pred_check_branch
      %19 = sbr.rel (0) target = $region9
    $region8: #{tpu_custom_call.1} parent=1 // pred_region
      %s21 = ssub.s32 128, 128
      %22 = vsyncadd [#allocation3], %s21
      %s24 = sshll.u32 [#allocation6], 4
      %s25 = int_to_ptr.vmem [resolvable:$true] %s24
      %27 = dma.hbm_to_vmem [thread:$0]  %s1, 128, %s25, [#allocation3]
    $region9: #{tpu_custom_call.1} parent=1 // pred_fallthru
      _
    // Predicated region
    $region10: #{tpu_custom_call.1} parent=1 // pred_check
      _
    $region11: #{tpu_custom_call.1} parent=1 // pred_check_branch
      %29 = sbr.rel (0) target = $region13
    $region12: #{tpu_custom_call.1} parent=1 // pred_region
      %30 = dma.done [#allocation5], 80
    $region13: #{tpu_custom_call.1} parent=1 // pred_fallthru
      _
    // Predicated region
    $region14: #{tpu_custom_call.1} parent=1 // pred_check
      _
    $region15: #{tpu_custom_call.1} parent=1 // pred_check_branch
      %32 = sbr.rel (0) target = $region17
    $region16: #{tpu_custom_call.1} parent=1 // pred_region
      %33 = dma.done [#allocation3], 128
    $region17: #{tpu_custom_call.1} parent=1 // pred_fallthru
      _
    %34 = sfence
    %v35 = vld [vmem:[#allocation6] sm:$0xff]
    %s36 = sld [smem:[#allocation2]]
    %v37 = vstv %s36
    %v38 = vmul.f32 %v35, %v37
    %s39 = sld [smem:[#allocation2 + $0xa]]
    %v40 = vstv %s39
    %v41 = vadd.f32 %v38, %v40
    %v42 = vmul.f32 %v41, 0.01
    %v43 = vmax.f32 %v41, %v42
    %s44 = sld [smem:[#allocation2 + $0x1]]
    %v45 = vstv %s44
    %v46 = vmul.f32 %v35, %v45
    %s47 = sld [smem:[#allocation2 + $0xb]]
    %v48 = vstv %s47
    %v49 = vadd.f32 %v46, %v48
    %v50 = vmul.f32 %v49, 0.01
    %v51 = vmax.f32 %v49, %v50
    %s52 = sld [smem:[#allocation2 + $0x2]]
    %v53 = vstv %s52
    %v54 = vmul.f32 %v35, %v53
    %s55 = sld [smem:[#allocation2 + $0xc]]
    %v56 = vstv %s55
    %v57 = vadd.f32 %v54, %v56
    %v58 = vmul.f32 %v57, 0.01
    %v59 = vmax.f32 %v57, %v58
    %s60 = sld [smem:[#allocation2 + $0x3]]
    %v61 = vstv %s60
    %v62 = vmul.f32 %v35, %v61
    %s63 = sld [smem:[#allocation2 + $0xd]]
    %v64 = vstv %s63
    %v65 = vadd.f32 %v62, %v64
    %v66 = vmul.f32 %v65, 0.01
    %v67 = vmax.f32 %v65, %v66
    %s68 = sld [smem:[#allocation2 + $0x4]]
    %v69 = vstv %s68
    %v70 = vmul.f32 %v35, %v69
    %s71 = sld [smem:[#allocation2 + $0xe]]
    %v72 = vstv %s71
    %v73 = vadd.f32 %v70, %v72
    %v74 = vmul.f32 %v73, 0.01
    %v75 = vmax.f32 %v73, %v74
    %s76 = sld [smem:[#allocation2 + $0x5]]
    %v77 = vstv %s76
    %v78 = vmul.f32 %v35, %v77
    %s79 = sld [smem:[#allocation2 + $0xf]]
    %v80 = vstv %s79
    %v81 = vadd.f32 %v78, %v80
    %v82 = vmul.f32 %v81, 0.01
    %v83 = vmax.f32 %v81, %v82
    %s84 = sld [smem:[#allocation2 + $0x6]]
    %v85 = vstv %s84
    %v86 = vmul.f32 %v35, %v85
    %s87 = sld [smem:[#allocation2 + $0x10]]
    %v88 = vstv %s87
    %v89 = vadd.f32 %v86, %v88
    %v90 = vmul.f32 %v89, 0.01
    %v91 = vmax.f32 %v89, %v90
    %s92 = sld [smem:[#allocation2 + $0x7]]
    %v93 = vstv %s92
    %v94 = vmul.f32 %v35, %v93
    %s95 = sld [smem:[#allocation2 + $0x11]]
    %v96 = vstv %s95
    %v97 = vadd.f32 %v94, %v96
    %v98 = vmul.f32 %v97, 0.01
    %v99 = vmax.f32 %v97, %v98
    %s100 = sld [smem:[#allocation2 + $0x8]]
    %v101 = vstv %s100
    %v102 = vmul.f32 %v35, %v101
    %s103 = sld [smem:[#allocation2 + $0x12]]
    %v104 = vstv %s103
    %v105 = vadd.f32 %v102, %v104
    %v106 = vmul.f32 %v105, 0.01
    %v107 = vmax.f32 %v105, %v106
    %s108 = sld [smem:[#allocation2 + $0x9]]
    %v109 = vstv %s108
    %v110 = vmul.f32 %v35, %v109
    %s111 = sld [smem:[#allocation2 + $0x13]]
    %v112 = vstv %s111
    %v113 = vadd.f32 %v110, %v112
    %v114 = vmul.f32 %v113, 0.01
    %v115 = vmax.f32 %v113, %v114
    %s116 = sld [smem:[#allocation2 + $0x14]]
    %v117 = vstv %s116
    %v118 = vmul.f32 %v43, %v117
    %s119 = sld [smem:[#allocation2 + $0x15]]
    %v120 = vstv %s119
    %v121 = vmul.f32 %v51, %v120
    %v122 = vadd.f32 %v118, %v121
    %s123 = sld [smem:[#allocation2 + $0x16]]
    %v124 = vstv %s123
    %v125 = vmul.f32 %v59, %v124
    %v126 = vadd.f32 %v122, %v125
    %s127 = sld [smem:[#allocation2 + $0x17]]
    %v128 = vstv %s127
    %v129 = vmul.f32 %v67, %v128
    %v130 = vadd.f32 %v126, %v129
    %s131 = sld [smem:[#allocation2 + $0x18]]
    %v132 = vstv %s131
    %v133 = vmul.f32 %v75, %v132
    %v134 = vadd.f32 %v130, %v133
    %s135 = sld [smem:[#allocation2 + $0x19]]
    %v136 = vstv %s135
    %v137 = vmul.f32 %v83, %v136
    %v138 = vadd.f32 %v134, %v137
    %s139 = sld [smem:[#allocation2 + $0x1a]]
    %v140 = vstv %s139
    %v141 = vmul.f32 %v91, %v140
    %v142 = vadd.f32 %v138, %v141
    %s143 = sld [smem:[#allocation2 + $0x1b]]
    %v144 = vstv %s143
    %v145 = vmul.f32 %v99, %v144
    %v146 = vadd.f32 %v142, %v145
    %s147 = sld [smem:[#allocation2 + $0x1c]]
    %v148 = vstv %s147
    %v149 = vmul.f32 %v107, %v148
    %v150 = vadd.f32 %v146, %v149
    %s151 = sld [smem:[#allocation2 + $0x1d]]
    %v152 = vstv %s151
    %v153 = vmul.f32 %v115, %v152
    %v154 = vadd.f32 %v150, %v153
    %s155 = sld [smem:[#allocation2 + $0xc8]]
    %v156 = vstv %s155
    %v157 = vadd.f32 %v154, %v156
    %v158 = vmul.f32 %v157, 0.01
    %v159 = vmax.f32 %v157, %v158
    %s160 = sld [smem:[#allocation2 + $0x1e]]
    %v161 = vstv %s160
    %v162 = vmul.f32 %v43, %v161
    %s163 = sld [smem:[#allocation2 + $0x1f]]
    %v164 = vstv %s163
    %v165 = vmul.f32 %v51, %v164
    %v166 = vadd.f32 %v162, %v165
    %s167 = sld [smem:[#allocation2 + $0x20]]
    %v168 = vstv %s167
    %v169 = vmul.f32 %v59, %v168
    %v170 = vadd.f32 %v166, %v169
    %s171 = sld [smem:[#allocation2 + $0x21]]
    %v172 = vstv %s171
    %v173 = vmul.f32 %v67, %v172
    %v174 = vadd.f32 %v170, %v173
    %s175 = sld [smem:[#allocation2 + $0x22]]
    %v176 = vstv %s175
    %v177 = vmul.f32 %v75, %v176
    %v178 = vadd.f32 %v174, %v177
    %s179 = sld [smem:[#allocation2 + $0x23]]
    %v180 = vstv %s179
    %v181 = vmul.f32 %v83, %v180
    %v182 = vadd.f32 %v178, %v181
    %s183 = sld [smem:[#allocation2 + $0x24]]
    %v184 = vstv %s183
    %v185 = vmul.f32 %v91, %v184
    %v186 = vadd.f32 %v182, %v185
    %s187 = sld [smem:[#allocation2 + $0x25]]
    %v188 = vstv %s187
    %v189 = vmul.f32 %v99, %v188
    %v190 = vadd.f32 %v186, %v189
    %s191 = sld [smem:[#allocation2 + $0x26]]
    %v192 = vstv %s191
    %v193 = vmul.f32 %v107, %v192
    %v194 = vadd.f32 %v190, %v193
    %s195 = sld [smem:[#allocation2 + $0x27]]
    %v196 = vstv %s195
    %v197 = vmul.f32 %v115, %v196
    %v198 = vadd.f32 %v194, %v197
    %s199 = sld [smem:[#allocation2 + $0xc9]]
    %v200 = vstv %s199
    %v201 = vadd.f32 %v198, %v200
    %v202 = vmul.f32 %v201, 0.01
    %v203 = vmax.f32 %v201, %v202
    %s204 = sld [smem:[#allocation2 + $0x28]]
    %v205 = vstv %s204
    %v206 = vmul.f32 %v43, %v205
    %s207 = sld [smem:[#allocation2 + $0x29]]
    %v208 = vstv %s207
    %v209 = vmul.f32 %v51, %v208
    %v210 = vadd.f32 %v206, %v209
    %s211 = sld [smem:[#allocation2 + $0x2a]]
    %v212 = vstv %s211
    %v213 = vmul.f32 %v59, %v212
    %v214 = vadd.f32 %v210, %v213
    %s215 = sld [smem:[#allocation2 + $0x2b]]
    %v216 = vstv %s215
    %v217 = vmul.f32 %v67, %v216
    %v218 = vadd.f32 %v214, %v217
    %s219 = sld [smem:[#allocation2 + $0x2c]]
    %v220 = vstv %s219
    %v221 = vmul.f32 %v75, %v220
    %v222 = vadd.f32 %v218, %v221
    %s223 = sld [smem:[#allocation2 + $0x2d]]
    %v224 = vstv %s223
    %v225 = vmul.f32 %v83, %v224
    %v226 = vadd.f32 %v222, %v225
    %s227 = sld [smem:[#allocation2 + $0x2e]]
    %v228 = vstv %s227
    %v229 = vmul.f32 %v91, %v228
    %v230 = vadd.f32 %v226, %v229
    %s231 = sld [smem:[#allocation2 + $0x2f]]
    %v232 = vstv %s231
    %v233 = vmul.f32 %v99, %v232
    %v234 = vadd.f32 %v230, %v233
    %s235 = sld [smem:[#allocation2 + $0x30]]
    %v236 = vstv %s235
    %v237 = vmul.f32 %v107, %v236
    %v238 = vadd.f32 %v234, %v237
    %s239 = sld [smem:[#allocation2 + $0x31]]
    %v240 = vstv %s239
    %v241 = vmul.f32 %v115, %v240
    %v242 = vadd.f32 %v238, %v241
    %s243 = sld [smem:[#allocation2 + $0xca]]
    %v244 = vstv %s243
    %v245 = vadd.f32 %v242, %v244
    %v246 = vmul.f32 %v245, 0.01
    %v247 = vmax.f32 %v245, %v246
    %s248 = sld [smem:[#allocation2 + $0x32]]
    %v249 = vstv %s248
    %v250 = vmul.f32 %v43, %v249
    %s251 = sld [smem:[#allocation2 + $0x33]]
    %v252 = vstv %s251
    %v253 = vmul.f32 %v51, %v252
    %v254 = vadd.f32 %v250, %v253
    %s255 = sld [smem:[#allocation2 + $0x34]]
    %v256 = vstv %s255
    %v257 = vmul.f32 %v59, %v256
    %v258 = vadd.f32 %v254, %v257
    %s259 = sld [smem:[#allocation2 + $0x35]]
    %v260 = vstv %s259
    %v261 = vmul.f32 %v67, %v260
    %v262 = vadd.f32 %v258, %v261
    %s263 = sld [smem:[#allocation2 + $0x36]]
    %v264 = vstv %s263
    %v265 = vmul.f32 %v75, %v264
    %v266 = vadd.f32 %v262, %v265
    %s267 = sld [smem:[#allocation2 + $0x37]]
    %v268 = vstv %s267
    %v269 = vmul.f32 %v83, %v268
    %v270 = vadd.f32 %v266, %v269
    %s271 = sld [smem:[#allocation2 + $0x38]]
    %v272 = vstv %s271
    %v273 = vmul.f32 %v91, %v272
    %v274 = vadd.f32 %v270, %v273
    %s275 = sld [smem:[#allocation2 + $0x39]]
    %v276 = vstv %s275
    %v277 = vmul.f32 %v99, %v276
    %v278 = vadd.f32 %v274, %v277
    %s279 = sld [smem:[#allocation2 + $0x3a]]
    %v280 = vstv %s279
    %v281 = vmul.f32 %v107, %v280
    %v282 = vadd.f32 %v278, %v281
    %s283 = sld [smem:[#allocation2 + $0x3b]]
    %v284 = vstv %s283
    %v285 = vmul.f32 %v115, %v284
    %v286 = vadd.f32 %v282, %v285
    %s287 = sld [smem:[#allocation2 + $0xcb]]
    %v288 = vstv %s287
    %v289 = vadd.f32 %v286, %v288
    %v290 = vmul.f32 %v289, 0.01
    %v291 = vmax.f32 %v289, %v290
    %s292 = sld [smem:[#allocation2 + $0x3c]]
    %v293 = vstv %s292
    %v294 = vmul.f32 %v43, %v293
    %s295 = sld [smem:[#allocation2 + $0x3d]]
    %v296 = vstv %s295
    %v297 = vmul.f32 %v51, %v296
    %v298 = vadd.f32 %v294, %v297
    %s299 = sld [smem:[#allocation2 + $0x3e]]
    %v300 = vstv %s299
    %v301 = vmul.f32 %v59, %v300
    %v302 = vadd.f32 %v298, %v301
    %s303 = sld [smem:[#allocation2 + $0x3f]]
    %v304 = vstv %s303
    %v305 = vmul.f32 %v67, %v304
    %v306 = vadd.f32 %v302, %v305
    %s307 = sld [smem:[#allocation2 + $0x40]]
    %v308 = vstv %s307
    %v309 = vmul.f32 %v75, %v308
    %v310 = vadd.f32 %v306, %v309
    %s311 = sld [smem:[#allocation2 + $0x41]]
    %v312 = vstv %s311
    %v313 = vmul.f32 %v83, %v312
    %v314 = vadd.f32 %v310, %v313
    %s315 = sld [smem:[#allocation2 + $0x42]]
    %v316 = vstv %s315
    %v317 = vmul.f32 %v91, %v316
    %v318 = vadd.f32 %v314, %v317
    %s319 = sld [smem:[#allocation2 + $0x43]]
    %v320 = vstv %s319
    %v321 = vmul.f32 %v99, %v320
    %v322 = vadd.f32 %v318, %v321
    %s323 = sld [smem:[#allocation2 + $0x44]]
    %v324 = vstv %s323
    %v325 = vmul.f32 %v107, %v324
    %v326 = vadd.f32 %v322, %v325
    %s327 = sld [smem:[#allocation2 + $0x45]]
    %v328 = vstv %s327
    %v329 = vmul.f32 %v115, %v328
    %v330 = vadd.f32 %v326, %v329
    %s331 = sld [smem:[#allocation2 + $0xcc]]
    %v332 = vstv %s331
    %v333 = vadd.f32 %v330, %v332
    %v334 = vmul.f32 %v333, 0.01
    %v335 = vmax.f32 %v333, %v334
    %s336 = sld [smem:[#allocation2 + $0x46]]
    %v337 = vstv %s336
    %v338 = vmul.f32 %v43, %v337
    %s339 = sld [smem:[#allocation2 + $0x47]]
    %v340 = vstv %s339
    %v341 = vmul.f32 %v51, %v340
    %v342 = vadd.f32 %v338, %v341
    %s343 = sld [smem:[#allocation2 + $0x48]]
    %v344 = vstv %s343
    %v345 = vmul.f32 %v59, %v344
    %v346 = vadd.f32 %v342, %v345
    %s347 = sld [smem:[#allocation2 + $0x49]]
    %v348 = vstv %s347
    %v349 = vmul.f32 %v67, %v348
    %v350 = vadd.f32 %v346, %v349
    %s351 = sld [smem:[#allocation2 + $0x4a]]
    %v352 = vstv %s351
    %v353 = vmul.f32 %v75, %v352
    %v354 = vadd.f32 %v350, %v353
    %s355 = sld [smem:[#allocation2 + $0x4b]]
    %v356 = vstv %s355
    %v357 = vmul.f32 %v83, %v356
    %v358 = vadd.f32 %v354, %v357
    %s359 = sld [smem:[#allocation2 + $0x4c]]
    %v360 = vstv %s359
    %v361 = vmul.f32 %v91, %v360
    %v362 = vadd.f32 %v358, %v361
    %s363 = sld [smem:[#allocation2 + $0x4d]]
    %v364 = vstv %s363
    %v365 = vmul.f32 %v99, %v364
    %v366 = vadd.f32 %v362, %v365
    %s367 = sld [smem:[#allocation2 + $0x4e]]
    %v368 = vstv %s367
    %v369 = vmul.f32 %v107, %v368
    %v370 = vadd.f32 %v366, %v369
    %s371 = sld [smem:[#allocation2 + $0x4f]]
    %v372 = vstv %s371
    %v373 = vmul.f32 %v115, %v372
    %v374 = vadd.f32 %v370, %v373
    %s375 = sld [smem:[#allocation2 + $0xcd]]
    %v376 = vstv %s375
    %v377 = vadd.f32 %v374, %v376
    %v378 = vmul.f32 %v377, 0.01
    %v379 = vmax.f32 %v377, %v378
    %s380 = sld [smem:[#allocation2 + $0x50]]
    %v381 = vstv %s380
    %v382 = vmul.f32 %v43, %v381
    %s383 = sld [smem:[#allocation2 + $0x51]]
    %v384 = vstv %s383
    %v385 = vmul.f32 %v51, %v384
    %v386 = vadd.f32 %v382, %v385
    %s387 = sld [smem:[#allocation2 + $0x52]]
    %v388 = vstv %s387
    %v389 = vmul.f32 %v59, %v388
    %v390 = vadd.f32 %v386, %v389
    %s391 = sld [smem:[#allocation2 + $0x53]]
    %v392 = vstv %s391
    %v393 = vmul.f32 %v67, %v392
    %v394 = vadd.f32 %v390, %v393
    %s395 = sld [smem:[#allocation2 + $0x54]]
    %v396 = vstv %s395
    %v397 = vmul.f32 %v75, %v396
    %v398 = vadd.f32 %v394, %v397
    %s399 = sld [smem:[#allocation2 + $0x55]]
    %v400 = vstv %s399
    %v401 = vmul.f32 %v83, %v400
    %v402 = vadd.f32 %v398, %v401
    %s403 = sld [smem:[#allocation2 + $0x56]]
    %v404 = vstv %s403
    %v405 = vmul.f32 %v91, %v404
    %v406 = vadd.f32 %v402, %v405
    %s407 = sld [smem:[#allocation2 + $0x57]]
    %v408 = vstv %s407
    %v409 = vmul.f32 %v99, %v408
    %v410 = vadd.f32 %v406, %v409
    %s411 = sld [smem:[#allocation2 + $0x58]]
    %v412 = vstv %s411
    %v413 = vmul.f32 %v107, %v412
    %v414 = vadd.f32 %v410, %v413
    %s415 = sld [smem:[#allocation2 + $0x59]]
    %v416 = vstv %s415
    %v417 = vmul.f32 %v115, %v416
    %v418 = vadd.f32 %v414, %v417
    %s419 = sld [smem:[#allocation2 + $0xce]]
    %v420 = vstv %s419
    %v421 = vadd.f32 %v418, %v420
    %v422 = vmul.f32 %v421, 0.01
    %v423 = vmax.f32 %v421, %v422
    %s424 = sld [smem:[#allocation2 + $0x5a]]
    %v425 = vstv %s424
    %v426 = vmul.f32 %v43, %v425
    %s427 = sld [smem:[#allocation2 + $0x5b]]
    %v428 = vstv %s427
    %v429 = vmul.f32 %v51, %v428
    %v430 = vadd.f32 %v426, %v429
    %s431 = sld [smem:[#allocation2 + $0x5c]]
    %v432 = vstv %s431
    %v433 = vmul.f32 %v59, %v432
    %v434 = vadd.f32 %v430, %v433
    %s435 = sld [smem:[#allocation2 + $0x5d]]
    %v436 = vstv %s435
    %v437 = vmul.f32 %v67, %v436
    %v438 = vadd.f32 %v434, %v437
    %s439 = sld [smem:[#allocation2 + $0x5e]]
    %v440 = vstv %s439
    %v441 = vmul.f32 %v75, %v440
    %v442 = vadd.f32 %v438, %v441
    %s443 = sld [smem:[#allocation2 + $0x5f]]
    %v444 = vstv %s443
    %v445 = vmul.f32 %v83, %v444
    %v446 = vadd.f32 %v442, %v445
    %s447 = sld [smem:[#allocation2 + $0x60]]
    %v448 = vstv %s447
    %v449 = vmul.f32 %v91, %v448
    %v450 = vadd.f32 %v446, %v449
    %s451 = sld [smem:[#allocation2 + $0x61]]
    %v452 = vstv %s451
    %v453 = vmul.f32 %v99, %v452
    %v454 = vadd.f32 %v450, %v453
    %s455 = sld [smem:[#allocation2 + $0x62]]
    %v456 = vstv %s455
    %v457 = vmul.f32 %v107, %v456
    %v458 = vadd.f32 %v454, %v457
    %s459 = sld [smem:[#allocation2 + $0x63]]
    %v460 = vstv %s459
    %v461 = vmul.f32 %v115, %v460
    %v462 = vadd.f32 %v458, %v461
    %s463 = sld [smem:[#allocation2 + $0xcf]]
    %v464 = vstv %s463
    %v465 = vadd.f32 %v462, %v464
    %v466 = vmul.f32 %v465, 0.01
    %v467 = vmax.f32 %v465, %v466
    %s468 = sld [smem:[#allocation2 + $0x64]]
    %v469 = vstv %s468
    %v470 = vmul.f32 %v43, %v469
    %s471 = sld [smem:[#allocation2 + $0x65]]
    %v472 = vstv %s471
    %v473 = vmul.f32 %v51, %v472
    %v474 = vadd.f32 %v470, %v473
    %s475 = sld [smem:[#allocation2 + $0x66]]
    %v476 = vstv %s475
    %v477 = vmul.f32 %v59, %v476
    %v478 = vadd.f32 %v474, %v477
    %s479 = sld [smem:[#allocation2 + $0x67]]
    %v480 = vstv %s479
    %v481 = vmul.f32 %v67, %v480
    %v482 = vadd.f32 %v478, %v481
    %s483 = sld [smem:[#allocation2 + $0x68]]
    %v484 = vstv %s483
    %v485 = vmul.f32 %v75, %v484
    %v486 = vadd.f32 %v482, %v485
    %s487 = sld [smem:[#allocation2 + $0x69]]
    %v488 = vstv %s487
    %v489 = vmul.f32 %v83, %v488
    %v490 = vadd.f32 %v486, %v489
    %s491 = sld [smem:[#allocation2 + $0x6a]]
    %v492 = vstv %s491
    %v493 = vmul.f32 %v91, %v492
    %v494 = vadd.f32 %v490, %v493
    %s495 = sld [smem:[#allocation2 + $0x6b]]
    %v496 = vstv %s495
    %v497 = vmul.f32 %v99, %v496
    %v498 = vadd.f32 %v494, %v497
    %s499 = sld [smem:[#allocation2 + $0x6c]]
    %v500 = vstv %s499
    %v501 = vmul.f32 %v107, %v500
    %v502 = vadd.f32 %v498, %v501
    %s503 = sld [smem:[#allocation2 + $0x6d]]
    %v504 = vstv %s503
    %v505 = vmul.f32 %v115, %v504
    %v506 = vadd.f32 %v502, %v505
    %s507 = sld [smem:[#allocation2 + $0xd0]]
    %v508 = vstv %s507
    %v509 = vadd.f32 %v506, %v508
    %v510 = vmul.f32 %v509, 0.01
    %v511 = vmax.f32 %v509, %v510
    %s512 = sld [smem:[#allocation2 + $0x6e]]
    %v513 = vstv %s512
    %v514 = vmul.f32 %v43, %v513
    %s515 = sld [smem:[#allocation2 + $0x6f]]
    %v516 = vstv %s515
    %v517 = vmul.f32 %v51, %v516
    %v518 = vadd.f32 %v514, %v517
    %s519 = sld [smem:[#allocation2 + $0x70]]
    %v520 = vstv %s519
    %v521 = vmul.f32 %v59, %v520
    %v522 = vadd.f32 %v518, %v521
    %s523 = sld [smem:[#allocation2 + $0x71]]
    %v524 = vstv %s523
    %v525 = vmul.f32 %v67, %v524
    %v526 = vadd.f32 %v522, %v525
    %s527 = sld [smem:[#allocation2 + $0x72]]
    %v528 = vstv %s527
    %v529 = vmul.f32 %v75, %v528
    %v530 = vadd.f32 %v526, %v529
    %s531 = sld [smem:[#allocation2 + $0x73]]
    %v532 = vstv %s531
    %v533 = vmul.f32 %v83, %v532
    %v534 = vadd.f32 %v530, %v533
    %s535 = sld [smem:[#allocation2 + $0x74]]
    %v536 = vstv %s535
    %v537 = vmul.f32 %v91, %v536
    %v538 = vadd.f32 %v534, %v537
    %s539 = sld [smem:[#allocation2 + $0x75]]
    %v540 = vstv %s539
    %v541 = vmul.f32 %v99, %v540
    %v542 = vadd.f32 %v538, %v541
    %s543 = sld [smem:[#allocation2 + $0x76]]
    %v544 = vstv %s543
    %v545 = vmul.f32 %v107, %v544
    %v546 = vadd.f32 %v542, %v545
    %s547 = sld [smem:[#allocation2 + $0x77]]
    %v548 = vstv %s547
    %v549 = vmul.f32 %v115, %v548
    %v550 = vadd.f32 %v546, %v549
    %s551 = sld [smem:[#allocation2 + $0xd1]]
    %v552 = vstv %s551
    %v553 = vadd.f32 %v550, %v552
    %v554 = vmul.f32 %v553, 0.01
    %v555 = vmax.f32 %v553, %v554
    %s556 = sld [smem:[#allocation2 + $0x78]]
    %v557 = vstv %s556
    %v558 = vmul.f32 %v43, %v557
    %s559 = sld [smem:[#allocation2 + $0x79]]
    %v560 = vstv %s559
    %v561 = vmul.f32 %v51, %v560
    %v562 = vadd.f32 %v558, %v561
    %s563 = sld [smem:[#allocation2 + $0x7a]]
    %v564 = vstv %s563
    %v565 = vmul.f32 %v59, %v564
    %v566 = vadd.f32 %v562, %v565
    %s567 = sld [smem:[#allocation2 + $0x7b]]
    %v568 = vstv %s567
    %v569 = vmul.f32 %v67, %v568
    %v570 = vadd.f32 %v566, %v569
    %s571 = sld [smem:[#allocation2 + $0x7c]]
    %v572 = vstv %s571
    %v573 = vmul.f32 %v75, %v572
    %v574 = vadd.f32 %v570, %v573
    %s575 = sld [smem:[#allocation2 + $0x7d]]
    %v576 = vstv %s575
    %v577 = vmul.f32 %v83, %v576
    %v578 = vadd.f32 %v574, %v577
    %s579 = sld [smem:[#allocation2 + $0x7e]]
    %v580 = vstv %s579
    %v581 = vmul.f32 %v91, %v580
    %v582 = vadd.f32 %v578, %v581
    %s583 = sld [smem:[#allocation2 + $0x7f]]
    %v584 = vstv %s583
    %v585 = vmul.f32 %v99, %v584
    %v586 = vadd.f32 %v582, %v585
    %s587 = sld [smem:[#allocation2 + $0x80]]
    %v588 = vstv %s587
    %v589 = vmul.f32 %v107, %v588
    %v590 = vadd.f32 %v586, %v589
    %s591 = sld [smem:[#allocation2 + $0x81]]
    %v592 = vstv %s591
    %v593 = vmul.f32 %v115, %v592
    %v594 = vadd.f32 %v590, %v593
    %s595 = sld [smem:[#allocation2 + $0xd2]]
    %v596 = vstv %s595
    %v597 = vadd.f32 %v594, %v596
    %v598 = vmul.f32 %v597, 0.01
    %v599 = vmax.f32 %v597, %v598
    %s600 = sld [smem:[#allocation2 + $0x82]]
    %v601 = vstv %s600
    %v602 = vmul.f32 %v43, %v601
    %s603 = sld [smem:[#allocation2 + $0x83]]
    %v604 = vstv %s603
    %v605 = vmul.f32 %v51, %v604
    %v606 = vadd.f32 %v602, %v605
    %s607 = sld [smem:[#allocation2 + $0x84]]
    %v608 = vstv %s607
    %v609 = vmul.f32 %v59, %v608
    %v610 = vadd.f32 %v606, %v609
    %s611 = sld [smem:[#allocation2 + $0x85]]
    %v612 = vstv %s611
    %v613 = vmul.f32 %v67, %v612
    %v614 = vadd.f32 %v610, %v613
    %s615 = sld [smem:[#allocation2 + $0x86]]
    %v616 = vstv %s615
    %v617 = vmul.f32 %v75, %v616
    %v618 = vadd.f32 %v614, %v617
    %s619 = sld [smem:[#allocation2 + $0x87]]
    %v620 = vstv %s619
    %v621 = vmul.f32 %v83, %v620
    %v622 = vadd.f32 %v618, %v621
    %s623 = sld [smem:[#allocation2 + $0x88]]
    %v624 = vstv %s623
    %v625 = vmul.f32 %v91, %v624
    %v626 = vadd.f32 %v622, %v625
    %s627 = sld [smem:[#allocation2 + $0x89]]
    %v628 = vstv %s627
    %v629 = vmul.f32 %v99, %v628
    %v630 = vadd.f32 %v626, %v629
    %s631 = sld [smem:[#allocation2 + $0x8a]]
    %v632 = vstv %s631
    %v633 = vmul.f32 %v107, %v632
    %v634 = vadd.f32 %v630, %v633
    %s635 = sld [smem:[#allocation2 + $0x8b]]
    %v636 = vstv %s635
    %v637 = vmul.f32 %v115, %v636
    %v638 = vadd.f32 %v634, %v637
    %s639 = sld [smem:[#allocation2 + $0xd3]]
    %v640 = vstv %s639
    %v641 = vadd.f32 %v638, %v640
    %v642 = vmul.f32 %v641, 0.01
    %v643 = vmax.f32 %v641, %v642
    %s644 = sld [smem:[#allocation2 + $0x8c]]
    %v645 = vstv %s644
    %v646 = vmul.f32 %v43, %v645
    %s647 = sld [smem:[#allocation2 + $0x8d]]
    %v648 = vstv %s647
    %v649 = vmul.f32 %v51, %v648
    %v650 = vadd.f32 %v646, %v649
    %s651 = sld [smem:[#allocation2 + $0x8e]]
    %v652 = vstv %s651
    %v653 = vmul.f32 %v59, %v652
    %v654 = vadd.f32 %v650, %v653
    %s655 = sld [smem:[#allocation2 + $0x8f]]
    %v656 = vstv %s655
    %v657 = vmul.f32 %v67, %v656
    %v658 = vadd.f32 %v654, %v657
    %s659 = sld [smem:[#allocation2 + $0x90]]
    %v660 = vstv %s659
    %v661 = vmul.f32 %v75, %v660
    %v662 = vadd.f32 %v658, %v661
    %s663 = sld [smem:[#allocation2 + $0x91]]
    %v664 = vstv %s663
    %v665 = vmul.f32 %v83, %v664
    %v666 = vadd.f32 %v662, %v665
    %s667 = sld [smem:[#allocation2 + $0x92]]
    %v668 = vstv %s667
    %v669 = vmul.f32 %v91, %v668
    %v670 = vadd.f32 %v666, %v669
    %s671 = sld [smem:[#allocation2 + $0x93]]
    %v672 = vstv %s671
    %v673 = vmul.f32 %v99, %v672
    %v674 = vadd.f32 %v670, %v673
    %s675 = sld [smem:[#allocation2 + $0x94]]
    %v676 = vstv %s675
    %v677 = vmul.f32 %v107, %v676
    %v678 = vadd.f32 %v674, %v677
    %s679 = sld [smem:[#allocation2 + $0x95]]
    %v680 = vstv %s679
    %v681 = vmul.f32 %v115, %v680
    %v682 = vadd.f32 %v678, %v681
    %s683 = sld [smem:[#allocation2 + $0xd4]]
    %v684 = vstv %s683
    %v685 = vadd.f32 %v682, %v684
    %v686 = vmul.f32 %v685, 0.01
    %v687 = vmax.f32 %v685, %v686
    %s688 = sld [smem:[#allocation2 + $0x96]]
    %v689 = vstv %s688
    %v690 = vmul.f32 %v43, %v689
    %s691 = sld [smem:[#allocation2 + $0x97]]
    %v692 = vstv %s691
    %v693 = vmul.f32 %v51, %v692
    %v694 = vadd.f32 %v690, %v693
    %s695 = sld [smem:[#allocation2 + $0x98]]
    %v696 = vstv %s695
    %v697 = vmul.f32 %v59, %v696
    %v698 = vadd.f32 %v694, %v697
    %s699 = sld [smem:[#allocation2 + $0x99]]
    %v700 = vstv %s699
    %v701 = vmul.f32 %v67, %v700
    %v702 = vadd.f32 %v698, %v701
    %s703 = sld [smem:[#allocation2 + $0x9a]]
    %v704 = vstv %s703
    %v705 = vmul.f32 %v75, %v704
    %v706 = vadd.f32 %v702, %v705
    %s707 = sld [smem:[#allocation2 + $0x9b]]
    %v708 = vstv %s707
    %v709 = vmul.f32 %v83, %v708
    %v710 = vadd.f32 %v706, %v709
    %s711 = sld [smem:[#allocation2 + $0x9c]]
    %v712 = vstv %s711
    %v713 = vmul.f32 %v91, %v712
    %v714 = vadd.f32 %v710, %v713
    %s715 = sld [smem:[#allocation2 + $0x9d]]
    %v716 = vstv %s715
    %v717 = vmul.f32 %v99, %v716
    %v718 = vadd.f32 %v714, %v717
    %s719 = sld [smem:[#allocation2 + $0x9e]]
    %v720 = vstv %s719
    %v721 = vmul.f32 %v107, %v720
    %v722 = vadd.f32 %v718, %v721
    %s723 = sld [smem:[#allocation2 + $0x9f]]
    %v724 = vstv %s723
    %v725 = vmul.f32 %v115, %v724
    %v726 = vadd.f32 %v722, %v725
    %s727 = sld [smem:[#allocation2 + $0xd5]]
    %v728 = vstv %s727
    %v729 = vadd.f32 %v726, %v728
    %v730 = vmul.f32 %v729, 0.01
    %v731 = vmax.f32 %v729, %v730
    %s732 = sld [smem:[#allocation2 + $0xa0]]
    %v733 = vstv %s732
    %v734 = vmul.f32 %v43, %v733
    %s735 = sld [smem:[#allocation2 + $0xa1]]
    %v736 = vstv %s735
    %v737 = vmul.f32 %v51, %v736
    %v738 = vadd.f32 %v734, %v737
    %s739 = sld [smem:[#allocation2 + $0xa2]]
    %v740 = vstv %s739
    %v741 = vmul.f32 %v59, %v740
    %v742 = vadd.f32 %v738, %v741
    %s743 = sld [smem:[#allocation2 + $0xa3]]
    %v744 = vstv %s743
    %v745 = vmul.f32 %v67, %v744
    %v746 = vadd.f32 %v742, %v745
    %s747 = sld [smem:[#allocation2 + $0xa4]]
    %v748 = vstv %s747
    %v749 = vmul.f32 %v75, %v748
    %v750 = vadd.f32 %v746, %v749
    %s751 = sld [smem:[#allocation2 + $0xa5]]
    %v752 = vstv %s751
    %v753 = vmul.f32 %v83, %v752
    %v754 = vadd.f32 %v750, %v753
    %s755 = sld [smem:[#allocation2 + $0xa6]]
    %v756 = vstv %s755
    %v757 = vmul.f32 %v91, %v756
    %v758 = vadd.f32 %v754, %v757
    %s759 = sld [smem:[#allocation2 + $0xa7]]
    %v760 = vstv %s759
    %v761 = vmul.f32 %v99, %v760
    %v762 = vadd.f32 %v758, %v761
    %s763 = sld [smem:[#allocation2 + $0xa8]]
    %v764 = vstv %s763
    %v765 = vmul.f32 %v107, %v764
    %v766 = vadd.f32 %v762, %v765
    %s767 = sld [smem:[#allocation2 + $0xa9]]
    %v768 = vstv %s767
    %v769 = vmul.f32 %v115, %v768
    %v770 = vadd.f32 %v766, %v769
    %s771 = sld [smem:[#allocation2 + $0xd6]]
    %v772 = vstv %s771
    %v773 = vadd.f32 %v770, %v772
    %v774 = vmul.f32 %v773, 0.01
    %v775 = vmax.f32 %v773, %v774
    %s776 = sld [smem:[#allocation2 + $0xaa]]
    %v777 = vstv %s776
    %v778 = vmul.f32 %v43, %v777
    %s779 = sld [smem:[#allocation2 + $0xab]]
    %v780 = vstv %s779
    %v781 = vmul.f32 %v51, %v780
    %v782 = vadd.f32 %v778, %v781
    %s783 = sld [smem:[#allocation2 + $0xac]]
    %v784 = vstv %s783
    %v785 = vmul.f32 %v59, %v784
    %v786 = vadd.f32 %v782, %v785
    %s787 = sld [smem:[#allocation2 + $0xad]]
    %v788 = vstv %s787
    %v789 = vmul.f32 %v67, %v788
    %v790 = vadd.f32 %v786, %v789
    %s791 = sld [smem:[#allocation2 + $0xae]]
    %v792 = vstv %s791
    %v793 = vmul.f32 %v75, %v792
    %v794 = vadd.f32 %v790, %v793
    %s795 = sld [smem:[#allocation2 + $0xaf]]
    %v796 = vstv %s795
    %v797 = vmul.f32 %v83, %v796
    %v798 = vadd.f32 %v794, %v797
    %s799 = sld [smem:[#allocation2 + $0xb0]]
    %v800 = vstv %s799
    %v801 = vmul.f32 %v91, %v800
    %v802 = vadd.f32 %v798, %v801
    %s803 = sld [smem:[#allocation2 + $0xb1]]
    %v804 = vstv %s803
    %v805 = vmul.f32 %v99, %v804
    %v806 = vadd.f32 %v802, %v805
    %s807 = sld [smem:[#allocation2 + $0xb2]]
    %v808 = vstv %s807
    %v809 = vmul.f32 %v107, %v808
    %v810 = vadd.f32 %v806, %v809
    %s811 = sld [smem:[#allocation2 + $0xb3]]
    %v812 = vstv %s811
    %v813 = vmul.f32 %v115, %v812
    %v814 = vadd.f32 %v810, %v813
    %s815 = sld [smem:[#allocation2 + $0xd7]]
    %v816 = vstv %s815
    %v817 = vadd.f32 %v814, %v816
    %v818 = vmul.f32 %v817, 0.01
    %v819 = vmax.f32 %v817, %v818
    %s820 = sld [smem:[#allocation2 + $0xb4]]
    %v821 = vstv %s820
    %v822 = vmul.f32 %v43, %v821
    %s823 = sld [smem:[#allocation2 + $0xb5]]
    %v824 = vstv %s823
    %v825 = vmul.f32 %v51, %v824
    %v826 = vadd.f32 %v822, %v825
    %s827 = sld [smem:[#allocation2 + $0xb6]]
    %v828 = vstv %s827
    %v829 = vmul.f32 %v59, %v828
    %v830 = vadd.f32 %v826, %v829
    %s831 = sld [smem:[#allocation2 + $0xb7]]
    %v832 = vstv %s831
    %v833 = vmul.f32 %v67, %v832
    %v834 = vadd.f32 %v830, %v833
    %s835 = sld [smem:[#allocation2 + $0xb8]]
    %v836 = vstv %s835
    %v837 = vmul.f32 %v75, %v836
    %v838 = vadd.f32 %v834, %v837
    %s839 = sld [smem:[#allocation2 + $0xb9]]
    %v840 = vstv %s839
    %v841 = vmul.f32 %v83, %v840
    %v842 = vadd.f32 %v838, %v841
    %s843 = sld [smem:[#allocation2 + $0xba]]
    %v844 = vstv %s843
    %v845 = vmul.f32 %v91, %v844
    %v846 = vadd.f32 %v842, %v845
    %s847 = sld [smem:[#allocation2 + $0xbb]]
    %v848 = vstv %s847
    %v849 = vmul.f32 %v99, %v848
    %v850 = vadd.f32 %v846, %v849
    %s851 = sld [smem:[#allocation2 + $0xbc]]
    %v852 = vstv %s851
    %v853 = vmul.f32 %v107, %v852
    %v854 = vadd.f32 %v850, %v853
    %s855 = sld [smem:[#allocation2 + $0xbd]]
    %v856 = vstv %s855
    %v857 = vmul.f32 %v115, %v856
    %v858 = vadd.f32 %v854, %v857
    %s859 = sld [smem:[#allocation2 + $0xd8]]
    %v860 = vstv %s859
    %v861 = vadd.f32 %v858, %v860
    %v862 = vmul.f32 %v861, 0.01
    %v863 = vmax.f32 %v861, %v862
    %s864 = sld [smem:[#allocation2 + $0xbe]]
    %v865 = vstv %s864
    %v866 = vmul.f32 %v43, %v865
    %s867 = sld [smem:[#allocation2 + $0xbf]]
    %v868 = vstv %s867
    %v869 = vmul.f32 %v51, %v868
    %v870 = vadd.f32 %v866, %v869
    %s871 = sld [smem:[#allocation2 + $0xc0]]
    %v872 = vstv %s871
    %v873 = vmul.f32 %v59, %v872
    %v874 = vadd.f32 %v870, %v873
    %s875 = sld [smem:[#allocation2 + $0xc1]]
    %v876 = vstv %s875
    %v877 = vmul.f32 %v67, %v876
    %v878 = vadd.f32 %v874, %v877
    %s879 = sld [smem:[#allocation2 + $0xc2]]
    %v880 = vstv %s879
    %v881 = vmul.f32 %v75, %v880
    %v882 = vadd.f32 %v878, %v881
    %s883 = sld [smem:[#allocation2 + $0xc3]]
    %v884 = vstv %s883
    %v885 = vmul.f32 %v83, %v884
    %v886 = vadd.f32 %v882, %v885
    %s887 = sld [smem:[#allocation2 + $0xc4]]
    %v888 = vstv %s887
    %v889 = vmul.f32 %v91, %v888
    %v890 = vadd.f32 %v886, %v889
    %s891 = sld [smem:[#allocation2 + $0xc5]]
    %v892 = vstv %s891
    %v893 = vmul.f32 %v99, %v892
    %v894 = vadd.f32 %v890, %v893
    %s895 = sld [smem:[#allocation2 + $0xc6]]
    %v896 = vstv %s895
    %v897 = vmul.f32 %v107, %v896
    %v898 = vadd.f32 %v894, %v897
    %s899 = sld [smem:[#allocation2 + $0xc7]]
    %v900 = vstv %s899
    %v901 = vmul.f32 %v115, %v900
    %v902 = vadd.f32 %v898, %v901
    %s903 = sld [smem:[#allocation2 + $0xd9]]
    %v904 = vstv %s903
    %v905 = vadd.f32 %v902, %v904
    %v906 = vmul.f32 %v905, 0.01
    %v907 = vmax.f32 %v905, %v906
    %s908 = sld [smem:[#allocation2 + $0xda]]
    %v909 = vstv %s908
    %v910 = vmul.f32 %v159, %v909
    %s911 = sld [smem:[#allocation2 + $0xdb]]
    %v912 = vstv %s911
    %v913 = vmul.f32 %v203, %v912
    %v914 = vadd.f32 %v910, %v913
    %s915 = sld [smem:[#allocation2 + $0xdc]]
    %v916 = vstv %s915
    %v917 = vmul.f32 %v247, %v916
    %v918 = vadd.f32 %v914, %v917
    %s919 = sld [smem:[#allocation2 + $0xdd]]
    %v920 = vstv %s919
    %v921 = vmul.f32 %v291, %v920
    %v922 = vadd.f32 %v918, %v921
    %s923 = sld [smem:[#allocation2 + $0xde]]
    %v924 = vstv %s923
    %v925 = vmul.f32 %v335, %v924
    %v926 = vadd.f32 %v922, %v925
    %s927 = sld [smem:[#allocation2 + $0xdf]]
    %v928 = vstv %s927
    %v929 = vmul.f32 %v379, %v928
    %v930 = vadd.f32 %v926, %v929
    %s931 = sld [smem:[#allocation2 + $0xe0]]
    %v932 = vstv %s931
    %v933 = vmul.f32 %v423, %v932
    %v934 = vadd.f32 %v930, %v933
    %s935 = sld [smem:[#allocation2 + $0xe1]]
    %v936 = vstv %s935
    %v937 = vmul.f32 %v467, %v936
    %v938 = vadd.f32 %v934, %v937
    %s939 = sld [smem:[#allocation2 + $0xe2]]
    %v940 = vstv %s939
    %v941 = vmul.f32 %v511, %v940
    %v942 = vadd.f32 %v938, %v941
    %s943 = sld [smem:[#allocation2 + $0xe3]]
    %v944 = vstv %s943
    %v945 = vmul.f32 %v555, %v944
    %v946 = vadd.f32 %v942, %v945
    %s947 = sld [smem:[#allocation2 + $0xe4]]
    %v948 = vstv %s947
    %v949 = vmul.f32 %v599, %v948
    %v950 = vadd.f32 %v946, %v949
    %s951 = sld [smem:[#allocation2 + $0xe5]]
    %v952 = vstv %s951
    %v953 = vmul.f32 %v643, %v952
    %v954 = vadd.f32 %v950, %v953
    %s955 = sld [smem:[#allocation2 + $0xe6]]
    %v956 = vstv %s955
    %v957 = vmul.f32 %v687, %v956
    %v958 = vadd.f32 %v954, %v957
    %s959 = sld [smem:[#allocation2 + $0xe7]]
    %v960 = vstv %s959
    %v961 = vmul.f32 %v731, %v960
    %v962 = vadd.f32 %v958, %v961
    %s963 = sld [smem:[#allocation2 + $0xe8]]
    %v964 = vstv %s963
    %v965 = vmul.f32 %v775, %v964
    %v966 = vadd.f32 %v962, %v965
    %s967 = sld [smem:[#allocation2 + $0xe9]]
    %v968 = vstv %s967
    %v969 = vmul.f32 %v819, %v968
    %v970 = vadd.f32 %v966, %v969
    %s971 = sld [smem:[#allocation2 + $0xea]]
    %v972 = vstv %s971
    %v973 = vmul.f32 %v863, %v972
    %v974 = vadd.f32 %v970, %v973
    %s975 = sld [smem:[#allocation2 + $0xeb]]
    %v976 = vstv %s975
    %v977 = vmul.f32 %v907, %v976
    %v978 = vadd.f32 %v974, %v977
    %s979 = sld [smem:[#allocation2 + $0x1e8]]
    %v980 = vstv %s979
    %v981 = vadd.f32 %v978, %v980
    %v982 = vmul.f32 %v981, 0.01
    %v983 = vmax.f32 %v981, %v982
    %s984 = sld [smem:[#allocation2 + $0xec]]
    %v985 = vstv %s984
    %v986 = vmul.f32 %v159, %v985
    %s987 = sld [smem:[#allocation2 + $0xed]]
    %v988 = vstv %s987
    %v989 = vmul.f32 %v203, %v988
    %v990 = vadd.f32 %v986, %v989
    %s991 = sld [smem:[#allocation2 + $0xee]]
    %v992 = vstv %s991
    %v993 = vmul.f32 %v247, %v992
    %v994 = vadd.f32 %v990, %v993
    %s995 = sld [smem:[#allocation2 + $0xef]]
    %v996 = vstv %s995
    %v997 = vmul.f32 %v291, %v996
    %v998 = vadd.f32 %v994, %v997
    %s999 = sld [smem:[#allocation2 + $0xf0]]
    %v1000 = vstv %s999
    %v1001 = vmul.f32 %v335, %v1000
    %v1002 = vadd.f32 %v998, %v1001
    %s1003 = sld [smem:[#allocation2 + $0xf1]]
    %v1004 = vstv %s1003
    %v1005 = vmul.f32 %v379, %v1004
    %v1006 = vadd.f32 %v1002, %v1005
    %s1007 = sld [smem:[#allocation2 + $0xf2]]
    %v1008 = vstv %s1007
    %v1009 = vmul.f32 %v423, %v1008
    %v1010 = vadd.f32 %v1006, %v1009
    %s1011 = sld [smem:[#allocation2 + $0xf3]]
    %v1012 = vstv %s1011
    %v1013 = vmul.f32 %v467, %v1012
    %v1014 = vadd.f32 %v1010, %v1013
    %s1015 = sld [smem:[#allocation2 + $0xf4]]
    %v1016 = vstv %s1015
    %v1017 = vmul.f32 %v511, %v1016
    %v1018 = vadd.f32 %v1014, %v1017
    %s1019 = sld [smem:[#allocation2 + $0xf5]]
    %v1020 = vstv %s1019
    %v1021 = vmul.f32 %v555, %v1020
    %v1022 = vadd.f32 %v1018, %v1021
    %s1023 = sld [smem:[#allocation2 + $0xf6]]
    %v1024 = vstv %s1023
    %v1025 = vmul.f32 %v599, %v1024
    %v1026 = vadd.f32 %v1022, %v1025
    %s1027 = sld [smem:[#allocation2 + $0xf7]]
    %v1028 = vstv %s1027
    %v1029 = vmul.f32 %v643, %v1028
    %v1030 = vadd.f32 %v1026, %v1029
    %s1031 = sld [smem:[#allocation2 + $0xf8]]
    %v1032 = vstv %s1031
    %v1033 = vmul.f32 %v687, %v1032
    %v1034 = vadd.f32 %v1030, %v1033
    %s1035 = sld [smem:[#allocation2 + $0xf9]]
    %v1036 = vstv %s1035
    %v1037 = vmul.f32 %v731, %v1036
    %v1038 = vadd.f32 %v1034, %v1037
    %s1039 = sld [smem:[#allocation2 + $0xfa]]
    %v1040 = vstv %s1039
    %v1041 = vmul.f32 %v775, %v1040
    %v1042 = vadd.f32 %v1038, %v1041
    %s1043 = sld [smem:[#allocation2 + $0xfb]]
    %v1044 = vstv %s1043
    %v1045 = vmul.f32 %v819, %v1044
    %v1046 = vadd.f32 %v1042, %v1045
    %s1047 = sld [smem:[#allocation2 + $0xfc]]
    %v1048 = vstv %s1047
    %v1049 = vmul.f32 %v863, %v1048
    %v1050 = vadd.f32 %v1046, %v1049
    %s1051 = sld [smem:[#allocation2 + $0xfd]]
    %v1052 = vstv %s1051
    %v1053 = vmul.f32 %v907, %v1052
    %v1054 = vadd.f32 %v1050, %v1053
    %s1055 = sld [smem:[#allocation2 + $0x1e9]]
    %v1056 = vstv %s1055
    %v1057 = vadd.f32 %v1054, %v1056
    %v1058 = vmul.f32 %v1057, 0.01
    %v1059 = vmax.f32 %v1057, %v1058
    %s1060 = sld [smem:[#allocation2 + $0xfe]]
    %v1061 = vstv %s1060
    %v1062 = vmul.f32 %v159, %v1061
    %s1063 = sld [smem:[#allocation2 + $0xff]]
    %v1064 = vstv %s1063
    %v1065 = vmul.f32 %v203, %v1064
    %v1066 = vadd.f32 %v1062, %v1065
    %s1067 = sld [smem:[#allocation2 + $0x100]]
    %v1068 = vstv %s1067
    %v1069 = vmul.f32 %v247, %v1068
    %v1070 = vadd.f32 %v1066, %v1069
    %s1071 = sld [smem:[#allocation2 + $0x101]]
    %v1072 = vstv %s1071
    %v1073 = vmul.f32 %v291, %v1072
    %v1074 = vadd.f32 %v1070, %v1073
    %s1075 = sld [smem:[#allocation2 + $0x102]]
    %v1076 = vstv %s1075
    %v1077 = vmul.f32 %v335, %v1076
    %v1078 = vadd.f32 %v1074, %v1077
    %s1079 = sld [smem:[#allocation2 + $0x103]]
    %v1080 = vstv %s1079
    %v1081 = vmul.f32 %v379, %v1080
    %v1082 = vadd.f32 %v1078, %v1081
    %s1083 = sld [smem:[#allocation2 + $0x104]]
    %v1084 = vstv %s1083
    %v1085 = vmul.f32 %v423, %v1084
    %v1086 = vadd.f32 %v1082, %v1085
    %s1087 = sld [smem:[#allocation2 + $0x105]]
    %v1088 = vstv %s1087
    %v1089 = vmul.f32 %v467, %v1088
    %v1090 = vadd.f32 %v1086, %v1089
    %s1091 = sld [smem:[#allocation2 + $0x106]]
    %v1092 = vstv %s1091
    %v1093 = vmul.f32 %v511, %v1092
    %v1094 = vadd.f32 %v1090, %v1093
    %s1095 = sld [smem:[#allocation2 + $0x107]]
    %v1096 = vstv %s1095
    %v1097 = vmul.f32 %v555, %v1096
    %v1098 = vadd.f32 %v1094, %v1097
    %s1099 = sld [smem:[#allocation2 + $0x108]]
    %v1100 = vstv %s1099
    %v1101 = vmul.f32 %v599, %v1100
    %v1102 = vadd.f32 %v1098, %v1101
    %s1103 = sld [smem:[#allocation2 + $0x109]]
    %v1104 = vstv %s1103
    %v1105 = vmul.f32 %v643, %v1104
    %v1106 = vadd.f32 %v1102, %v1105
    %s1107 = sld [smem:[#allocation2 + $0x10a]]
    %v1108 = vstv %s1107
    %v1109 = vmul.f32 %v687, %v1108
    %v1110 = vadd.f32 %v1106, %v1109
    %s1111 = sld [smem:[#allocation2 + $0x10b]]
    %v1112 = vstv %s1111
    %v1113 = vmul.f32 %v731, %v1112
    %v1114 = vadd.f32 %v1110, %v1113
    %s1115 = sld [smem:[#allocation2 + $0x10c]]
    %v1116 = vstv %s1115
    %v1117 = vmul.f32 %v775, %v1116
    %v1118 = vadd.f32 %v1114, %v1117
    %s1119 = sld [smem:[#allocation2 + $0x10d]]
    %v1120 = vstv %s1119
    %v1121 = vmul.f32 %v819, %v1120
    %v1122 = vadd.f32 %v1118, %v1121
    %s1123 = sld [smem:[#allocation2 + $0x10e]]
    %v1124 = vstv %s1123
    %v1125 = vmul.f32 %v863, %v1124
    %v1126 = vadd.f32 %v1122, %v1125
    %s1127 = sld [smem:[#allocation2 + $0x10f]]
    %v1128 = vstv %s1127
    %v1129 = vmul.f32 %v907, %v1128
    %v1130 = vadd.f32 %v1126, %v1129
    %s1131 = sld [smem:[#allocation2 + $0x1ea]]
    %v1132 = vstv %s1131
    %v1133 = vadd.f32 %v1130, %v1132
    %v1134 = vmul.f32 %v1133, 0.01
    %v1135 = vmax.f32 %v1133, %v1134
    %s1136 = sld [smem:[#allocation2 + $0x110]]
    %v1137 = vstv %s1136
    %v1138 = vmul.f32 %v159, %v1137
    %s1139 = sld [smem:[#allocation2 + $0x111]]
    %v1140 = vstv %s1139
    %v1141 = vmul.f32 %v203, %v1140
    %v1142 = vadd.f32 %v1138, %v1141
    %s1143 = sld [smem:[#allocation2 + $0x112]]
    %v1144 = vstv %s1143
    %v1145 = vmul.f32 %v247, %v1144
    %v1146 = vadd.f32 %v1142, %v1145
    %s1147 = sld [smem:[#allocation2 + $0x113]]
    %v1148 = vstv %s1147
    %v1149 = vmul.f32 %v291, %v1148
    %v1150 = vadd.f32 %v1146, %v1149
    %s1151 = sld [smem:[#allocation2 + $0x114]]
    %v1152 = vstv %s1151
    %v1153 = vmul.f32 %v335, %v1152
    %v1154 = vadd.f32 %v1150, %v1153
    %s1155 = sld [smem:[#allocation2 + $0x115]]
    %v1156 = vstv %s1155
    %v1157 = vmul.f32 %v379, %v1156
    %v1158 = vadd.f32 %v1154, %v1157
    %s1159 = sld [smem:[#allocation2 + $0x116]]
    %v1160 = vstv %s1159
    %v1161 = vmul.f32 %v423, %v1160
    %v1162 = vadd.f32 %v1158, %v1161
    %s1163 = sld [smem:[#allocation2 + $0x117]]
    %v1164 = vstv %s1163
    %v1165 = vmul.f32 %v467, %v1164
    %v1166 = vadd.f32 %v1162, %v1165
    %s1167 = sld [smem:[#allocation2 + $0x118]]
    %v1168 = vstv %s1167
    %v1169 = vmul.f32 %v511, %v1168
    %v1170 = vadd.f32 %v1166, %v1169
    %s1171 = sld [smem:[#allocation2 + $0x119]]
    %v1172 = vstv %s1171
    %v1173 = vmul.f32 %v555, %v1172
    %v1174 = vadd.f32 %v1170, %v1173
    %s1175 = sld [smem:[#allocation2 + $0x11a]]
    %v1176 = vstv %s1175
    %v1177 = vmul.f32 %v599, %v1176
    %v1178 = vadd.f32 %v1174, %v1177
    %s1179 = sld [smem:[#allocation2 + $0x11b]]
    %v1180 = vstv %s1179
    %v1181 = vmul.f32 %v643, %v1180
    %v1182 = vadd.f32 %v1178, %v1181
    %s1183 = sld [smem:[#allocation2 + $0x11c]]
    %v1184 = vstv %s1183
    %v1185 = vmul.f32 %v687, %v1184
    %v1186 = vadd.f32 %v1182, %v1185
    %s1187 = sld [smem:[#allocation2 + $0x11d]]
    %v1188 = vstv %s1187
    %v1189 = vmul.f32 %v731, %v1188
    %v1190 = vadd.f32 %v1186, %v1189
    %s1191 = sld [smem:[#allocation2 + $0x11e]]
    %v1192 = vstv %s1191
    %v1193 = vmul.f32 %v775, %v1192
    %v1194 = vadd.f32 %v1190, %v1193
    %s1195 = sld [smem:[#allocation2 + $0x11f]]
    %v1196 = vstv %s1195
    %v1197 = vmul.f32 %v819, %v1196
    %v1198 = vadd.f32 %v1194, %v1197
    %s1199 = sld [smem:[#allocation2 + $0x120]]
    %v1200 = vstv %s1199
    %v1201 = vmul.f32 %v863, %v1200
    %v1202 = vadd.f32 %v1198, %v1201
    %s1203 = sld [smem:[#allocation2 + $0x121]]
    %v1204 = vstv %s1203
    %v1205 = vmul.f32 %v907, %v1204
    %v1206 = vadd.f32 %v1202, %v1205
    %s1207 = sld [smem:[#allocation2 + $0x1eb]]
    %v1208 = vstv %s1207
    %v1209 = vadd.f32 %v1206, %v1208
    %v1210 = vmul.f32 %v1209, 0.01
    %v1211 = vmax.f32 %v1209, %v1210
    %s1212 = sld [smem:[#allocation2 + $0x122]]
    %v1213 = vstv %s1212
    %v1214 = vmul.f32 %v159, %v1213
    %s1215 = sld [smem:[#allocation2 + $0x123]]
    %v1216 = vstv %s1215
    %v1217 = vmul.f32 %v203, %v1216
    %v1218 = vadd.f32 %v1214, %v1217
    %s1219 = sld [smem:[#allocation2 + $0x124]]
    %v1220 = vstv %s1219
    %v1221 = vmul.f32 %v247, %v1220
    %v1222 = vadd.f32 %v1218, %v1221
    %s1223 = sld [smem:[#allocation2 + $0x125]]
    %v1224 = vstv %s1223
    %v1225 = vmul.f32 %v291, %v1224
    %v1226 = vadd.f32 %v1222, %v1225
    %s1227 = sld [smem:[#allocation2 + $0x126]]
    %v1228 = vstv %s1227
    %v1229 = vmul.f32 %v335, %v1228
    %v1230 = vadd.f32 %v1226, %v1229
    %s1231 = sld [smem:[#allocation2 + $0x127]]
    %v1232 = vstv %s1231
    %v1233 = vmul.f32 %v379, %v1232
    %v1234 = vadd.f32 %v1230, %v1233
    %s1235 = sld [smem:[#allocation2 + $0x128]]
    %v1236 = vstv %s1235
    %v1237 = vmul.f32 %v423, %v1236
    %v1238 = vadd.f32 %v1234, %v1237
    %s1239 = sld [smem:[#allocation2 + $0x129]]
    %v1240 = vstv %s1239
    %v1241 = vmul.f32 %v467, %v1240
    %v1242 = vadd.f32 %v1238, %v1241
    %s1243 = sld [smem:[#allocation2 + $0x12a]]
    %v1244 = vstv %s1243
    %v1245 = vmul.f32 %v511, %v1244
    %v1246 = vadd.f32 %v1242, %v1245
    %s1247 = sld [smem:[#allocation2 + $0x12b]]
    %v1248 = vstv %s1247
    %v1249 = vmul.f32 %v555, %v1248
    %v1250 = vadd.f32 %v1246, %v1249
    %s1251 = sld [smem:[#allocation2 + $0x12c]]
    %v1252 = vstv %s1251
    %v1253 = vmul.f32 %v599, %v1252
    %v1254 = vadd.f32 %v1250, %v1253
    %s1255 = sld [smem:[#allocation2 + $0x12d]]
    %v1256 = vstv %s1255
    %v1257 = vmul.f32 %v643, %v1256
    %v1258 = vadd.f32 %v1254, %v1257
    %s1259 = sld [smem:[#allocation2 + $0x12e]]
    %v1260 = vstv %s1259
    %v1261 = vmul.f32 %v687, %v1260
    %v1262 = vadd.f32 %v1258, %v1261
    %s1263 = sld [smem:[#allocation2 + $0x12f]]
    %v1264 = vstv %s1263
    %v1265 = vmul.f32 %v731, %v1264
    %v1266 = vadd.f32 %v1262, %v1265
    %s1267 = sld [smem:[#allocation2 + $0x130]]
    %v1268 = vstv %s1267
    %v1269 = vmul.f32 %v775, %v1268
    %v1270 = vadd.f32 %v1266, %v1269
    %s1271 = sld [smem:[#allocation2 + $0x131]]
    %v1272 = vstv %s1271
    %v1273 = vmul.f32 %v819, %v1272
    %v1274 = vadd.f32 %v1270, %v1273
    %s1275 = sld [smem:[#allocation2 + $0x132]]
    %v1276 = vstv %s1275
    %v1277 = vmul.f32 %v863, %v1276
    %v1278 = vadd.f32 %v1274, %v1277
    %s1279 = sld [smem:[#allocation2 + $0x133]]
    %v1280 = vstv %s1279
    %v1281 = vmul.f32 %v907, %v1280
    %v1282 = vadd.f32 %v1278, %v1281
    %s1283 = sld [smem:[#allocation2 + $0x1ec]]
    %v1284 = vstv %s1283
    %v1285 = vadd.f32 %v1282, %v1284
    %v1286 = vmul.f32 %v1285, 0.01
    %v1287 = vmax.f32 %v1285, %v1286
    %s1288 = sld [smem:[#allocation2 + $0x134]]
    %v1289 = vstv %s1288
    %v1290 = vmul.f32 %v159, %v1289
    %s1291 = sld [smem:[#allocation2 + $0x135]]
    %v1292 = vstv %s1291
    %v1293 = vmul.f32 %v203, %v1292
    %v1294 = vadd.f32 %v1290, %v1293
    %s1295 = sld [smem:[#allocation2 + $0x136]]
    %v1296 = vstv %s1295
    %v1297 = vmul.f32 %v247, %v1296
    %v1298 = vadd.f32 %v1294, %v1297
    %s1299 = sld [smem:[#allocation2 + $0x137]]
    %v1300 = vstv %s1299
    %v1301 = vmul.f32 %v291, %v1300
    %v1302 = vadd.f32 %v1298, %v1301
    %s1303 = sld [smem:[#allocation2 + $0x138]]
    %v1304 = vstv %s1303
    %v1305 = vmul.f32 %v335, %v1304
    %v1306 = vadd.f32 %v1302, %v1305
    %s1307 = sld [smem:[#allocation2 + $0x139]]
    %v1308 = vstv %s1307
    %v1309 = vmul.f32 %v379, %v1308
    %v1310 = vadd.f32 %v1306, %v1309
    %s1311 = sld [smem:[#allocation2 + $0x13a]]
    %v1312 = vstv %s1311
    %v1313 = vmul.f32 %v423, %v1312
    %v1314 = vadd.f32 %v1310, %v1313
    %s1315 = sld [smem:[#allocation2 + $0x13b]]
    %v1316 = vstv %s1315
    %v1317 = vmul.f32 %v467, %v1316
    %v1318 = vadd.f32 %v1314, %v1317
    %s1319 = sld [smem:[#allocation2 + $0x13c]]
    %v1320 = vstv %s1319
    %v1321 = vmul.f32 %v511, %v1320
    %v1322 = vadd.f32 %v1318, %v1321
    %s1323 = sld [smem:[#allocation2 + $0x13d]]
    %v1324 = vstv %s1323
    %v1325 = vmul.f32 %v555, %v1324
    %v1326 = vadd.f32 %v1322, %v1325
    %s1327 = sld [smem:[#allocation2 + $0x13e]]
    %v1328 = vstv %s1327
    %v1329 = vmul.f32 %v599, %v1328
    %v1330 = vadd.f32 %v1326, %v1329
    %s1331 = sld [smem:[#allocation2 + $0x13f]]
    %v1332 = vstv %s1331
    %v1333 = vmul.f32 %v643, %v1332
    %v1334 = vadd.f32 %v1330, %v1333
    %s1335 = sld [smem:[#allocation2 + $0x140]]
    %v1336 = vstv %s1335
    %v1337 = vmul.f32 %v687, %v1336
    %v1338 = vadd.f32 %v1334, %v1337
    %s1339 = sld [smem:[#allocation2 + $0x141]]
    %v1340 = vstv %s1339
    %v1341 = vmul.f32 %v731, %v1340
    %v1342 = vadd.f32 %v1338, %v1341
    %s1343 = sld [smem:[#allocation2 + $0x142]]
    %v1344 = vstv %s1343
    %v1345 = vmul.f32 %v775, %v1344
    %v1346 = vadd.f32 %v1342, %v1345
    %s1347 = sld [smem:[#allocation2 + $0x143]]
    %v1348 = vstv %s1347
    %v1349 = vmul.f32 %v819, %v1348
    %v1350 = vadd.f32 %v1346, %v1349
    %s1351 = sld [smem:[#allocation2 + $0x144]]
    %v1352 = vstv %s1351
    %v1353 = vmul.f32 %v863, %v1352
    %v1354 = vadd.f32 %v1350, %v1353
    %s1355 = sld [smem:[#allocation2 + $0x145]]
    %v1356 = vstv %s1355
    %v1357 = vmul.f32 %v907, %v1356
    %v1358 = vadd.f32 %v1354, %v1357
    %s1359 = sld [smem:[#allocation2 + $0x1ed]]
    %v1360 = vstv %s1359
    %v1361 = vadd.f32 %v1358, %v1360
    %v1362 = vmul.f32 %v1361, 0.01
    %v1363 = vmax.f32 %v1361, %v1362
    %s1364 = sld [smem:[#allocation2 + $0x146]]
    %v1365 = vstv %s1364
    %v1366 = vmul.f32 %v159, %v1365
    %s1367 = sld [smem:[#allocation2 + $0x147]]
    %v1368 = vstv %s1367
    %v1369 = vmul.f32 %v203, %v1368
    %v1370 = vadd.f32 %v1366, %v1369
    %s1371 = sld [smem:[#allocation2 + $0x148]]
    %v1372 = vstv %s1371
    %v1373 = vmul.f32 %v247, %v1372
    %v1374 = vadd.f32 %v1370, %v1373
    %s1375 = sld [smem:[#allocation2 + $0x149]]
    %v1376 = vstv %s1375
    %v1377 = vmul.f32 %v291, %v1376
    %v1378 = vadd.f32 %v1374, %v1377
    %s1379 = sld [smem:[#allocation2 + $0x14a]]
    %v1380 = vstv %s1379
    %v1381 = vmul.f32 %v335, %v1380
    %v1382 = vadd.f32 %v1378, %v1381
    %s1383 = sld [smem:[#allocation2 + $0x14b]]
    %v1384 = vstv %s1383
    %v1385 = vmul.f32 %v379, %v1384
    %v1386 = vadd.f32 %v1382, %v1385
    %s1387 = sld [smem:[#allocation2 + $0x14c]]
    %v1388 = vstv %s1387
    %v1389 = vmul.f32 %v423, %v1388
    %v1390 = vadd.f32 %v1386, %v1389
    %s1391 = sld [smem:[#allocation2 + $0x14d]]
    %v1392 = vstv %s1391
    %v1393 = vmul.f32 %v467, %v1392
    %v1394 = vadd.f32 %v1390, %v1393
    %s1395 = sld [smem:[#allocation2 + $0x14e]]
    %v1396 = vstv %s1395
    %v1397 = vmul.f32 %v511, %v1396
    %v1398 = vadd.f32 %v1394, %v1397
    %s1399 = sld [smem:[#allocation2 + $0x14f]]
    %v1400 = vstv %s1399
    %v1401 = vmul.f32 %v555, %v1400
    %v1402 = vadd.f32 %v1398, %v1401
    %s1403 = sld [smem:[#allocation2 + $0x150]]
    %v1404 = vstv %s1403
    %v1405 = vmul.f32 %v599, %v1404
    %v1406 = vadd.f32 %v1402, %v1405
    %s1407 = sld [smem:[#allocation2 + $0x151]]
    %v1408 = vstv %s1407
    %v1409 = vmul.f32 %v643, %v1408
    %v1410 = vadd.f32 %v1406, %v1409
    %s1411 = sld [smem:[#allocation2 + $0x152]]
    %v1412 = vstv %s1411
    %v1413 = vmul.f32 %v687, %v1412
    %v1414 = vadd.f32 %v1410, %v1413
    %s1415 = sld [smem:[#allocation2 + $0x153]]
    %v1416 = vstv %s1415
    %v1417 = vmul.f32 %v731, %v1416
    %v1418 = vadd.f32 %v1414, %v1417
    %s1419 = sld [smem:[#allocation2 + $0x154]]
    %v1420 = vstv %s1419
    %v1421 = vmul.f32 %v775, %v1420
    %v1422 = vadd.f32 %v1418, %v1421
    %s1423 = sld [smem:[#allocation2 + $0x155]]
    %v1424 = vstv %s1423
    %v1425 = vmul.f32 %v819, %v1424
    %v1426 = vadd.f32 %v1422, %v1425
    %s1427 = sld [smem:[#allocation2 + $0x156]]
    %v1428 = vstv %s1427
    %v1429 = vmul.f32 %v863, %v1428
    %v1430 = vadd.f32 %v1426, %v1429
    %s1431 = sld [smem:[#allocation2 + $0x157]]
    %v1432 = vstv %s1431
    %v1433 = vmul.f32 %v907, %v1432
    %v1434 = vadd.f32 %v1430, %v1433
    %s1435 = sld [smem:[#allocation2 + $0x1ee]]
    %v1436 = vstv %s1435
    %v1437 = vadd.f32 %v1434, %v1436
    %v1438 = vmul.f32 %v1437, 0.01
    %v1439 = vmax.f32 %v1437, %v1438
    %s1440 = sld [smem:[#allocation2 + $0x158]]
    %v1441 = vstv %s1440
    %v1442 = vmul.f32 %v159, %v1441
    %s1443 = sld [smem:[#allocation2 + $0x159]]
    %v1444 = vstv %s1443
    %v1445 = vmul.f32 %v203, %v1444
    %v1446 = vadd.f32 %v1442, %v1445
    %s1447 = sld [smem:[#allocation2 + $0x15a]]
    %v1448 = vstv %s1447
    %v1449 = vmul.f32 %v247, %v1448
    %v1450 = vadd.f32 %v1446, %v1449
    %s1451 = sld [smem:[#allocation2 + $0x15b]]
    %v1452 = vstv %s1451
    %v1453 = vmul.f32 %v291, %v1452
    %v1454 = vadd.f32 %v1450, %v1453
    %s1455 = sld [smem:[#allocation2 + $0x15c]]
    %v1456 = vstv %s1455
    %v1457 = vmul.f32 %v335, %v1456
    %v1458 = vadd.f32 %v1454, %v1457
    %s1459 = sld [smem:[#allocation2 + $0x15d]]
    %v1460 = vstv %s1459
    %v1461 = vmul.f32 %v379, %v1460
    %v1462 = vadd.f32 %v1458, %v1461
    %s1463 = sld [smem:[#allocation2 + $0x15e]]
    %v1464 = vstv %s1463
    %v1465 = vmul.f32 %v423, %v1464
    %v1466 = vadd.f32 %v1462, %v1465
    %s1467 = sld [smem:[#allocation2 + $0x15f]]
    %v1468 = vstv %s1467
    %v1469 = vmul.f32 %v467, %v1468
    %v1470 = vadd.f32 %v1466, %v1469
    %s1471 = sld [smem:[#allocation2 + $0x160]]
    %v1472 = vstv %s1471
    %v1473 = vmul.f32 %v511, %v1472
    %v1474 = vadd.f32 %v1470, %v1473
    %s1475 = sld [smem:[#allocation2 + $0x161]]
    %v1476 = vstv %s1475
    %v1477 = vmul.f32 %v555, %v1476
    %v1478 = vadd.f32 %v1474, %v1477
    %s1479 = sld [smem:[#allocation2 + $0x162]]
    %v1480 = vstv %s1479
    %v1481 = vmul.f32 %v599, %v1480
    %v1482 = vadd.f32 %v1478, %v1481
    %s1483 = sld [smem:[#allocation2 + $0x163]]
    %v1484 = vstv %s1483
    %v1485 = vmul.f32 %v643, %v1484
    %v1486 = vadd.f32 %v1482, %v1485
    %s1487 = sld [smem:[#allocation2 + $0x164]]
    %v1488 = vstv %s1487
    %v1489 = vmul.f32 %v687, %v1488
    %v1490 = vadd.f32 %v1486, %v1489
    %s1491 = sld [smem:[#allocation2 + $0x165]]
    %v1492 = vstv %s1491
    %v1493 = vmul.f32 %v731, %v1492
    %v1494 = vadd.f32 %v1490, %v1493
    %s1495 = sld [smem:[#allocation2 + $0x166]]
    %v1496 = vstv %s1495
    %v1497 = vmul.f32 %v775, %v1496
    %v1498 = vadd.f32 %v1494, %v1497
    %s1499 = sld [smem:[#allocation2 + $0x167]]
    %v1500 = vstv %s1499
    %v1501 = vmul.f32 %v819, %v1500
    %v1502 = vadd.f32 %v1498, %v1501
    %s1503 = sld [smem:[#allocation2 + $0x168]]
    %v1504 = vstv %s1503
    %v1505 = vmul.f32 %v863, %v1504
    %v1506 = vadd.f32 %v1502, %v1505
    %s1507 = sld [smem:[#allocation2 + $0x169]]
    %v1508 = vstv %s1507
    %v1509 = vmul.f32 %v907, %v1508
    %v1510 = vadd.f32 %v1506, %v1509
    %s1511 = sld [smem:[#allocation2 + $0x1ef]]
    %v1512 = vstv %s1511
    %v1513 = vadd.f32 %v1510, %v1512
    %v1514 = vmul.f32 %v1513, 0.01
    %v1515 = vmax.f32 %v1513, %v1514
    %s1516 = sld [smem:[#allocation2 + $0x16a]]
    %v1517 = vstv %s1516
    %v1518 = vmul.f32 %v159, %v1517
    %s1519 = sld [smem:[#allocation2 + $0x16b]]
    %v1520 = vstv %s1519
    %v1521 = vmul.f32 %v203, %v1520
    %v1522 = vadd.f32 %v1518, %v1521
    %s1523 = sld [smem:[#allocation2 + $0x16c]]
    %v1524 = vstv %s1523
    %v1525 = vmul.f32 %v247, %v1524
    %v1526 = vadd.f32 %v1522, %v1525
    %s1527 = sld [smem:[#allocation2 + $0x16d]]
    %v1528 = vstv %s1527
    %v1529 = vmul.f32 %v291, %v1528
    %v1530 = vadd.f32 %v1526, %v1529
    %s1531 = sld [smem:[#allocation2 + $0x16e]]
    %v1532 = vstv %s1531
    %v1533 = vmul.f32 %v335, %v1532
    %v1534 = vadd.f32 %v1530, %v1533
    %s1535 = sld [smem:[#allocation2 + $0x16f]]
    %v1536 = vstv %s1535
    %v1537 = vmul.f32 %v379, %v1536
    %v1538 = vadd.f32 %v1534, %v1537
    %s1539 = sld [smem:[#allocation2 + $0x170]]
    %v1540 = vstv %s1539
    %v1541 = vmul.f32 %v423, %v1540
    %v1542 = vadd.f32 %v1538, %v1541
    %s1543 = sld [smem:[#allocation2 + $0x171]]
    %v1544 = vstv %s1543
    %v1545 = vmul.f32 %v467, %v1544
    %v1546 = vadd.f32 %v1542, %v1545
    %s1547 = sld [smem:[#allocation2 + $0x172]]
    %v1548 = vstv %s1547
    %v1549 = vmul.f32 %v511, %v1548
    %v1550 = vadd.f32 %v1546, %v1549
    %s1551 = sld [smem:[#allocation2 + $0x173]]
    %v1552 = vstv %s1551
    %v1553 = vmul.f32 %v555, %v1552
    %v1554 = vadd.f32 %v1550, %v1553
    %s1555 = sld [smem:[#allocation2 + $0x174]]
    %v1556 = vstv %s1555
    %v1557 = vmul.f32 %v599, %v1556
    %v1558 = vadd.f32 %v1554, %v1557
    %s1559 = sld [smem:[#allocation2 + $0x175]]
    %v1560 = vstv %s1559
    %v1561 = vmul.f32 %v643, %v1560
    %v1562 = vadd.f32 %v1558, %v1561
    %s1563 = sld [smem:[#allocation2 + $0x176]]
    %v1564 = vstv %s1563
    %v1565 = vmul.f32 %v687, %v1564
    %v1566 = vadd.f32 %v1562, %v1565
    %s1567 = sld [smem:[#allocation2 + $0x177]]
    %v1568 = vstv %s1567
    %v1569 = vmul.f32 %v731, %v1568
    %v1570 = vadd.f32 %v1566, %v1569
    %s1571 = sld [smem:[#allocation2 + $0x178]]
    %v1572 = vstv %s1571
    %v1573 = vmul.f32 %v775, %v1572
    %v1574 = vadd.f32 %v1570, %v1573
    %s1575 = sld [smem:[#allocation2 + $0x179]]
    %v1576 = vstv %s1575
    %v1577 = vmul.f32 %v819, %v1576
    %v1578 = vadd.f32 %v1574, %v1577
    %s1579 = sld [smem:[#allocation2 + $0x17a]]
    %v1580 = vstv %s1579
    %v1581 = vmul.f32 %v863, %v1580
    %v1582 = vadd.f32 %v1578, %v1581
    %s1583 = sld [smem:[#allocation2 + $0x17b]]
    %v1584 = vstv %s1583
    %v1585 = vmul.f32 %v907, %v1584
    %v1586 = vadd.f32 %v1582, %v1585
    %s1587 = sld [smem:[#allocation2 + $0x1f0]]
    %v1588 = vstv %s1587
    %v1589 = vadd.f32 %v1586, %v1588
    %v1590 = vmul.f32 %v1589, 0.01
    %v1591 = vmax.f32 %v1589, %v1590
    %s1592 = sld [smem:[#allocation2 + $0x17c]]
    %v1593 = vstv %s1592
    %v1594 = vmul.f32 %v159, %v1593
    %s1595 = sld [smem:[#allocation2 + $0x17d]]
    %v1596 = vstv %s1595
    %v1597 = vmul.f32 %v203, %v1596
    %v1598 = vadd.f32 %v1594, %v1597
    %s1599 = sld [smem:[#allocation2 + $0x17e]]
    %v1600 = vstv %s1599
    %v1601 = vmul.f32 %v247, %v1600
    %v1602 = vadd.f32 %v1598, %v1601
    %s1603 = sld [smem:[#allocation2 + $0x17f]]
    %v1604 = vstv %s1603
    %v1605 = vmul.f32 %v291, %v1604
    %v1606 = vadd.f32 %v1602, %v1605
    %s1607 = sld [smem:[#allocation2 + $0x180]]
    %v1608 = vstv %s1607
    %v1609 = vmul.f32 %v335, %v1608
    %v1610 = vadd.f32 %v1606, %v1609
    %s1611 = sld [smem:[#allocation2 + $0x181]]
    %v1612 = vstv %s1611
    %v1613 = vmul.f32 %v379, %v1612
    %v1614 = vadd.f32 %v1610, %v1613
    %s1615 = sld [smem:[#allocation2 + $0x182]]
    %v1616 = vstv %s1615
    %v1617 = vmul.f32 %v423, %v1616
    %v1618 = vadd.f32 %v1614, %v1617
    %s1619 = sld [smem:[#allocation2 + $0x183]]
    %v1620 = vstv %s1619
    %v1621 = vmul.f32 %v467, %v1620
    %v1622 = vadd.f32 %v1618, %v1621
    %s1623 = sld [smem:[#allocation2 + $0x184]]
    %v1624 = vstv %s1623
    %v1625 = vmul.f32 %v511, %v1624
    %v1626 = vadd.f32 %v1622, %v1625
    %s1627 = sld [smem:[#allocation2 + $0x185]]
    %v1628 = vstv %s1627
    %v1629 = vmul.f32 %v555, %v1628
    %v1630 = vadd.f32 %v1626, %v1629
    %s1631 = sld [smem:[#allocation2 + $0x186]]
    %v1632 = vstv %s1631
    %v1633 = vmul.f32 %v599, %v1632
    %v1634 = vadd.f32 %v1630, %v1633
    %s1635 = sld [smem:[#allocation2 + $0x187]]
    %v1636 = vstv %s1635
    %v1637 = vmul.f32 %v643, %v1636
    %v1638 = vadd.f32 %v1634, %v1637
    %s1639 = sld [smem:[#allocation2 + $0x188]]
    %v1640 = vstv %s1639
    %v1641 = vmul.f32 %v687, %v1640
    %v1642 = vadd.f32 %v1638, %v1641
    %s1643 = sld [smem:[#allocation2 + $0x189]]
    %v1644 = vstv %s1643
    %v1645 = vmul.f32 %v731, %v1644
    %v1646 = vadd.f32 %v1642, %v1645
    %s1647 = sld [smem:[#allocation2 + $0x18a]]
    %v1648 = vstv %s1647
    %v1649 = vmul.f32 %v775, %v1648
    %v1650 = vadd.f32 %v1646, %v1649
    %s1651 = sld [smem:[#allocation2 + $0x18b]]
    %v1652 = vstv %s1651
    %v1653 = vmul.f32 %v819, %v1652
    %v1654 = vadd.f32 %v1650, %v1653
    %s1655 = sld [smem:[#allocation2 + $0x18c]]
    %v1656 = vstv %s1655
    %v1657 = vmul.f32 %v863, %v1656
    %v1658 = vadd.f32 %v1654, %v1657
    %s1659 = sld [smem:[#allocation2 + $0x18d]]
    %v1660 = vstv %s1659
    %v1661 = vmul.f32 %v907, %v1660
    %v1662 = vadd.f32 %v1658, %v1661
    %s1663 = sld [smem:[#allocation2 + $0x1f1]]
    %v1664 = vstv %s1663
    %v1665 = vadd.f32 %v1662, %v1664
    %v1666 = vmul.f32 %v1665, 0.01
    %v1667 = vmax.f32 %v1665, %v1666
    %s1668 = sld [smem:[#allocation2 + $0x18e]]
    %v1669 = vstv %s1668
    %v1670 = vmul.f32 %v159, %v1669
    %s1671 = sld [smem:[#allocation2 + $0x18f]]
    %v1672 = vstv %s1671
    %v1673 = vmul.f32 %v203, %v1672
    %v1674 = vadd.f32 %v1670, %v1673
    %s1675 = sld [smem:[#allocation2 + $0x190]]
    %v1676 = vstv %s1675
    %v1677 = vmul.f32 %v247, %v1676
    %v1678 = vadd.f32 %v1674, %v1677
    %s1679 = sld [smem:[#allocation2 + $0x191]]
    %v1680 = vstv %s1679
    %v1681 = vmul.f32 %v291, %v1680
    %v1682 = vadd.f32 %v1678, %v1681
    %s1683 = sld [smem:[#allocation2 + $0x192]]
    %v1684 = vstv %s1683
    %v1685 = vmul.f32 %v335, %v1684
    %v1686 = vadd.f32 %v1682, %v1685
    %s1687 = sld [smem:[#allocation2 + $0x193]]
    %v1688 = vstv %s1687
    %v1689 = vmul.f32 %v379, %v1688
    %v1690 = vadd.f32 %v1686, %v1689
    %s1691 = sld [smem:[#allocation2 + $0x194]]
    %v1692 = vstv %s1691
    %v1693 = vmul.f32 %v423, %v1692
    %v1694 = vadd.f32 %v1690, %v1693
    %s1695 = sld [smem:[#allocation2 + $0x195]]
    %v1696 = vstv %s1695
    %v1697 = vmul.f32 %v467, %v1696
    %v1698 = vadd.f32 %v1694, %v1697
    %s1699 = sld [smem:[#allocation2 + $0x196]]
    %v1700 = vstv %s1699
    %v1701 = vmul.f32 %v511, %v1700
    %v1702 = vadd.f32 %v1698, %v1701
    %s1703 = sld [smem:[#allocation2 + $0x197]]
    %v1704 = vstv %s1703
    %v1705 = vmul.f32 %v555, %v1704
    %v1706 = vadd.f32 %v1702, %v1705
    %s1707 = sld [smem:[#allocation2 + $0x198]]
    %v1708 = vstv %s1707
    %v1709 = vmul.f32 %v599, %v1708
    %v1710 = vadd.f32 %v1706, %v1709
    %s1711 = sld [smem:[#allocation2 + $0x199]]
    %v1712 = vstv %s1711
    %v1713 = vmul.f32 %v643, %v1712
    %v1714 = vadd.f32 %v1710, %v1713
    %s1715 = sld [smem:[#allocation2 + $0x19a]]
    %v1716 = vstv %s1715
    %v1717 = vmul.f32 %v687, %v1716
    %v1718 = vadd.f32 %v1714, %v1717
    %s1719 = sld [smem:[#allocation2 + $0x19b]]
    %v1720 = vstv %s1719
    %v1721 = vmul.f32 %v731, %v1720
    %v1722 = vadd.f32 %v1718, %v1721
    %s1723 = sld [smem:[#allocation2 + $0x19c]]
    %v1724 = vstv %s1723
    %v1725 = vmul.f32 %v775, %v1724
    %v1726 = vadd.f32 %v1722, %v1725
    %s1727 = sld [smem:[#allocation2 + $0x19d]]
    %v1728 = vstv %s1727
    %v1729 = vmul.f32 %v819, %v1728
    %v1730 = vadd.f32 %v1726, %v1729
    %s1731 = sld [smem:[#allocation2 + $0x19e]]
    %v1732 = vstv %s1731
    %v1733 = vmul.f32 %v863, %v1732
    %v1734 = vadd.f32 %v1730, %v1733
    %s1735 = sld [smem:[#allocation2 + $0x19f]]
    %v1736 = vstv %s1735
    %v1737 = vmul.f32 %v907, %v1736
    %v1738 = vadd.f32 %v1734, %v1737
    %s1739 = sld [smem:[#allocation2 + $0x1f2]]
    %v1740 = vstv %s1739
    %v1741 = vadd.f32 %v1738, %v1740
    %v1742 = vmul.f32 %v1741, 0.01
    %v1743 = vmax.f32 %v1741, %v1742
    %s1744 = sld [smem:[#allocation2 + $0x1a0]]
    %v1745 = vstv %s1744
    %v1746 = vmul.f32 %v159, %v1745
    %s1747 = sld [smem:[#allocation2 + $0x1a1]]
    %v1748 = vstv %s1747
    %v1749 = vmul.f32 %v203, %v1748
    %v1750 = vadd.f32 %v1746, %v1749
    %s1751 = sld [smem:[#allocation2 + $0x1a2]]
    %v1752 = vstv %s1751
    %v1753 = vmul.f32 %v247, %v1752
    %v1754 = vadd.f32 %v1750, %v1753
    %s1755 = sld [smem:[#allocation2 + $0x1a3]]
    %v1756 = vstv %s1755
    %v1757 = vmul.f32 %v291, %v1756
    %v1758 = vadd.f32 %v1754, %v1757
    %s1759 = sld [smem:[#allocation2 + $0x1a4]]
    %v1760 = vstv %s1759
    %v1761 = vmul.f32 %v335, %v1760
    %v1762 = vadd.f32 %v1758, %v1761
    %s1763 = sld [smem:[#allocation2 + $0x1a5]]
    %v1764 = vstv %s1763
    %v1765 = vmul.f32 %v379, %v1764
    %v1766 = vadd.f32 %v1762, %v1765
    %s1767 = sld [smem:[#allocation2 + $0x1a6]]
    %v1768 = vstv %s1767
    %v1769 = vmul.f32 %v423, %v1768
    %v1770 = vadd.f32 %v1766, %v1769
    %s1771 = sld [smem:[#allocation2 + $0x1a7]]
    %v1772 = vstv %s1771
    %v1773 = vmul.f32 %v467, %v1772
    %v1774 = vadd.f32 %v1770, %v1773
    %s1775 = sld [smem:[#allocation2 + $0x1a8]]
    %v1776 = vstv %s1775
    %v1777 = vmul.f32 %v511, %v1776
    %v1778 = vadd.f32 %v1774, %v1777
    %s1779 = sld [smem:[#allocation2 + $0x1a9]]
    %v1780 = vstv %s1779
    %v1781 = vmul.f32 %v555, %v1780
    %v1782 = vadd.f32 %v1778, %v1781
    %s1783 = sld [smem:[#allocation2 + $0x1aa]]
    %v1784 = vstv %s1783
    %v1785 = vmul.f32 %v599, %v1784
    %v1786 = vadd.f32 %v1782, %v1785
    %s1787 = sld [smem:[#allocation2 + $0x1ab]]
    %v1788 = vstv %s1787
    %v1789 = vmul.f32 %v643, %v1788
    %v1790 = vadd.f32 %v1786, %v1789
    %s1791 = sld [smem:[#allocation2 + $0x1ac]]
    %v1792 = vstv %s1791
    %v1793 = vmul.f32 %v687, %v1792
    %v1794 = vadd.f32 %v1790, %v1793
    %s1795 = sld [smem:[#allocation2 + $0x1ad]]
    %v1796 = vstv %s1795
    %v1797 = vmul.f32 %v731, %v1796
    %v1798 = vadd.f32 %v1794, %v1797
    %s1799 = sld [smem:[#allocation2 + $0x1ae]]
    %v1800 = vstv %s1799
    %v1801 = vmul.f32 %v775, %v1800
    %v1802 = vadd.f32 %v1798, %v1801
    %s1803 = sld [smem:[#allocation2 + $0x1af]]
    %v1804 = vstv %s1803
    %v1805 = vmul.f32 %v819, %v1804
    %v1806 = vadd.f32 %v1802, %v1805
    %s1807 = sld [smem:[#allocation2 + $0x1b0]]
    %v1808 = vstv %s1807
    %v1809 = vmul.f32 %v863, %v1808
    %v1810 = vadd.f32 %v1806, %v1809
    %s1811 = sld [smem:[#allocation2 + $0x1b1]]
    %v1812 = vstv %s1811
    %v1813 = vmul.f32 %v907, %v1812
    %v1814 = vadd.f32 %v1810, %v1813
    %s1815 = sld [smem:[#allocation2 + $0x1f3]]
    %v1816 = vstv %s1815
    %v1817 = vadd.f32 %v1814, %v1816
    %v1818 = vmul.f32 %v1817, 0.01
    %v1819 = vmax.f32 %v1817, %v1818
    %s1820 = sld [smem:[#allocation2 + $0x1b2]]
    %v1821 = vstv %s1820
    %v1822 = vmul.f32 %v159, %v1821
    %s1823 = sld [smem:[#allocation2 + $0x1b3]]
    %v1824 = vstv %s1823
    %v1825 = vmul.f32 %v203, %v1824
    %v1826 = vadd.f32 %v1822, %v1825
    %s1827 = sld [smem:[#allocation2 + $0x1b4]]
    %v1828 = vstv %s1827
    %v1829 = vmul.f32 %v247, %v1828
    %v1830 = vadd.f32 %v1826, %v1829
    %s1831 = sld [smem:[#allocation2 + $0x1b5]]
    %v1832 = vstv %s1831
    %v1833 = vmul.f32 %v291, %v1832
    %v1834 = vadd.f32 %v1830, %v1833
    %s1835 = sld [smem:[#allocation2 + $0x1b6]]
    %v1836 = vstv %s1835
    %v1837 = vmul.f32 %v335, %v1836
    %v1838 = vadd.f32 %v1834, %v1837
    %s1839 = sld [smem:[#allocation2 + $0x1b7]]
    %v1840 = vstv %s1839
    %v1841 = vmul.f32 %v379, %v1840
    %v1842 = vadd.f32 %v1838, %v1841
    %s1843 = sld [smem:[#allocation2 + $0x1b8]]
    %v1844 = vstv %s1843
    %v1845 = vmul.f32 %v423, %v1844
    %v1846 = vadd.f32 %v1842, %v1845
    %s1847 = sld [smem:[#allocation2 + $0x1b9]]
    %v1848 = vstv %s1847
    %v1849 = vmul.f32 %v467, %v1848
    %v1850 = vadd.f32 %v1846, %v1849
    %s1851 = sld [smem:[#allocation2 + $0x1ba]]
    %v1852 = vstv %s1851
    %v1853 = vmul.f32 %v511, %v1852
    %v1854 = vadd.f32 %v1850, %v1853
    %s1855 = sld [smem:[#allocation2 + $0x1bb]]
    %v1856 = vstv %s1855
    %v1857 = vmul.f32 %v555, %v1856
    %v1858 = vadd.f32 %v1854, %v1857
    %s1859 = sld [smem:[#allocation2 + $0x1bc]]
    %v1860 = vstv %s1859
    %v1861 = vmul.f32 %v599, %v1860
    %v1862 = vadd.f32 %v1858, %v1861
    %s1863 = sld [smem:[#allocation2 + $0x1bd]]
    %v1864 = vstv %s1863
    %v1865 = vmul.f32 %v643, %v1864
    %v1866 = vadd.f32 %v1862, %v1865
    %s1867 = sld [smem:[#allocation2 + $0x1be]]
    %v1868 = vstv %s1867
    %v1869 = vmul.f32 %v687, %v1868
    %v1870 = vadd.f32 %v1866, %v1869
    %s1871 = sld [smem:[#allocation2 + $0x1bf]]
    %v1872 = vstv %s1871
    %v1873 = vmul.f32 %v731, %v1872
    %v1874 = vadd.f32 %v1870, %v1873
    %s1875 = sld [smem:[#allocation2 + $0x1c0]]
    %v1876 = vstv %s1875
    %v1877 = vmul.f32 %v775, %v1876
    %v1878 = vadd.f32 %v1874, %v1877
    %s1879 = sld [smem:[#allocation2 + $0x1c1]]
    %v1880 = vstv %s1879
    %v1881 = vmul.f32 %v819, %v1880
    %v1882 = vadd.f32 %v1878, %v1881
    %s1883 = sld [smem:[#allocation2 + $0x1c2]]
    %v1884 = vstv %s1883
    %v1885 = vmul.f32 %v863, %v1884
    %v1886 = vadd.f32 %v1882, %v1885
    %s1887 = sld [smem:[#allocation2 + $0x1c3]]
    %v1888 = vstv %s1887
    %v1889 = vmul.f32 %v907, %v1888
    %v1890 = vadd.f32 %v1886, %v1889
    %s1891 = sld [smem:[#allocation2 + $0x1f4]]
    %v1892 = vstv %s1891
    %v1893 = vadd.f32 %v1890, %v1892
    %v1894 = vmul.f32 %v1893, 0.01
    %v1895 = vmax.f32 %v1893, %v1894
    %s1896 = sld [smem:[#allocation2 + $0x1c4]]
    %v1897 = vstv %s1896
    %v1898 = vmul.f32 %v159, %v1897
    %s1899 = sld [smem:[#allocation2 + $0x1c5]]
    %v1900 = vstv %s1899
    %v1901 = vmul.f32 %v203, %v1900
    %v1902 = vadd.f32 %v1898, %v1901
    %s1903 = sld [smem:[#allocation2 + $0x1c6]]
    %v1904 = vstv %s1903
    %v1905 = vmul.f32 %v247, %v1904
    %v1906 = vadd.f32 %v1902, %v1905
    %s1907 = sld [smem:[#allocation2 + $0x1c7]]
    %v1908 = vstv %s1907
    %v1909 = vmul.f32 %v291, %v1908
    %v1910 = vadd.f32 %v1906, %v1909
    %s1911 = sld [smem:[#allocation2 + $0x1c8]]
    %v1912 = vstv %s1911
    %v1913 = vmul.f32 %v335, %v1912
    %v1914 = vadd.f32 %v1910, %v1913
    %s1915 = sld [smem:[#allocation2 + $0x1c9]]
    %v1916 = vstv %s1915
    %v1917 = vmul.f32 %v379, %v1916
    %v1918 = vadd.f32 %v1914, %v1917
    %s1919 = sld [smem:[#allocation2 + $0x1ca]]
    %v1920 = vstv %s1919
    %v1921 = vmul.f32 %v423, %v1920
    %v1922 = vadd.f32 %v1918, %v1921
    %s1923 = sld [smem:[#allocation2 + $0x1cb]]
    %v1924 = vstv %s1923
    %v1925 = vmul.f32 %v467, %v1924
    %v1926 = vadd.f32 %v1922, %v1925
    %s1927 = sld [smem:[#allocation2 + $0x1cc]]
    %v1928 = vstv %s1927
    %v1929 = vmul.f32 %v511, %v1928
    %v1930 = vadd.f32 %v1926, %v1929
    %s1931 = sld [smem:[#allocation2 + $0x1cd]]
    %v1932 = vstv %s1931
    %v1933 = vmul.f32 %v555, %v1932
    %v1934 = vadd.f32 %v1930, %v1933
    %s1935 = sld [smem:[#allocation2 + $0x1ce]]
    %v1936 = vstv %s1935
    %v1937 = vmul.f32 %v599, %v1936
    %v1938 = vadd.f32 %v1934, %v1937
    %s1939 = sld [smem:[#allocation2 + $0x1cf]]
    %v1940 = vstv %s1939
    %v1941 = vmul.f32 %v643, %v1940
    %v1942 = vadd.f32 %v1938, %v1941
    %s1943 = sld [smem:[#allocation2 + $0x1d0]]
    %v1944 = vstv %s1943
    %v1945 = vmul.f32 %v687, %v1944
    %v1946 = vadd.f32 %v1942, %v1945
    %s1947 = sld [smem:[#allocation2 + $0x1d1]]
    %v1948 = vstv %s1947
    %v1949 = vmul.f32 %v731, %v1948
    %v1950 = vadd.f32 %v1946, %v1949
    %s1951 = sld [smem:[#allocation2 + $0x1d2]]
    %v1952 = vstv %s1951
    %v1953 = vmul.f32 %v775, %v1952
    %v1954 = vadd.f32 %v1950, %v1953
    %s1955 = sld [smem:[#allocation2 + $0x1d3]]
    %v1956 = vstv %s1955
    %v1957 = vmul.f32 %v819, %v1956
    %v1958 = vadd.f32 %v1954, %v1957
    %s1959 = sld [smem:[#allocation2 + $0x1d4]]
    %v1960 = vstv %s1959
    %v1961 = vmul.f32 %v863, %v1960
    %v1962 = vadd.f32 %v1958, %v1961
    %s1963 = sld [smem:[#allocation2 + $0x1d5]]
    %v1964 = vstv %s1963
    %v1965 = vmul.f32 %v907, %v1964
    %v1966 = vadd.f32 %v1962, %v1965
    %s1967 = sld [smem:[#allocation2 + $0x1f5]]
    %v1968 = vstv %s1967
    %v1969 = vadd.f32 %v1966, %v1968
    %v1970 = vmul.f32 %v1969, 0.01
    %v1971 = vmax.f32 %v1969, %v1970
    %s1972 = sld [smem:[#allocation2 + $0x1d6]]
    %v1973 = vstv %s1972
    %v1974 = vmul.f32 %v159, %v1973
    %s1975 = sld [smem:[#allocation2 + $0x1d7]]
    %v1976 = vstv %s1975
    %v1977 = vmul.f32 %v203, %v1976
    %v1978 = vadd.f32 %v1974, %v1977
    %s1979 = sld [smem:[#allocation2 + $0x1d8]]
    %v1980 = vstv %s1979
    %v1981 = vmul.f32 %v247, %v1980
    %v1982 = vadd.f32 %v1978, %v1981
    %s1983 = sld [smem:[#allocation2 + $0x1d9]]
    %v1984 = vstv %s1983
    %v1985 = vmul.f32 %v291, %v1984
    %v1986 = vadd.f32 %v1982, %v1985
    %s1987 = sld [smem:[#allocation2 + $0x1da]]
    %v1988 = vstv %s1987
    %v1989 = vmul.f32 %v335, %v1988
    %v1990 = vadd.f32 %v1986, %v1989
    %s1991 = sld [smem:[#allocation2 + $0x1db]]
    %v1992 = vstv %s1991
    %v1993 = vmul.f32 %v379, %v1992
    %v1994 = vadd.f32 %v1990, %v1993
    %s1995 = sld [smem:[#allocation2 + $0x1dc]]
    %v1996 = vstv %s1995
    %v1997 = vmul.f32 %v423, %v1996
    %v1998 = vadd.f32 %v1994, %v1997
    %s1999 = sld [smem:[#allocation2 + $0x1dd]]
    %v2000 = vstv %s1999
    %v2001 = vmul.f32 %v467, %v2000
    %v2002 = vadd.f32 %v1998, %v2001
    %s2003 = sld [smem:[#allocation2 + $0x1de]]
    %v2004 = vstv %s2003
    %v2005 = vmul.f32 %v511, %v2004
    %v2006 = vadd.f32 %v2002, %v2005
    %s2007 = sld [smem:[#allocation2 + $0x1df]]
    %v2008 = vstv %s2007
    %v2009 = vmul.f32 %v555, %v2008
    %v2010 = vadd.f32 %v2006, %v2009
    %s2011 = sld [smem:[#allocation2 + $0x1e0]]
    %v2012 = vstv %s2011
    %v2013 = vmul.f32 %v599, %v2012
    %v2014 = vadd.f32 %v2010, %v2013
    %s2015 = sld [smem:[#allocation2 + $0x1e1]]
    %v2016 = vstv %s2015
    %v2017 = vmul.f32 %v643, %v2016
    %v2018 = vadd.f32 %v2014, %v2017
    %s2019 = sld [smem:[#allocation2 + $0x1e2]]
    %v2020 = vstv %s2019
    %v2021 = vmul.f32 %v687, %v2020
    %v2022 = vadd.f32 %v2018, %v2021
    %s2023 = sld [smem:[#allocation2 + $0x1e3]]
    %v2024 = vstv %s2023
    %v2025 = vmul.f32 %v731, %v2024
    %v2026 = vadd.f32 %v2022, %v2025
    %s2027 = sld [smem:[#allocation2 + $0x1e4]]
    %v2028 = vstv %s2027
    %v2029 = vmul.f32 %v775, %v2028
    %v2030 = vadd.f32 %v2026, %v2029
    %s2031 = sld [smem:[#allocation2 + $0x1e5]]
    %v2032 = vstv %s2031
    %v2033 = vmul.f32 %v819, %v2032
    %v2034 = vadd.f32 %v2030, %v2033
    %s2035 = sld [smem:[#allocation2 + $0x1e6]]
    %v2036 = vstv %s2035
    %v2037 = vmul.f32 %v863, %v2036
    %v2038 = vadd.f32 %v2034, %v2037
    %s2039 = sld [smem:[#allocation2 + $0x1e7]]
    %v2040 = vstv %s2039
    %v2041 = vmul.f32 %v907, %v2040
    %v2042 = vadd.f32 %v2038, %v2041
    %s2043 = sld [smem:[#allocation2 + $0x1f6]]
    %v2044 = vstv %s2043
    %v2045 = vadd.f32 %v2042, %v2044
    %v2046 = vmul.f32 %v2045, 0.01
    %v2047 = vmax.f32 %v2045, %v2046
    %s2048 = sld [smem:[#allocation2 + $0x1f7]]
    %v2049 = vstv %s2048
    %v2050 = vmul.f32 %v983, %v2049
    %s2051 = sld [smem:[#allocation2 + $0x1f8]]
    %v2052 = vstv %s2051
    %v2053 = vmul.f32 %v1059, %v2052
    %v2054 = vadd.f32 %v2050, %v2053
    %s2055 = sld [smem:[#allocation2 + $0x1f9]]
    %v2056 = vstv %s2055
    %v2057 = vmul.f32 %v1135, %v2056
    %v2058 = vadd.f32 %v2054, %v2057
    %s2059 = sld [smem:[#allocation2 + $0x1fa]]
    %v2060 = vstv %s2059
    %v2061 = vmul.f32 %v1211, %v2060
    %v2062 = vadd.f32 %v2058, %v2061
    %s2063 = sld [smem:[#allocation2 + $0x1fb]]
    %v2064 = vstv %s2063
    %v2065 = vmul.f32 %v1287, %v2064
    %v2066 = vadd.f32 %v2062, %v2065
    %s2067 = sld [smem:[#allocation2 + $0x1fc]]
    %v2068 = vstv %s2067
    %v2069 = vmul.f32 %v1363, %v2068
    %v2070 = vadd.f32 %v2066, %v2069
    %s2071 = sld [smem:[#allocation2 + $0x1fd]]
    %v2072 = vstv %s2071
    %v2073 = vmul.f32 %v1439, %v2072
    %v2074 = vadd.f32 %v2070, %v2073
    %s2075 = sld [smem:[#allocation2 + $0x1fe]]
    %v2076 = vstv %s2075
    %v2077 = vmul.f32 %v1515, %v2076
    %v2078 = vadd.f32 %v2074, %v2077
    %s2079 = sld [smem:[#allocation2 + $0x1ff]]
    %v2080 = vstv %s2079
    %v2081 = vmul.f32 %v1591, %v2080
    %v2082 = vadd.f32 %v2078, %v2081
    %s2083 = sld [smem:[#allocation2 + $0x200]]
    %v2084 = vstv %s2083
    %v2085 = vmul.f32 %v1667, %v2084
    %v2086 = vadd.f32 %v2082, %v2085
    %s2087 = sld [smem:[#allocation2 + $0x201]]
    %v2088 = vstv %s2087
    %v2089 = vmul.f32 %v1743, %v2088
    %v2090 = vadd.f32 %v2086, %v2089
    %s2091 = sld [smem:[#allocation2 + $0x202]]
    %v2092 = vstv %s2091
    %v2093 = vmul.f32 %v1819, %v2092
    %v2094 = vadd.f32 %v2090, %v2093
    %s2095 = sld [smem:[#allocation2 + $0x203]]
    %v2096 = vstv %s2095
    %v2097 = vmul.f32 %v1895, %v2096
    %v2098 = vadd.f32 %v2094, %v2097
    %s2099 = sld [smem:[#allocation2 + $0x204]]
    %v2100 = vstv %s2099
    %v2101 = vmul.f32 %v1971, %v2100
    %v2102 = vadd.f32 %v2098, %v2101
    %s2103 = sld [smem:[#allocation2 + $0x205]]
    %v2104 = vstv %s2103
    %v2105 = vmul.f32 %v2047, %v2104
    %v2106 = vadd.f32 %v2102, %v2105
    %s2107 = sld [smem:[#allocation2 + $0x233]]
    %v2108 = vstv %s2107
    %v2109 = vadd.f32 %v2106, %v2108
    %v2110 = vmul.f32 %v2109, 0.01
    %v2111 = vmax.f32 %v2109, %v2110
    %s2112 = sld [smem:[#allocation2 + $0x206]]
    %v2113 = vstv %s2112
    %v2114 = vmul.f32 %v983, %v2113
    %s2115 = sld [smem:[#allocation2 + $0x207]]
    %v2116 = vstv %s2115
    %v2117 = vmul.f32 %v1059, %v2116
    %v2118 = vadd.f32 %v2114, %v2117
    %s2119 = sld [smem:[#allocation2 + $0x208]]
    %v2120 = vstv %s2119
    %v2121 = vmul.f32 %v1135, %v2120
    %v2122 = vadd.f32 %v2118, %v2121
    %s2123 = sld [smem:[#allocation2 + $0x209]]
    %v2124 = vstv %s2123
    %v2125 = vmul.f32 %v1211, %v2124
    %v2126 = vadd.f32 %v2122, %v2125
    %s2127 = sld [smem:[#allocation2 + $0x20a]]
    %v2128 = vstv %s2127
    %v2129 = vmul.f32 %v1287, %v2128
    %v2130 = vadd.f32 %v2126, %v2129
    %s2131 = sld [smem:[#allocation2 + $0x20b]]
    %v2132 = vstv %s2131
    %v2133 = vmul.f32 %v1363, %v2132
    %v2134 = vadd.f32 %v2130, %v2133
    %s2135 = sld [smem:[#allocation2 + $0x20c]]
    %v2136 = vstv %s2135
    %v2137 = vmul.f32 %v1439, %v2136
    %v2138 = vadd.f32 %v2134, %v2137
    %s2139 = sld [smem:[#allocation2 + $0x20d]]
    %v2140 = vstv %s2139
    %v2141 = vmul.f32 %v1515, %v2140
    %v2142 = vadd.f32 %v2138, %v2141
    %s2143 = sld [smem:[#allocation2 + $0x20e]]
    %v2144 = vstv %s2143
    %v2145 = vmul.f32 %v1591, %v2144
    %v2146 = vadd.f32 %v2142, %v2145
    %s2147 = sld [smem:[#allocation2 + $0x20f]]
    %v2148 = vstv %s2147
    %v2149 = vmul.f32 %v1667, %v2148
    %v2150 = vadd.f32 %v2146, %v2149
    %s2151 = sld [smem:[#allocation2 + $0x210]]
    %v2152 = vstv %s2151
    %v2153 = vmul.f32 %v1743, %v2152
    %v2154 = vadd.f32 %v2150, %v2153
    %s2155 = sld [smem:[#allocation2 + $0x211]]
    %v2156 = vstv %s2155
    %v2157 = vmul.f32 %v1819, %v2156
    %v2158 = vadd.f32 %v2154, %v2157
    %s2159 = sld [smem:[#allocation2 + $0x212]]
    %v2160 = vstv %s2159
    %v2161 = vmul.f32 %v1895, %v2160
    %v2162 = vadd.f32 %v2158, %v2161
    %s2163 = sld [smem:[#allocation2 + $0x213]]
    %v2164 = vstv %s2163
    %v2165 = vmul.f32 %v1971, %v2164
    %v2166 = vadd.f32 %v2162, %v2165
    %s2167 = sld [smem:[#allocation2 + $0x214]]
    %v2168 = vstv %s2167
    %v2169 = vmul.f32 %v2047, %v2168
    %v2170 = vadd.f32 %v2166, %v2169
    %s2171 = sld [smem:[#allocation2 + $0x234]]
    %v2172 = vstv %s2171
    %v2173 = vadd.f32 %v2170, %v2172
    %v2174 = vmul.f32 %v2173, 0.01
    %v2175 = vmax.f32 %v2173, %v2174
    %s2176 = sld [smem:[#allocation2 + $0x215]]
    %v2177 = vstv %s2176
    %v2178 = vmul.f32 %v983, %v2177
    %s2179 = sld [smem:[#allocation2 + $0x216]]
    %v2180 = vstv %s2179
    %v2181 = vmul.f32 %v1059, %v2180
    %v2182 = vadd.f32 %v2178, %v2181
    %s2183 = sld [smem:[#allocation2 + $0x217]]
    %v2184 = vstv %s2183
    %v2185 = vmul.f32 %v1135, %v2184
    %v2186 = vadd.f32 %v2182, %v2185
    %s2187 = sld [smem:[#allocation2 + $0x218]]
    %v2188 = vstv %s2187
    %v2189 = vmul.f32 %v1211, %v2188
    %v2190 = vadd.f32 %v2186, %v2189
    %s2191 = sld [smem:[#allocation2 + $0x219]]
    %v2192 = vstv %s2191
    %v2193 = vmul.f32 %v1287, %v2192
    %v2194 = vadd.f32 %v2190, %v2193
    %s2195 = sld [smem:[#allocation2 + $0x21a]]
    %v2196 = vstv %s2195
    %v2197 = vmul.f32 %v1363, %v2196
    %v2198 = vadd.f32 %v2194, %v2197
    %s2199 = sld [smem:[#allocation2 + $0x21b]]
    %v2200 = vstv %s2199
    %v2201 = vmul.f32 %v1439, %v2200
    %v2202 = vadd.f32 %v2198, %v2201
    %s2203 = sld [smem:[#allocation2 + $0x21c]]
    %v2204 = vstv %s2203
    %v2205 = vmul.f32 %v1515, %v2204
    %v2206 = vadd.f32 %v2202, %v2205
    %s2207 = sld [smem:[#allocation2 + $0x21d]]
    %v2208 = vstv %s2207
    %v2209 = vmul.f32 %v1591, %v2208
    %v2210 = vadd.f32 %v2206, %v2209
    %s2211 = sld [smem:[#allocation2 + $0x21e]]
    %v2212 = vstv %s2211
    %v2213 = vmul.f32 %v1667, %v2212
    %v2214 = vadd.f32 %v2210, %v2213
    %s2215 = sld [smem:[#allocation2 + $0x21f]]
    %v2216 = vstv %s2215
    %v2217 = vmul.f32 %v1743, %v2216
    %v2218 = vadd.f32 %v2214, %v2217
    %s2219 = sld [smem:[#allocation2 + $0x220]]
    %v2220 = vstv %s2219
    %v2221 = vmul.f32 %v1819, %v2220
    %v2222 = vadd.f32 %v2218, %v2221
    %s2223 = sld [smem:[#allocation2 + $0x221]]
    %v2224 = vstv %s2223
    %v2225 = vmul.f32 %v1895, %v2224
    %v2226 = vadd.f32 %v2222, %v2225
    %s2227 = sld [smem:[#allocation2 + $0x222]]
    %v2228 = vstv %s2227
    %v2229 = vmul.f32 %v1971, %v2228
    %v2230 = vadd.f32 %v2226, %v2229
    %s2231 = sld [smem:[#allocation2 + $0x223]]
    %v2232 = vstv %s2231
    %v2233 = vmul.f32 %v2047, %v2232
    %v2234 = vadd.f32 %v2230, %v2233
    %s2235 = sld [smem:[#allocation2 + $0x235]]
    %v2236 = vstv %s2235
    %v2237 = vadd.f32 %v2234, %v2236
    %v2238 = vmul.f32 %v2237, 0.01
    %v2239 = vmax.f32 %v2237, %v2238
    %s2240 = sld [smem:[#allocation2 + $0x224]]
    %v2241 = vstv %s2240
    %v2242 = vmul.f32 %v983, %v2241
    %s2243 = sld [smem:[#allocation2 + $0x225]]
    %v2244 = vstv %s2243
    %v2245 = vmul.f32 %v1059, %v2244
    %v2246 = vadd.f32 %v2242, %v2245
    %s2247 = sld [smem:[#allocation2 + $0x226]]
    %v2248 = vstv %s2247
    %v2249 = vmul.f32 %v1135, %v2248
    %v2250 = vadd.f32 %v2246, %v2249
    %s2251 = sld [smem:[#allocation2 + $0x227]]
    %v2252 = vstv %s2251
    %v2253 = vmul.f32 %v1211, %v2252
    %v2254 = vadd.f32 %v2250, %v2253
    %s2255 = sld [smem:[#allocation2 + $0x228]]
    %v2256 = vstv %s2255
    %v2257 = vmul.f32 %v1287, %v2256
    %v2258 = vadd.f32 %v2254, %v2257
    %s2259 = sld [smem:[#allocation2 + $0x229]]
    %v2260 = vstv %s2259
    %v2261 = vmul.f32 %v1363, %v2260
    %v2262 = vadd.f32 %v2258, %v2261
    %s2263 = sld [smem:[#allocation2 + $0x22a]]
    %v2264 = vstv %s2263
    %v2265 = vmul.f32 %v1439, %v2264
    %v2266 = vadd.f32 %v2262, %v2265
    %s2267 = sld [smem:[#allocation2 + $0x22b]]
    %v2268 = vstv %s2267
    %v2269 = vmul.f32 %v1515, %v2268
    %v2270 = vadd.f32 %v2266, %v2269
    %s2271 = sld [smem:[#allocation2 + $0x22c]]
    %v2272 = vstv %s2271
    %v2273 = vmul.f32 %v1591, %v2272
    %v2274 = vadd.f32 %v2270, %v2273
    %s2275 = sld [smem:[#allocation2 + $0x22d]]
    %v2276 = vstv %s2275
    %v2277 = vmul.f32 %v1667, %v2276
    %v2278 = vadd.f32 %v2274, %v2277
    %s2279 = sld [smem:[#allocation2 + $0x22e]]
    %v2280 = vstv %s2279
    %v2281 = vmul.f32 %v1743, %v2280
    %v2282 = vadd.f32 %v2278, %v2281
    %s2283 = sld [smem:[#allocation2 + $0x22f]]
    %v2284 = vstv %s2283
    %v2285 = vmul.f32 %v1819, %v2284
    %v2286 = vadd.f32 %v2282, %v2285
    %s2287 = sld [smem:[#allocation2 + $0x230]]
    %v2288 = vstv %s2287
    %v2289 = vmul.f32 %v1895, %v2288
    %v2290 = vadd.f32 %v2286, %v2289
    %s2291 = sld [smem:[#allocation2 + $0x231]]
    %v2292 = vstv %s2291
    %v2293 = vmul.f32 %v1971, %v2292
    %v2294 = vadd.f32 %v2290, %v2293
    %s2295 = sld [smem:[#allocation2 + $0x232]]
    %v2296 = vstv %s2295
    %v2297 = vmul.f32 %v2047, %v2296
    %v2298 = vadd.f32 %v2294, %v2297
    %s2299 = sld [smem:[#allocation2 + $0x236]]
    %v2300 = vstv %s2299
    %v2301 = vadd.f32 %v2298, %v2300
    %v2302 = vmul.f32 %v2301, 0.01
    %v2303 = vmax.f32 %v2301, %v2302
    %s2304 = sld [smem:[#allocation2 + $0x237]]
    %v2305 = vstv %s2304
    %v2306 = vmul.f32 %v2111, %v2305
    %s2307 = sld [smem:[#allocation2 + $0x238]]
    %v2308 = vstv %s2307
    %v2309 = vmul.f32 %v2175, %v2308
    %v2310 = vadd.f32 %v2306, %v2309
    %s2311 = sld [smem:[#allocation2 + $0x239]]
    %v2312 = vstv %s2311
    %v2313 = vmul.f32 %v2239, %v2312
    %v2314 = vadd.f32 %v2310, %v2313
    %s2315 = sld [smem:[#allocation2 + $0x23a]]
    %v2316 = vstv %s2315
    %v2317 = vmul.f32 %v2303, %v2316
    %v2318 = vadd.f32 %v2314, %v2317
    %s2319 = sld [smem:[#allocation2 + $0x23b]]
    %v2320 = vstv %s2319
    %v2321 = vadd.f32 %v2318, %v2320
    %2322 = vst [vmem:[#allocation7] sm:$0xff] %v2321
    // Predicated region
    $region18: #{tpu_custom_call.1} parent=1 // pred_check
      _
    $region19: #{tpu_custom_call.1} parent=1 // pred_check_branch
      %2324 = sbr.rel (0) target = $region21
    $region20: #{tpu_custom_call.1} parent=1 // pred_region
      %s2326 = ssub.s32 128, 128
      %2327 = vsyncadd [#allocation4], %s2326
      %s2329 = sshll.u32 [#allocation7], 4
      %s2330 = int_to_ptr.vmem [resolvable:$true] %s2329
      %2332 = dma.vmem_to_hbm [thread:$0]  %s2330, 128, %s2, [#allocation4]
    $region21: #{tpu_custom_call.1} parent=1 // pred_fallthru
      _
    // Predicated region
    $region22: #{tpu_custom_call.1} parent=1 // pred_check
      _
    $region23: #{tpu_custom_call.1} parent=1 // pred_check_branch
      %2334 = sbr.rel (0) target = $region25
    $region24: #{tpu_custom_call.1} parent=1 // pred_region
      %2335 = dma.done [#allocation4], 128
    $region25: #{tpu_custom_call.1} parent=1 // pred_fallthru
      _
    %2336 = vsyncpa [#allocation3], 1
    %2337 = vsyncpa [#allocation4], 1
    %2338 = vsyncpa [#allocation5], 1

</llo_original>
